<compile_context>
chip_gen: v7x
topology: tpu7x:2x2x1
jax: 0.10.0
libtpu: 0.0.40
codegen_flags: <defaults>
</compile_context>

<pallas_src>
import functools
import math

import jax
import jax.numpy as jnp
from jax.experimental import pallas as pl
from jax.experimental.pallas import tpu as pltpu


# ----------------------------------------------------------------------------
# Fused Pallas kernel
# ----------------------------------------------------------------------------
def _iqn_fused_kernel(n_quantiles,
                      inp_ref, hin_ref, tau_ref, pift_ref,
                      w1_ref, b1_ref, wgx_ref, wgh_ref, bgx_ref, bgh_ref,
                      wphi_ref, bphi_ref, w2bd_ref, b2bd_ref,
                      h_ref, q_ref,
                      gated_buf):
    f32 = jnp.float32
    bf16 = jnp.bfloat16
    H = hin_ref.shape[-1]
    nq = n_quantiles

    # ---- fc1 ---------------------------------------------------------------
    x = jnp.maximum(
        jnp.dot(inp_ref[...].astype(bf16), w1_ref[...],
                preferred_element_type=f32) + b1_ref[...], 0.0)

    # ---- GRUCell (fused (H,3H) gate weights, PyTorch gate order r, z, n) ----
    h_in = hin_ref[...]
    gx = (jnp.dot(x.astype(bf16), wgx_ref[...], preferred_element_type=f32)
          + bgx_ref[...])
    gh = (jnp.dot(h_in.astype(bf16), wgh_ref[...], preferred_element_type=f32)
          + bgh_ref[...])
    r = jax.nn.sigmoid(gx[:, 0:H] + gh[:, 0:H])
    z = jax.nn.sigmoid(gx[:, H:2 * H] + gh[:, H:2 * H])
    n = jnp.tanh(gx[:, 2 * H:3 * H] + r * gh[:, 2 * H:3 * H])
    h = (1.0 - z) * n + z * h_in
    h_ref[...] = h

    # ---- cosine quantile embedding + phi + gating, one lane slab / quantile -
    # gated[b, q*H:(q+1)*H] = h[b, :] * relu(phi(cos(pi * tau[b, q] * arange(E))))
    # Static Python loop over nq (small) -> fully unrolled, vectorized bodies,
    # no dynamic slices.
    for q in range(nq):
        tau_q = tau_ref[:, q:q + 1]                      # (rows, 1) f32
        cos_q = jnp.cos(tau_q * pift_ref[...])           # (rows, E) f32
        qphi_q = jnp.maximum(
            jnp.dot(cos_q.astype(bf16), wphi_ref[...],
                    preferred_element_type=f32) + bphi_ref[...], 0.0)
        gated_buf[:, q * H:(q + 1) * H] = (h * qphi_q).astype(bf16)

    # ---- fc2 with block-diagonal W2: columns already in (action, tau) order --
    q_ref[...] = (jnp.dot(gated_buf[...], w2bd_ref[...],
                          preferred_element_type=f32) + b2bd_ref[...])


# ----------------------------------------------------------------------------
# Block-size selection
# ----------------------------------------------------------------------------
def _choose_groups_per_block(n_groups, n_agents, max_rows=2048):
    """Largest group block with <= max_rows batch rows, preferring >=2 blocks
    (so the parallel grid axis can shard across v7x's two TensorCores) and
    satisfying the (8, 128) sublane tiling rule when the block is partial."""
    valid = []
    for g in range(1, n_groups + 1):
        if n_groups % g:
            continue
        rows = g * n_agents
        if rows > max_rows:
            continue
        if g != n_groups and rows % 8 != 0:
            continue
        valid.append(g)
    if not valid:
        return n_groups
    multi = [g for g in valid if n_groups // g >= 2]
    return max(multi) if multi else max(valid)


# ----------------------------------------------------------------------------
# Wrapper
# ----------------------------------------------------------------------------
def iqn_rnn_agent_forward(prepared, inputs, hidden_state, rnd_quantiles,
                          n_agents, groups_per_block=None,
                          vmem_limit_bytes=None):
    """
    inputs:        (B, input_shape) f32
    hidden_state:  (B, H) f32
    rnd_quantiles: (B // n_agents, nq) f32  (replaces th.rand(...))
    returns (q_vals (B, n_actions, nq), h (B, H), rnd_quantiles)
    """
    B, I = inputs.shape
    H = hidden_state.shape[-1]
    Bg, nq = rnd_quantiles.shape
    E = prepared["wphi"].shape[0]
    Anq = prepared["w2bd"].shape[1]
    A = Anq // nq
    assert Bg * n_agents == B, "batch must equal n_agents * grouped batch"

    if groups_per_block is None:
        groups_per_block = _choose_groups_per_block(Bg, n_agents)
    assert Bg % groups_per_block == 0
    n_blocks = Bg // groups_per_block
    rows_pb = groups_per_block * n_agents
    if groups_per_block != Bg:
        assert rows_pb % 8 == 0, rows_pb

    h_in = hidden_state.reshape(-1, H).astype(jnp.float32)
    # Row b of tau_full holds the nq quantiles of group b // n_agents.
    tau_full = jnp.repeat(rnd_quantiles.astype(jnp.float32), n_agents, axis=0)

    kernel = functools.partial(_iqn_fused_kernel, nq)
    row_map = lambda i: (i, 0)
    full_map = lambda i: (0, 0)

    grid_spec = pltpu.PrefetchScalarGridSpec(
        num_scalar_prefetch=0,
        grid=(n_blocks,),
        in_specs=[
            pl.BlockSpec((rows_pb, I), row_map),         # inputs
            pl.BlockSpec((rows_pb, H), row_map),         # h_in (aliased with h)
            pl.BlockSpec((rows_pb, nq), row_map),        # tau per batch row
            pl.BlockSpec((1, E), full_map),              # pi * feature_id
            pl.BlockSpec((I, H), full_map),              # w1
            pl.BlockSpec((1, H), full_map),              # b1
            pl.BlockSpec((H, 3 * H), full_map),          # wg_x  [r|z|n]
            pl.BlockSpec((H, 3 * H), full_map),          # wg_h  [r|z|n]
            pl.BlockSpec((1, 3 * H), full_map),          # bg_x
            pl.BlockSpec((1, 3 * H), full_map),          # bg_h
            pl.BlockSpec((E, H), full_map),              # wphi
            pl.BlockSpec((1, H), full_map),              # bphi
            pl.BlockSpec((nq * H, Anq), full_map),       # w2 block-diagonal
            pl.BlockSpec((1, Anq), full_map),            # b2 tiled over quantiles
        ],
        out_specs=[
            pl.BlockSpec((rows_pb, H), row_map),         # h
            pl.BlockSpec((rows_pb, Anq), row_map),       # q, column = a*nq + q
        ],
        scratch_shapes=[
            pltpu.VMEM((rows_pb, nq * H), jnp.bfloat16),  # gated (lane-major)
        ],
    )

    h, q_flat = pl.pallas_call(
        kernel,
        grid_spec=grid_spec,
        out_shape=[
            jax.ShapeDtypeStruct((B, H), jnp.float32),
            jax.ShapeDtypeStruct((B, Anq), jnp.float32),
        ],
        input_output_aliases={1: 0},                      # h_in -> h (in-place)
        compiler_params=pltpu.CompilerParams(
            dimension_semantics=("parallel",),
            vmem_limit_bytes=vmem_limit_bytes),
    )(inputs, h_in, tau_full, prepared["pift"],
      prepared["w1"], prepared["b1"],
      prepared["wg_x"], prepared["wg_h"], prepared["bg_x"], prepared["bg_h"],
      prepared["wphi"], prepared["bphi"],
      prepared["w2bd"], prepared["b2bd"])

    q_vals = q_flat.reshape(B, A, nq)   # pure reshape; no transpose needed
    return q_vals, h, rnd_quantiles


# ----------------------------------------------------------------------------
# Parameter preparation (fuse GRU gates, block-diagonal fc2, bf16 weights)
# ----------------------------------------------------------------------------
def prepare_params(p, n_quantiles):
    H = p["w1"].shape[1]
    E = p["wphi"].shape[0]
    A = p["w2"].shape[1]
    nq = n_quantiles

    wg_x = jnp.concatenate([p["wih"][0], p["wih"][1], p["wih"][2]], axis=1)  # (H,3H)
    wg_h = jnp.concatenate([p["whh"][0], p["whh"][1], p["whh"][2]], axis=1)  # (H,3H)
    bg_x = jnp.concatenate([p["bih"][0], p["bih"][1], p["bih"][2]], axis=1)  # (1,3H)
    bg_h = jnp.concatenate([p["bhh"][0], p["bhh"][1], p["bhh"][2]], axis=1)  # (1,3H)

    # Block-diagonal fc2: w2bd[q*H + k, a*nq + q] = w2[k, a].  Multiplying the
    # lane-major gated tensor by w2bd yields q already in (action, tau) order.
    w2bd = jnp.einsum("ka,qp->qkap", p["w2"],
                      jnp.eye(nq, dtype=p["w2"].dtype)).reshape(nq * H, A * nq)
    b2bd = jnp.repeat(p["b2"], nq, axis=1)                                   # (1,A*nq)

    return {
        "w1": p["w1"].astype(jnp.bfloat16), "b1": p["b1"].astype(jnp.float32),
        "wg_x": wg_x.astype(jnp.bfloat16), "wg_h": wg_h.astype(jnp.bfloat16),
        "bg_x": bg_x.astype(jnp.float32), "bg_h": bg_h.astype(jnp.float32),
        "wphi": p["wphi"].astype(jnp.bfloat16), "bphi": p["bphi"].astype(jnp.float32),
        "w2bd": w2bd.astype(jnp.bfloat16), "b2bd": b2bd.astype(jnp.float32),
        "pift": (math.pi * jnp.arange(E, dtype=jnp.float32)).reshape(1, E),
    }


# ----------------------------------------------------------------------------
# Pure-JAX reference (same math, f32, no Pallas) for correctness check
# ----------------------------------------------------------------------------
def reference_forward(params, inputs, hidden_state, rnd_quantiles, n_agents):
    B = inputs.shape[0]
    H = hidden_state.shape[-1]
    Bg, nq = rnd_quantiles.shape
    E = params["wphi"].shape[0]

    x = jnp.maximum(inputs @ params["w1"] + params["b1"], 0.0)
    h_in = hidden_state.reshape(-1, H)
    gi = [x @ params["wih"][i] + params["bih"][i] for i in range(3)]
    gh = [h_in @ params["whh"][i] + params["bhh"][i] for i in range(3)]
    r = jax.nn.sigmoid(gi[0] + gh[0])
    z = jax.nn.sigmoid(gi[1] + gh[1])
    n = jnp.tanh(gi[2] + r * gh[2])
    h = (1.0 - z) * n + z * h_in

    h2 = jnp.repeat(h, nq, axis=0)
    tau = jnp.repeat(rnd_quantiles, n_agents, axis=0).reshape(B * nq, 1)
    tau = jnp.broadcast_to(tau, (B * nq, E))
    feat = jnp.broadcast_to(jnp.arange(E, dtype=jnp.float32)[None, :], (B * nq, E))
    cos_emb = jnp.cos(math.pi * feat * tau)
    q_phi = jnp.maximum(cos_emb @ params["wphi"] + params["bphi"], 0.0)
    q_flat = (h2 * q_phi) @ params["w2"] + params["b2"]
    q_vals = q_flat.reshape(B, nq, -1).transpose(0, 2, 1)
    return q_vals, h, rnd_quantiles


# ----------------------------------------------------------------------------
# Deterministic parameter init (PyTorch-style uniform(-1/sqrt(fan_in), ...))
# ----------------------------------------------------------------------------
def init_params(key, input_shape, H, E, A):
    ks = jax.random.split(key, 10)

    def u(k, shape, fan_in):
        lim = 1.0 / math.sqrt(fan_in)
        return jax.random.uniform(k, shape, jnp.float32, -lim, lim)

    return {
        "w1":   u(ks[0], (input_shape, H), input_shape),
        "b1":   u(ks[1], (1, H), input_shape),
        "wih":  u(ks[2], (3, H, H), H),      # GRU input->hidden, gates (r, z, n)
        "whh":  u(ks[3], (3, H, H), H),      # GRU hidden->hidden
        "bih":  u(ks[4], (3, 1, H), H),
        "bhh":  u(ks[5], (3, 1, H), H),
        "wphi": u(ks[6], (E, H), E),
        "bphi": u(ks[7], (1, H), E),
        "w2":   u(ks[8], (H, A), H),
        "b2":   u(ks[9], (1, A), H),
    }


if __name__ == "__main__":
    # Small config consistent with the module (forward_type='policy', name != 'diql')
    input_shape = 32
    rnn_hidden_dim = 64
    quantile_embed_dim = 64
    n_quantiles = 8            # n_rnd_quantiles for forward_type='policy'
    n_actions = 8
    n_agents = 2
    batch_grouped = 8
    batch = batch_grouped * n_agents     # 16

    key = jax.random.PRNGKey(0)
    k_p, k_x, k_h, k_t = jax.random.split(key, 4)

    raw_params = init_params(k_p, input_shape, rnn_hidden_dim,
                             quantile_embed_dim, n_actions)
    prepared = prepare_params(raw_params, n_quantiles)

    inputs = jax.random.normal(k_x, (batch, input_shape), jnp.float32)
    hidden_state = jax.random.normal(k_h, (batch, rnn_hidden_dim), jnp.float32) * 0.1
    # th.rand(batch_grouped, 1, n_rnd_quantiles).reshape(-1) equivalent:
    rnd_quantiles = jax.random.uniform(
        k_t, (batch_grouped, n_quantiles), jnp.float32)

    # Reference computed first (hidden state buffer is aliased inside the kernel).
    q_expected, h_expected, _ = reference_forward(
        raw_params, inputs, hidden_state, rnd_quantiles, n_agents)

    fwd = jax.jit(iqn_rnn_agent_forward,
                  static_argnames=("n_agents", "groups_per_block",
                                   "vmem_limit_bytes"))
    # Auto block choice: groups_per_block=4 -> grid=(2,), 8 batch rows per block.
    q_vals, h_out, rq = fwd(prepared, inputs, hidden_state, rnd_quantiles,
                            n_agents=n_agents)
    jax.block_until_ready((q_vals, h_out, rq))

    assert q_vals.shape == (batch, n_actions, n_quantiles)
    assert h_out.shape == (batch, rnn_hidden_dim)
    assert rq.shape == (batch_grouped, n_quantiles)

    # bf16 matmuls with f32 accumulation -> slightly looser tolerance.
    assert jnp.allclose(h_out, h_expected, rtol=1e-2, atol=1e-2), \
        float(jnp.max(jnp.abs(h_out - h_expected)))
    assert jnp.allclose(q_vals, q_expected, rtol=2e-2, atol=2e-2), \
        float(jnp.max(jnp.abs(q_vals - q_expected)))

    print("KERNEL_OK")
</pallas_src>

<mosaic_0001>
module attributes {stable_mosaic.version = 11 : i64} {
  func.func @_iqn_fused_kernel(%arg0: i32, %arg1: memref<8x32xf32, #tpu.memory_space<vmem>>, %arg2: memref<8x64xf32, #tpu.memory_space<vmem>>, %arg3: memref<8x8xf32, #tpu.memory_space<vmem>>, %arg4: memref<1x64xf32, #tpu.memory_space<vmem>>, %arg5: memref<32x64xbf16, #tpu.memory_space<vmem>>, %arg6: memref<1x64xf32, #tpu.memory_space<vmem>>, %arg7: memref<64x192xbf16, #tpu.memory_space<vmem>>, %arg8: memref<64x192xbf16, #tpu.memory_space<vmem>>, %arg9: memref<1x192xf32, #tpu.memory_space<vmem>>, %arg10: memref<1x192xf32, #tpu.memory_space<vmem>>, %arg11: memref<64x64xbf16, #tpu.memory_space<vmem>>, %arg12: memref<1x64xf32, #tpu.memory_space<vmem>>, %arg13: memref<512x64xbf16, #tpu.memory_space<vmem>>, %arg14: memref<1x64xf32, #tpu.memory_space<vmem>>, %arg15: memref<8x64xf32, #tpu.memory_space<vmem>>, %arg16: memref<8x64xf32, #tpu.memory_space<vmem>>, %arg17: memref<8x512xbf16, #tpu.memory_space<vmem>>) attributes {dimension_semantics = [#tpu.dimension_semantics<parallel>], iteration_bounds = array<i64: 2>, scalar_prefetch = 0 : i64, scratch_operands = 1 : i64, tpu.core_type = #tpu.core_type<tc>, window_params = [{transform_indices = @transform_0, window_bounds = array<i64: 8, 32>}, {transform_indices = @transform_1, window_bounds = array<i64: 8, 64>}, {transform_indices = @transform_2, window_bounds = array<i64: 8, 8>}, {pipeline_mode = #tpu.pipeline_mode<synchronous>, transform_indices = @transform_3, window_bounds = array<i64: 1, 64>}, {pipeline_mode = #tpu.pipeline_mode<synchronous>, transform_indices = @transform_4, window_bounds = array<i64: 32, 64>}, {pipeline_mode = #tpu.pipeline_mode<synchronous>, transform_indices = @transform_5, window_bounds = array<i64: 1, 64>}, {pipeline_mode = #tpu.pipeline_mode<synchronous>, transform_indices = @transform_6, window_bounds = array<i64: 64, 192>}, {pipeline_mode = #tpu.pipeline_mode<synchronous>, transform_indices = @transform_7, window_bounds = array<i64: 64, 192>}, {pipeline_mode = #tpu.pipeline_mode<synchronous>, transform_indices = @transform_8, window_bounds = array<i64: 1, 192>}, {pipeline_mode = #tpu.pipeline_mode<synchronous>, transform_indices = @transform_9, window_bounds = array<i64: 1, 192>}, {pipeline_mode = #tpu.pipeline_mode<synchronous>, transform_indices = @transform_10, window_bounds = array<i64: 64, 64>}, {pipeline_mode = #tpu.pipeline_mode<synchronous>, transform_indices = @transform_11, window_bounds = array<i64: 1, 64>}, {pipeline_mode = #tpu.pipeline_mode<synchronous>, transform_indices = @transform_12, window_bounds = array<i64: 512, 64>}, {pipeline_mode = #tpu.pipeline_mode<synchronous>, transform_indices = @transform_13, window_bounds = array<i64: 1, 64>}, {transform_indices = @transform_14, window_bounds = array<i64: 8, 64>}, {transform_indices = @transform_15, window_bounds = array<i64: 8, 64>}]} {
    %c0 = arith.constant 0 : index
    %c0_0 = arith.constant 0 : index
    %0 = vector.load %arg1[%c0, %c0_0] : memref<8x32xf32, #tpu.memory_space<vmem>>, vector<8x32xf32>
    %1 = arith.truncf %0 : vector<8x32xf32> to vector<8x32xbf16>
    %c0_1 = arith.constant 0 : index
    %c0_2 = arith.constant 0 : index
    %2 = vector.load %arg5[%c0_1, %c0_2] : memref<32x64xbf16, #tpu.memory_space<vmem>>, vector<32x64xbf16>
    %cst = arith.constant dense<0.000000e+00> : vector<8x64xf32>
    %3 = tpu.matmul %1, %2, %cst {dimension_numbers = #tpu.dot_dimension_numbers<[1], [0], [0], [1], [0, 0, 1, 1], [], []>} : vector<8x32xbf16>, vector<32x64xbf16>, vector<8x64xf32> -> vector<8x64xf32>
    %c0_3 = arith.constant 0 : index
    %c0_4 = arith.constant 0 : index
    %4 = vector.load %arg6[%c0_3, %c0_4] : memref<1x64xf32, #tpu.memory_space<vmem>>, vector<1x64xf32>
    %5 = vector.broadcast %4 : vector<1x64xf32> to vector<8x64xf32>
    %6 = arith.addf %3, %5 : vector<8x64xf32>
    %cst_5 = arith.constant 0.000000e+00 : f32
    %7 = vector.broadcast %cst_5 : f32 to vector<8x64xf32>
    %8 = arith.maximumf %6, %7 : vector<8x64xf32>
    %c0_6 = arith.constant 0 : index
    %c0_7 = arith.constant 0 : index
    %9 = vector.load %arg2[%c0_6, %c0_7] : memref<8x64xf32, #tpu.memory_space<vmem>>, vector<8x64xf32>
    %10 = arith.truncf %8 : vector<8x64xf32> to vector<8x64xbf16>
    %c0_8 = arith.constant 0 : index
    %c0_9 = arith.constant 0 : index
    %11 = vector.load %arg7[%c0_8, %c0_9] : memref<64x192xbf16, #tpu.memory_space<vmem>>, vector<64x192xbf16>
    %cst_10 = arith.constant dense<0.000000e+00> : vector<8x192xf32>
    %12 = tpu.matmul %10, %11, %cst_10 {dimension_numbers = #tpu.dot_dimension_numbers<[1], [0], [0], [1], [0, 0, 1, 1], [], []>} : vector<8x64xbf16>, vector<64x192xbf16>, vector<8x192xf32> -> vector<8x192xf32>
    %c0_11 = arith.constant 0 : index
    %c0_12 = arith.constant 0 : index
    %13 = vector.load %arg9[%c0_11, %c0_12] : memref<1x192xf32, #tpu.memory_space<vmem>>, vector<1x192xf32>
    %14 = vector.broadcast %13 : vector<1x192xf32> to vector<8x192xf32>
    %15 = arith.addf %12, %14 : vector<8x192xf32>
    %16 = arith.truncf %9 : vector<8x64xf32> to vector<8x64xbf16>
    %c0_13 = arith.constant 0 : index
    %c0_14 = arith.constant 0 : index
    %17 = vector.load %arg8[%c0_13, %c0_14] : memref<64x192xbf16, #tpu.memory_space<vmem>>, vector<64x192xbf16>
    %cst_15 = arith.constant dense<0.000000e+00> : vector<8x192xf32>
    %18 = tpu.matmul %16, %17, %cst_15 {dimension_numbers = #tpu.dot_dimension_numbers<[1], [0], [0], [1], [0, 0, 1, 1], [], []>} : vector<8x64xbf16>, vector<64x192xbf16>, vector<8x192xf32> -> vector<8x192xf32>
    %c0_16 = arith.constant 0 : index
    %c0_17 = arith.constant 0 : index
    %19 = vector.load %arg10[%c0_16, %c0_17] : memref<1x192xf32, #tpu.memory_space<vmem>>, vector<1x192xf32>
    %20 = vector.broadcast %19 : vector<1x192xf32> to vector<8x192xf32>
    %21 = arith.addf %18, %20 : vector<8x192xf32>
    %22 = vector.extract_strided_slice %15 {offsets = [0, 0], sizes = [8, 64], strides = [1, 1]} : vector<8x192xf32> to vector<8x64xf32>
    %23 = vector.extract_strided_slice %21 {offsets = [0, 0], sizes = [8, 64], strides = [1, 1]} : vector<8x192xf32> to vector<8x64xf32>
    %24 = arith.addf %22, %23 : vector<8x64xf32>
    %25 = arith.negf %24 : vector<8x64xf32>
    %26 = math.exp %25 : vector<8x64xf32>
    %cst_18 = arith.constant 1.000000e+00 : f32
    %27 = vector.broadcast %cst_18 : f32 to vector<8x64xf32>
    %28 = arith.addf %27, %26 : vector<8x64xf32>
    %29 = arith.divf %27, %28 : vector<8x64xf32>
    %30 = vector.extract_strided_slice %15 {offsets = [0, 64], sizes = [8, 64], strides = [1, 1]} : vector<8x192xf32> to vector<8x64xf32>
    %31 = vector.extract_strided_slice %21 {offsets = [0, 64], sizes = [8, 64], strides = [1, 1]} : vector<8x192xf32> to vector<8x64xf32>
    %32 = arith.addf %30, %31 : vector<8x64xf32>
    %33 = arith.negf %32 : vector<8x64xf32>
    %34 = math.exp %33 : vector<8x64xf32>
    %cst_19 = arith.constant 1.000000e+00 : f32
    %35 = vector.broadcast %cst_19 : f32 to vector<8x64xf32>
    %36 = arith.addf %35, %34 : vector<8x64xf32>
    %37 = arith.divf %35, %36 : vector<8x64xf32>
    %38 = vector.extract_strided_slice %15 {offsets = [0, 128], sizes = [8, 64], strides = [1, 1]} : vector<8x192xf32> to vector<8x64xf32>
    %39 = vector.extract_strided_slice %21 {offsets = [0, 128], sizes = [8, 64], strides = [1, 1]} : vector<8x192xf32> to vector<8x64xf32>
    %40 = arith.mulf %29, %39 : vector<8x64xf32>
    %41 = arith.addf %38, %40 : vector<8x64xf32>
    %42 = math.tanh %41 : vector<8x64xf32>
    %cst_20 = arith.constant 1.000000e+00 : f32
    %43 = vector.broadcast %cst_20 : f32 to vector<8x64xf32>
    %44 = arith.subf %43, %37 : vector<8x64xf32>
    %45 = arith.mulf %44, %42 : vector<8x64xf32>
    %46 = arith.mulf %37, %9 : vector<8x64xf32>
    %47 = arith.addf %45, %46 : vector<8x64xf32>
    %c0_21 = arith.constant 0 : index
    %c0_22 = arith.constant 0 : index
    %48 = vector.load %arg15[%c0_21, %c0_22] : memref<8x64xf32, #tpu.memory_space<vmem>>, vector<8x64xf32>
    tpu.vector_store %arg15[%c0_21, %c0_22], %47 {strides = array<i32>} : memref<8x64xf32, #tpu.memory_space<vmem>>, vector<8x64xf32>,
    %c0_23 = arith.constant 0 : index
    %c0_24 = arith.constant 0 : index
    %49 = vector.load %arg3[%c0_23, %c0_24] : memref<8x8xf32, #tpu.memory_space<vmem>>, vector<8x1xf32>
    %c0_25 = arith.constant 0 : index
    %c0_26 = arith.constant 0 : index
    %50 = vector.load %arg4[%c0_25, %c0_26] : memref<1x64xf32, #tpu.memory_space<vmem>>, vector<1x64xf32>
    %51 = vector.broadcast %49 : vector<8x1xf32> to vector<8x64xf32>
    %52 = vector.broadcast %50 : vector<1x64xf32> to vector<8x64xf32>
    %53 = arith.mulf %51, %52 : vector<8x64xf32>
    %54 = math.cos %53 : vector<8x64xf32>
    %55 = arith.truncf %54 : vector<8x64xf32> to vector<8x64xbf16>
    %c0_27 = arith.constant 0 : index
    %c0_28 = arith.constant 0 : index
    %56 = vector.load %arg11[%c0_27, %c0_28] : memref<64x64xbf16, #tpu.memory_space<vmem>>, vector<64x64xbf16>
    %cst_29 = arith.constant dense<0.000000e+00> : vector<8x64xf32>
    %57 = tpu.matmul %55, %56, %cst_29 {dimension_numbers = #tpu.dot_dimension_numbers<[1], [0], [0], [1], [0, 0, 1, 1], [], []>} : vector<8x64xbf16>, vector<64x64xbf16>, vector<8x64xf32> -> vector<8x64xf32>
    %c0_30 = arith.constant 0 : index
    %c0_31 = arith.constant 0 : index
    %58 = vector.load %arg12[%c0_30, %c0_31] : memref<1x64xf32, #tpu.memory_space<vmem>>, vector<1x64xf32>
    %59 = vector.broadcast %58 : vector<1x64xf32> to vector<8x64xf32>
    %60 = arith.addf %57, %59 : vector<8x64xf32>
    %cst_32 = arith.constant 0.000000e+00 : f32
    %61 = vector.broadcast %cst_32 : f32 to vector<8x64xf32>
    %62 = arith.maximumf %60, %61 : vector<8x64xf32>
    %63 = arith.mulf %47, %62 : vector<8x64xf32>
    %64 = arith.truncf %63 : vector<8x64xf32> to vector<8x64xbf16>
    %c0_33 = arith.constant 0 : index
    %c0_34 = arith.constant 0 : index
    %65 = vector.load %arg17[%c0_33, %c0_34] : memref<8x512xbf16, #tpu.memory_space<vmem>>, vector<8x64xbf16>
    tpu.vector_store %arg17[%c0_33, %c0_34], %64 {strides = array<i32>} : memref<8x512xbf16, #tpu.memory_space<vmem>>, vector<8x64xbf16>,
    %c0_35 = arith.constant 0 : index
    %c1 = arith.constant 1 : index
    %66 = vector.load %arg3[%c0_35, %c1] : memref<8x8xf32, #tpu.memory_space<vmem>>, vector<8x1xf32>
    %c0_36 = arith.constant 0 : index
    %c0_37 = arith.constant 0 : index
    %67 = vector.load %arg4[%c0_36, %c0_37] : memref<1x64xf32, #tpu.memory_space<vmem>>, vector<1x64xf32>
    %68 = vector.broadcast %66 : vector<8x1xf32> to vector<8x64xf32>
    %69 = vector.broadcast %67 : vector<1x64xf32> to vector<8x64xf32>
    %70 = arith.mulf %68, %69 : vector<8x64xf32>
    %71 = math.cos %70 : vector<8x64xf32>
    %72 = arith.truncf %71 : vector<8x64xf32> to vector<8x64xbf16>
    %c0_38 = arith.constant 0 : index
    %c0_39 = arith.constant 0 : index
    %73 = vector.load %arg11[%c0_38, %c0_39] : memref<64x64xbf16, #tpu.memory_space<vmem>>, vector<64x64xbf16>
    %cst_40 = arith.constant dense<0.000000e+00> : vector<8x64xf32>
    %74 = tpu.matmul %72, %73, %cst_40 {dimension_numbers = #tpu.dot_dimension_numbers<[1], [0], [0], [1], [0, 0, 1, 1], [], []>} : vector<8x64xbf16>, vector<64x64xbf16>, vector<8x64xf32> -> vector<8x64xf32>
    %c0_41 = arith.constant 0 : index
    %c0_42 = arith.constant 0 : index
    %75 = vector.load %arg12[%c0_41, %c0_42] : memref<1x64xf32, #tpu.memory_space<vmem>>, vector<1x64xf32>
    %76 = vector.broadcast %75 : vector<1x64xf32> to vector<8x64xf32>
    %77 = arith.addf %74, %76 : vector<8x64xf32>
    %cst_43 = arith.constant 0.000000e+00 : f32
    %78 = vector.broadcast %cst_43 : f32 to vector<8x64xf32>
    %79 = arith.maximumf %77, %78 : vector<8x64xf32>
    %80 = arith.mulf %47, %79 : vector<8x64xf32>
    %81 = arith.truncf %80 : vector<8x64xf32> to vector<8x64xbf16>
    %c0_44 = arith.constant 0 : index
    %c64 = arith.constant 64 : index
    %82 = vector.load %arg17[%c0_44, %c64] : memref<8x512xbf16, #tpu.memory_space<vmem>>, vector<8x64xbf16>
    tpu.vector_store %arg17[%c0_44, %c64], %81 {strides = array<i32>} : memref<8x512xbf16, #tpu.memory_space<vmem>>, vector<8x64xbf16>,
    %c0_45 = arith.constant 0 : index
    %c2 = arith.constant 2 : index
    %83 = vector.load %arg3[%c0_45, %c2] : memref<8x8xf32, #tpu.memory_space<vmem>>, vector<8x1xf32>
    %c0_46 = arith.constant 0 : index
    %c0_47 = arith.constant 0 : index
    %84 = vector.load %arg4[%c0_46, %c0_47] : memref<1x64xf32, #tpu.memory_space<vmem>>, vector<1x64xf32>
    %85 = vector.broadcast %83 : vector<8x1xf32> to vector<8x64xf32>
    %86 = vector.broadcast %84 : vector<1x64xf32> to vector<8x64xf32>
    %87 = arith.mulf %85, %86 : vector<8x64xf32>
    %88 = math.cos %87 : vector<8x64xf32>
    %89 = arith.truncf %88 : vector<8x64xf32> to vector<8x64xbf16>
    %c0_48 = arith.constant 0 : index
    %c0_49 = arith.constant 0 : index
    %90 = vector.load %arg11[%c0_48, %c0_49] : memref<64x64xbf16, #tpu.memory_space<vmem>>, vector<64x64xbf16>
    %cst_50 = arith.constant dense<0.000000e+00> : vector<8x64xf32>
    %91 = tpu.matmul %89, %90, %cst_50 {dimension_numbers = #tpu.dot_dimension_numbers<[1], [0], [0], [1], [0, 0, 1, 1], [], []>} : vector<8x64xbf16>, vector<64x64xbf16>, vector<8x64xf32> -> vector<8x64xf32>
    %c0_51 = arith.constant 0 : index
    %c0_52 = arith.constant 0 : index
    %92 = vector.load %arg12[%c0_51, %c0_52] : memref<1x64xf32, #tpu.memory_space<vmem>>, vector<1x64xf32>
    %93 = vector.broadcast %92 : vector<1x64xf32> to vector<8x64xf32>
    %94 = arith.addf %91, %93 : vector<8x64xf32>
    %cst_53 = arith.constant 0.000000e+00 : f32
    %95 = vector.broadcast %cst_53 : f32 to vector<8x64xf32>
    %96 = arith.maximumf %94, %95 : vector<8x64xf32>
    %97 = arith.mulf %47, %96 : vector<8x64xf32>
    %98 = arith.truncf %97 : vector<8x64xf32> to vector<8x64xbf16>
    %c0_54 = arith.constant 0 : index
    %c128 = arith.constant 128 : index
    %99 = vector.load %arg17[%c0_54, %c128] : memref<8x512xbf16, #tpu.memory_space<vmem>>, vector<8x64xbf16>
    tpu.vector_store %arg17[%c0_54, %c128], %98 {strides = array<i32>} : memref<8x512xbf16, #tpu.memory_space<vmem>>, vector<8x64xbf16>,
    %c0_55 = arith.constant 0 : index
    %c3 = arith.constant 3 : index
    %100 = vector.load %arg3[%c0_55, %c3] : memref<8x8xf32, #tpu.memory_space<vmem>>, vector<8x1xf32>
    %c0_56 = arith.constant 0 : index
    %c0_57 = arith.constant 0 : index
    %101 = vector.load %arg4[%c0_56, %c0_57] : memref<1x64xf32, #tpu.memory_space<vmem>>, vector<1x64xf32>
    %102 = vector.broadcast %100 : vector<8x1xf32> to vector<8x64xf32>
    %103 = vector.broadcast %101 : vector<1x64xf32> to vector<8x64xf32>
    %104 = arith.mulf %102, %103 : vector<8x64xf32>
    %105 = math.cos %104 : vector<8x64xf32>
    %106 = arith.truncf %105 : vector<8x64xf32> to vector<8x64xbf16>
    %c0_58 = arith.constant 0 : index
    %c0_59 = arith.constant 0 : index
    %107 = vector.load %arg11[%c0_58, %c0_59] : memref<64x64xbf16, #tpu.memory_space<vmem>>, vector<64x64xbf16>
    %cst_60 = arith.constant dense<0.000000e+00> : vector<8x64xf32>
    %108 = tpu.matmul %106, %107, %cst_60 {dimension_numbers = #tpu.dot_dimension_numbers<[1], [0], [0], [1], [0, 0, 1, 1], [], []>} : vector<8x64xbf16>, vector<64x64xbf16>, vector<8x64xf32> -> vector<8x64xf32>
    %c0_61 = arith.constant 0 : index
    %c0_62 = arith.constant 0 : index
    %109 = vector.load %arg12[%c0_61, %c0_62] : memref<1x64xf32, #tpu.memory_space<vmem>>, vector<1x64xf32>
    %110 = vector.broadcast %109 : vector<1x64xf32> to vector<8x64xf32>
    %111 = arith.addf %108, %110 : vector<8x64xf32>
    %cst_63 = arith.constant 0.000000e+00 : f32
    %112 = vector.broadcast %cst_63 : f32 to vector<8x64xf32>
    %113 = arith.maximumf %111, %112 : vector<8x64xf32>
    %114 = arith.mulf %47, %113 : vector<8x64xf32>
    %115 = arith.truncf %114 : vector<8x64xf32> to vector<8x64xbf16>
    %c0_64 = arith.constant 0 : index
    %c192 = arith.constant 192 : index
    %116 = vector.load %arg17[%c0_64, %c192] : memref<8x512xbf16, #tpu.memory_space<vmem>>, vector<8x64xbf16>
    tpu.vector_store %arg17[%c0_64, %c192], %115 {strides = array<i32>} : memref<8x512xbf16, #tpu.memory_space<vmem>>, vector<8x64xbf16>,
    %c0_65 = arith.constant 0 : index
    %c4 = arith.constant 4 : index
    %117 = vector.load %arg3[%c0_65, %c4] : memref<8x8xf32, #tpu.memory_space<vmem>>, vector<8x1xf32>
    %c0_66 = arith.constant 0 : index
    %c0_67 = arith.constant 0 : index
    %118 = vector.load %arg4[%c0_66, %c0_67] : memref<1x64xf32, #tpu.memory_space<vmem>>, vector<1x64xf32>
    %119 = vector.broadcast %117 : vector<8x1xf32> to vector<8x64xf32>
    %120 = vector.broadcast %118 : vector<1x64xf32> to vector<8x64xf32>
    %121 = arith.mulf %119, %120 : vector<8x64xf32>
    %122 = math.cos %121 : vector<8x64xf32>
    %123 = arith.truncf %122 : vector<8x64xf32> to vector<8x64xbf16>
    %c0_68 = arith.constant 0 : index
    %c0_69 = arith.constant 0 : index
    %124 = vector.load %arg11[%c0_68, %c0_69] : memref<64x64xbf16, #tpu.memory_space<vmem>>, vector<64x64xbf16>
    %cst_70 = arith.constant dense<0.000000e+00> : vector<8x64xf32>
    %125 = tpu.matmul %123, %124, %cst_70 {dimension_numbers = #tpu.dot_dimension_numbers<[1], [0], [0], [1], [0, 0, 1, 1], [], []>} : vector<8x64xbf16>, vector<64x64xbf16>, vector<8x64xf32> -> vector<8x64xf32>
    %c0_71 = arith.constant 0 : index
    %c0_72 = arith.constant 0 : index
    %126 = vector.load %arg12[%c0_71, %c0_72] : memref<1x64xf32, #tpu.memory_space<vmem>>, vector<1x64xf32>
    %127 = vector.broadcast %126 : vector<1x64xf32> to vector<8x64xf32>
    %128 = arith.addf %125, %127 : vector<8x64xf32>
    %cst_73 = arith.constant 0.000000e+00 : f32
    %129 = vector.broadcast %cst_73 : f32 to vector<8x64xf32>
    %130 = arith.maximumf %128, %129 : vector<8x64xf32>
    %131 = arith.mulf %47, %130 : vector<8x64xf32>
    %132 = arith.truncf %131 : vector<8x64xf32> to vector<8x64xbf16>
    %c0_74 = arith.constant 0 : index
    %c256 = arith.constant 256 : index
    %133 = vector.load %arg17[%c0_74, %c256] : memref<8x512xbf16, #tpu.memory_space<vmem>>, vector<8x64xbf16>
    tpu.vector_store %arg17[%c0_74, %c256], %132 {strides = array<i32>} : memref<8x512xbf16, #tpu.memory_space<vmem>>, vector<8x64xbf16>,
    %c0_75 = arith.constant 0 : index
    %c5 = arith.constant 5 : index
    %134 = vector.load %arg3[%c0_75, %c5] : memref<8x8xf32, #tpu.memory_space<vmem>>, vector<8x1xf32>
    %c0_76 = arith.constant 0 : index
    %c0_77 = arith.constant 0 : index
    %135 = vector.load %arg4[%c0_76, %c0_77] : memref<1x64xf32, #tpu.memory_space<vmem>>, vector<1x64xf32>
    %136 = vector.broadcast %134 : vector<8x1xf32> to vector<8x64xf32>
    %137 = vector.broadcast %135 : vector<1x64xf32> to vector<8x64xf32>
    %138 = arith.mulf %136, %137 : vector<8x64xf32>
    %139 = math.cos %138 : vector<8x64xf32>
    %140 = arith.truncf %139 : vector<8x64xf32> to vector<8x64xbf16>
    %c0_78 = arith.constant 0 : index
    %c0_79 = arith.constant 0 : index
    %141 = vector.load %arg11[%c0_78, %c0_79] : memref<64x64xbf16, #tpu.memory_space<vmem>>, vector<64x64xbf16>
    %cst_80 = arith.constant dense<0.000000e+00> : vector<8x64xf32>
    %142 = tpu.matmul %140, %141, %cst_80 {dimension_numbers = #tpu.dot_dimension_numbers<[1], [0], [0], [1], [0, 0, 1, 1], [], []>} : vector<8x64xbf16>, vector<64x64xbf16>, vector<8x64xf32> -> vector<8x64xf32>
    %c0_81 = arith.constant 0 : index
    %c0_82 = arith.constant 0 : index
    %143 = vector.load %arg12[%c0_81, %c0_82] : memref<1x64xf32, #tpu.memory_space<vmem>>, vector<1x64xf32>
    %144 = vector.broadcast %143 : vector<1x64xf32> to vector<8x64xf32>
    %145 = arith.addf %142, %144 : vector<8x64xf32>
    %cst_83 = arith.constant 0.000000e+00 : f32
    %146 = vector.broadcast %cst_83 : f32 to vector<8x64xf32>
    %147 = arith.maximumf %145, %146 : vector<8x64xf32>
    %148 = arith.mulf %47, %147 : vector<8x64xf32>
    %149 = arith.truncf %148 : vector<8x64xf32> to vector<8x64xbf16>
    %c0_84 = arith.constant 0 : index
    %c320 = arith.constant 320 : index
    %150 = vector.load %arg17[%c0_84, %c320] : memref<8x512xbf16, #tpu.memory_space<vmem>>, vector<8x64xbf16>
    tpu.vector_store %arg17[%c0_84, %c320], %149 {strides = array<i32>} : memref<8x512xbf16, #tpu.memory_space<vmem>>, vector<8x64xbf16>,
    %c0_85 = arith.constant 0 : index
    %c6 = arith.constant 6 : index
    %151 = vector.load %arg3[%c0_85, %c6] : memref<8x8xf32, #tpu.memory_space<vmem>>, vector<8x1xf32>
    %c0_86 = arith.constant 0 : index
    %c0_87 = arith.constant 0 : index
    %152 = vector.load %arg4[%c0_86, %c0_87] : memref<1x64xf32, #tpu.memory_space<vmem>>, vector<1x64xf32>
    %153 = vector.broadcast %151 : vector<8x1xf32> to vector<8x64xf32>
    %154 = vector.broadcast %152 : vector<1x64xf32> to vector<8x64xf32>
    %155 = arith.mulf %153, %154 : vector<8x64xf32>
    %156 = math.cos %155 : vector<8x64xf32>
    %157 = arith.truncf %156 : vector<8x64xf32> to vector<8x64xbf16>
    %c0_88 = arith.constant 0 : index
    %c0_89 = arith.constant 0 : index
    %158 = vector.load %arg11[%c0_88, %c0_89] : memref<64x64xbf16, #tpu.memory_space<vmem>>, vector<64x64xbf16>
    %cst_90 = arith.constant dense<0.000000e+00> : vector<8x64xf32>
    %159 = tpu.matmul %157, %158, %cst_90 {dimension_numbers = #tpu.dot_dimension_numbers<[1], [0], [0], [1], [0, 0, 1, 1], [], []>} : vector<8x64xbf16>, vector<64x64xbf16>, vector<8x64xf32> -> vector<8x64xf32>
    %c0_91 = arith.constant 0 : index
    %c0_92 = arith.constant 0 : index
    %160 = vector.load %arg12[%c0_91, %c0_92] : memref<1x64xf32, #tpu.memory_space<vmem>>, vector<1x64xf32>
    %161 = vector.broadcast %160 : vector<1x64xf32> to vector<8x64xf32>
    %162 = arith.addf %159, %161 : vector<8x64xf32>
    %cst_93 = arith.constant 0.000000e+00 : f32
    %163 = vector.broadcast %cst_93 : f32 to vector<8x64xf32>
    %164 = arith.maximumf %162, %163 : vector<8x64xf32>
    %165 = arith.mulf %47, %164 : vector<8x64xf32>
    %166 = arith.truncf %165 : vector<8x64xf32> to vector<8x64xbf16>
    %c0_94 = arith.constant 0 : index
    %c384 = arith.constant 384 : index
    %167 = vector.load %arg17[%c0_94, %c384] : memref<8x512xbf16, #tpu.memory_space<vmem>>, vector<8x64xbf16>
    tpu.vector_store %arg17[%c0_94, %c384], %166 {strides = array<i32>} : memref<8x512xbf16, #tpu.memory_space<vmem>>, vector<8x64xbf16>,
    %c0_95 = arith.constant 0 : index
    %c7 = arith.constant 7 : index
    %168 = vector.load %arg3[%c0_95, %c7] : memref<8x8xf32, #tpu.memory_space<vmem>>, vector<8x1xf32>
    %c0_96 = arith.constant 0 : index
    %c0_97 = arith.constant 0 : index
    %169 = vector.load %arg4[%c0_96, %c0_97] : memref<1x64xf32, #tpu.memory_space<vmem>>, vector<1x64xf32>
    %170 = vector.broadcast %168 : vector<8x1xf32> to vector<8x64xf32>
    %171 = vector.broadcast %169 : vector<1x64xf32> to vector<8x64xf32>
    %172 = arith.mulf %170, %171 : vector<8x64xf32>
    %173 = math.cos %172 : vector<8x64xf32>
    %174 = arith.truncf %173 : vector<8x64xf32> to vector<8x64xbf16>
    %c0_98 = arith.constant 0 : index
    %c0_99 = arith.constant 0 : index
    %175 = vector.load %arg11[%c0_98, %c0_99] : memref<64x64xbf16, #tpu.memory_space<vmem>>, vector<64x64xbf16>
    %cst_100 = arith.constant dense<0.000000e+00> : vector<8x64xf32>
    %176 = tpu.matmul %174, %175, %cst_100 {dimension_numbers = #tpu.dot_dimension_numbers<[1], [0], [0], [1], [0, 0, 1, 1], [], []>} : vector<8x64xbf16>, vector<64x64xbf16>, vector<8x64xf32> -> vector<8x64xf32>
    %c0_101 = arith.constant 0 : index
    %c0_102 = arith.constant 0 : index
    %177 = vector.load %arg12[%c0_101, %c0_102] : memref<1x64xf32, #tpu.memory_space<vmem>>, vector<1x64xf32>
    %178 = vector.broadcast %177 : vector<1x64xf32> to vector<8x64xf32>
    %179 = arith.addf %176, %178 : vector<8x64xf32>
    %cst_103 = arith.constant 0.000000e+00 : f32
    %180 = vector.broadcast %cst_103 : f32 to vector<8x64xf32>
    %181 = arith.maximumf %179, %180 : vector<8x64xf32>
    %182 = arith.mulf %47, %181 : vector<8x64xf32>
    %183 = arith.truncf %182 : vector<8x64xf32> to vector<8x64xbf16>
    %c0_104 = arith.constant 0 : index
    %c448 = arith.constant 448 : index
    %184 = vector.load %arg17[%c0_104, %c448] : memref<8x512xbf16, #tpu.memory_space<vmem>>, vector<8x64xbf16>
    tpu.vector_store %arg17[%c0_104, %c448], %183 {strides = array<i32>} : memref<8x512xbf16, #tpu.memory_space<vmem>>, vector<8x64xbf16>,
    %c0_105 = arith.constant 0 : index
    %c0_106 = arith.constant 0 : index
    %185 = vector.load %arg17[%c0_105, %c0_106] : memref<8x512xbf16, #tpu.memory_space<vmem>>, vector<8x512xbf16>
    %c0_107 = arith.constant 0 : index
    %c0_108 = arith.constant 0 : index
    %186 = vector.load %arg13[%c0_107, %c0_108] : memref<512x64xbf16, #tpu.memory_space<vmem>>, vector<512x64xbf16>
    %cst_109 = arith.constant dense<0.000000e+00> : vector<8x64xf32>
    %187 = tpu.matmul %185, %186, %cst_109 {dimension_numbers = #tpu.dot_dimension_numbers<[1], [0], [0], [1], [0, 0, 1, 1], [], []>} : vector<8x512xbf16>, vector<512x64xbf16>, vector<8x64xf32> -> vector<8x64xf32>
    %c0_110 = arith.constant 0 : index
    %c0_111 = arith.constant 0 : index
    %188 = vector.load %arg14[%c0_110, %c0_111] : memref<1x64xf32, #tpu.memory_space<vmem>>, vector<1x64xf32>
    %189 = vector.broadcast %188 : vector<1x64xf32> to vector<8x64xf32>
    %190 = arith.addf %187, %189 : vector<8x64xf32>
    %c0_112 = arith.constant 0 : index
    %c0_113 = arith.constant 0 : index
    %191 = vector.load %arg16[%c0_112, %c0_113] : memref<8x64xf32, #tpu.memory_space<vmem>>, vector<8x64xf32>
    tpu.vector_store %arg16[%c0_112, %c0_113], %190 {strides = array<i32>} : memref<8x64xf32, #tpu.memory_space<vmem>>, vector<8x64xf32>,
    return
  }
  func.func @transform_0(%arg0: i32) -> (i32, i32) {
    %c0_i32 = arith.constant 0 : i32
    %c0_i32_0 = arith.constant 0 : i32
    return %arg0, %c0_i32 : i32, i32
  }
  func.func @transform_1(%arg0: i32) -> (i32, i32) {
    %c0_i32 = arith.constant 0 : i32
    %c0_i32_0 = arith.constant 0 : i32
    return %arg0, %c0_i32 : i32, i32
  }
  func.func @transform_2(%arg0: i32) -> (i32, i32) {
    %c0_i32 = arith.constant 0 : i32
    %c0_i32_0 = arith.constant 0 : i32
    return %arg0, %c0_i32 : i32, i32
  }
  func.func @transform_3(%arg0: i32) -> (i32, i32) {
    %c0_i32 = arith.constant 0 : i32
    %c0_i32_0 = arith.constant 0 : i32
    %c0_i32_1 = arith.constant 0 : i32
    return %c0_i32, %c0_i32_0 : i32, i32
  }
  func.func @transform_4(%arg0: i32) -> (i32, i32) {
    %c0_i32 = arith.constant 0 : i32
    %c0_i32_0 = arith.constant 0 : i32
    %c0_i32_1 = arith.constant 0 : i32
    return %c0_i32, %c0_i32_0 : i32, i32
  }
  func.func @transform_5(%arg0: i32) -> (i32, i32) {
    %c0_i32 = arith.constant 0 : i32
    %c0_i32_0 = arith.constant 0 : i32
    %c0_i32_1 = arith.constant 0 : i32
    return %c0_i32, %c0_i32_0 : i32, i32
  }
  func.func @transform_6(%arg0: i32) -> (i32, i32) {
    %c0_i32 = arith.constant 0 : i32
    %c0_i32_0 = arith.constant 0 : i32
    %c0_i32_1 = arith.constant 0 : i32
    return %c0_i32, %c0_i32_0 : i32, i32
  }
  func.func @transform_7(%arg0: i32) -> (i32, i32) {
    %c0_i32 = arith.constant 0 : i32
    %c0_i32_0 = arith.constant 0 : i32
    %c0_i32_1 = arith.constant 0 : i32
    return %c0_i32, %c0_i32_0 : i32, i32
  }
  func.func @transform_8(%arg0: i32) -> (i32, i32) {
    %c0_i32 = arith.constant 0 : i32
    %c0_i32_0 = arith.constant 0 : i32
    %c0_i32_1 = arith.constant 0 : i32
    return %c0_i32, %c0_i32_0 : i32, i32
  }
  func.func @transform_9(%arg0: i32) -> (i32, i32) {
    %c0_i32 = arith.constant 0 : i32
    %c0_i32_0 = arith.constant 0 : i32
    %c0_i32_1 = arith.constant 0 : i32
    return %c0_i32, %c0_i32_0 : i32, i32
  }
  func.func @transform_10(%arg0: i32) -> (i32, i32) {
    %c0_i32 = arith.constant 0 : i32
    %c0_i32_0 = arith.constant 0 : i32
    %c0_i32_1 = arith.constant 0 : i32
    return %c0_i32, %c0_i32_0 : i32, i32
  }
  func.func @transform_11(%arg0: i32) -> (i32, i32) {
    %c0_i32 = arith.constant 0 : i32
    %c0_i32_0 = arith.constant 0 : i32
    %c0_i32_1 = arith.constant 0 : i32
    return %c0_i32, %c0_i32_0 : i32, i32
  }
  func.func @transform_12(%arg0: i32) -> (i32, i32) {
    %c0_i32 = arith.constant 0 : i32
    %c0_i32_0 = arith.constant 0 : i32
    %c0_i32_1 = arith.constant 0 : i32
    return %c0_i32, %c0_i32_0 : i32, i32
  }
  func.func @transform_13(%arg0: i32) -> (i32, i32) {
    %c0_i32 = arith.constant 0 : i32
    %c0_i32_0 = arith.constant 0 : i32
    %c0_i32_1 = arith.constant 0 : i32
    return %c0_i32, %c0_i32_0 : i32, i32
  }
  func.func @transform_14(%arg0: i32) -> (i32, i32) {
    %c0_i32 = arith.constant 0 : i32
    %c0_i32_0 = arith.constant 0 : i32
    return %arg0, %c0_i32 : i32, i32
  }
  func.func @transform_15(%arg0: i32) -> (i32, i32) {
    %c0_i32 = arith.constant 0 : i32
    %c0_i32_0 = arith.constant 0 : i32
    return %arg0, %c0_i32 : i32, i32
  }
}

</mosaic_0001>

<llo_original>
// kernel: iqn_rnn_agent_forward.1
$region0: #{iqn_rnn_agent_forward.1}
  #allocation0 [shape = 'u32[]', space=smem, size = 0x4, offset = 0x4, fixed_abs, tag = 'smem constant byte address 0x4 - core index']
  #allocation1 [shape = 'u32[144,128]{1,0:T(1,128)}', space=vmem, size = 0x12000, scoped, tag = 'internal scratch']
  #allocation2 [shape = 'bf16[8,512]{1,0:T(8,128)(2,1)}', space=vmem, size = 0x2000, scoped, tag = 'scratch operand']
  %s0 = inlined_call_operand.vmem [shape: f32[16,32], index: 0, kind: input, shape index: {}]
  %s1 = inlined_call_operand.vmem [shape: f32[16,64], index: 1, kind: input, shape index: {}, may-alias: {1,14}]
  %s2 = inlined_call_operand.vmem [shape: f32[16,8], index: 2, kind: input, shape index: {}]
  %s3 = inlined_call_operand.vmem [shape: f32[1,64], index: 3, kind: input, shape index: {}]
  %s4 = inlined_call_operand.vmem [shape: bf16[32,64], index: 4, kind: input, shape index: {}]
  %s5 = inlined_call_operand.vmem [shape: f32[1,64], index: 5, kind: input, shape index: {}]
  %s6 = inlined_call_operand.vmem [shape: bf16[64,192], index: 6, kind: input, shape index: {}]
  %s7 = inlined_call_operand.vmem [shape: bf16[64,192], index: 7, kind: input, shape index: {}]
  %s8 = inlined_call_operand.vmem [shape: f32[1,192], index: 8, kind: input, shape index: {}]
  %s9 = inlined_call_operand.vmem [shape: f32[1,192], index: 9, kind: input, shape index: {}]
  %s10 = inlined_call_operand.vmem [shape: bf16[64,64], index: 10, kind: input, shape index: {}]
  %s11 = inlined_call_operand.vmem [shape: f32[1,64], index: 11, kind: input, shape index: {}]
  %s12 = inlined_call_operand.vmem [shape: bf16[512,64], index: 12, kind: input, shape index: {}]
  %s13 = inlined_call_operand.vmem [shape: f32[1,64], index: 13, kind: input, shape index: {}]
  %s14 = inlined_call_operand.vmem [shape: f32[16,64], index: 14, kind: output, shape index: {0}, may-alias: {1,14}]
  %s15 = inlined_call_operand.vmem [shape: f32[16,64], index: 15, kind: output, shape index: {1}]
  %16 = xla_tuple %s14, %s15
  %s17 = sld [smem:[#allocation0]]
  $region97: #{iqn_rnn_agent_forward.1} parent=0
    _
  %s19 = ssub.s32 1, %s17
  %s20 = scalar_select 0, %s19, %s17
  loop: start=0, step=1, limit=4
  $region2: #{iqn_rnn_agent_forward.1} parent=0 // loop_pre_header
    _
  $region3: #{iqn_rnn_agent_forward.1} parent=0 // loop_header
    %s22 = sphi 0, %s26
    %p23 = scmp.ge.s32.totalorder %s22, 4
    %s32 = sphi 0, %s34
    %s35 = sphi 0, %s32
    %s36 = sphi 0, %s35
    %s52 = sphi 0, %s36
    %s58 = sphi 0, %s60
    %s61 = sphi 0, %s58
    %s62 = sphi 0, %s61
    %s78 = sphi 0, %s62
    %s84 = sphi 0, %s86
    %s87 = sphi 0, %s84
    %s88 = sphi 0, %s87
    %s104 = sphi 0, %s88
    %s108 = sphi 0, %s108
    %s110 = sphi 0, %s108
    %s111 = sphi 0, %s110
    %s125 = sphi 0, %s111
    %s129 = sphi 0, %s129
    %s131 = sphi 0, %s129
    %s132 = sphi 0, %s131
    %s146 = sphi 0, %s132
    %s150 = sphi 0, %s150
    %s152 = sphi 0, %s150
    %s153 = sphi 0, %s152
    %s167 = sphi 0, %s153
    %s171 = sphi 0, %s171
    %s173 = sphi 0, %s171
    %s174 = sphi 0, %s173
    %s188 = sphi 0, %s174
    %s192 = sphi 0, %s192
    %s194 = sphi 0, %s192
    %s195 = sphi 0, %s194
    %s209 = sphi 0, %s195
    %s213 = sphi 0, %s213
    %s215 = sphi 0, %s213
    %s216 = sphi 0, %s215
    %s230 = sphi 0, %s216
    %s234 = sphi 0, %s234
    %s236 = sphi 0, %s234
    %s237 = sphi 0, %s236
    %s251 = sphi 0, %s237
    %s255 = sphi 0, %s255
    %s257 = sphi 0, %s255
    %s258 = sphi 0, %s257
    %s272 = sphi 0, %s258
    %s276 = sphi 0, %s276
    %s278 = sphi 0, %s276
    %s279 = sphi 0, %s278
    %s293 = sphi 0, %s279
    %s297 = sphi 0, %s297
    %s299 = sphi 0, %s297
    %s300 = sphi 0, %s299
    %s314 = sphi 0, %s300
    %s318 = sphi 0, %s318
    %s320 = sphi 0, %s318
    %s321 = sphi 0, %s320
    %s335 = sphi 0, %s321
    %s341 = sphi 0, %s343
    %s344 = sphi 0, %s341
    %s345 = sphi 0, %s344
    %s361 = sphi 0, %s345
    %s367 = sphi 0, %s369
    %s370 = sphi 0, %s367
    %s371 = sphi 0, %s370
    %s387 = sphi 0, %s371
  $region4: #{iqn_rnn_agent_forward.1} parent=0 // loop_header_branch
    %25 = sbr.rel (%p23) target = $region8
  $region5: #{iqn_rnn_agent_forward.1} parent=0 // loop_body
    %s27 = ssub.s32 %s22, 1
    %s28 = ssub.s32 %s22, 2
    %s29 = sadd.s32 %s22, 1
    %s30 = ssub.s32 %s22, %s29
    %p31 = scmp.eq.s32.totalorder %s30, 0
    %s33 = sadd.s32 %s32, 1
    %s34 = scalar_select %p31, %s32, %s33
    %p37 = pneg %p31
    %p38 = scmp.eq.s32.totalorder %s22, 1
    %p39 = por %p37, %p38
    %p40 = scmp.ne.s32.totalorder %s32, %s35
    %p41 = scmp.eq.s32.totalorder %s22, 0
    %p42 = por %p40, %p41
    %p43 = scmp.ne.s32.totalorder %s32, %s35
    %p44 = scmp.eq.s32.totalorder %s27, 1
    %p45 = por %p43, %p44
    %p46 = scmp.ne.s32.totalorder %s35, %s36
    %p47 = scmp.eq.s32.totalorder %s27, 0
    %p48 = por %p46, %p47
    %p49 = scmp.ne.s32.totalorder %s35, %s36
    %p50 = scmp.eq.s32.totalorder %s28, 1
    %p51 = por %p49, %p50
    %p53 = scmp.ne.s32.totalorder %s36, %s52
    %p54 = scmp.eq.s32.totalorder %s28, 0
    %p55 = por %p53, %p54
    %s56 = ssub.s32 %s22, %s29
    %p57 = scmp.eq.s32.totalorder %s56, 0
    %s59 = sadd.s32 %s58, 1
    %s60 = scalar_select %p57, %s58, %s59
    %p63 = pneg %p57
    %p64 = scmp.eq.s32.totalorder %s22, 1
    %p65 = por %p63, %p64
    %p66 = scmp.ne.s32.totalorder %s58, %s61
    %p67 = scmp.eq.s32.totalorder %s22, 0
    %p68 = por %p66, %p67
    %p69 = scmp.ne.s32.totalorder %s58, %s61
    %p70 = scmp.eq.s32.totalorder %s27, 1
    %p71 = por %p69, %p70
    %p72 = scmp.ne.s32.totalorder %s61, %s62
    %p73 = scmp.eq.s32.totalorder %s27, 0
    %p74 = por %p72, %p73
    %p75 = scmp.ne.s32.totalorder %s61, %s62
    %p76 = scmp.eq.s32.totalorder %s28, 1
    %p77 = por %p75, %p76
    %p79 = scmp.ne.s32.totalorder %s62, %s78
    %p80 = scmp.eq.s32.totalorder %s28, 0
    %p81 = por %p79, %p80
    %s82 = ssub.s32 %s22, %s29
    %p83 = scmp.eq.s32.totalorder %s82, 0
    %s85 = sadd.s32 %s84, 1
    %s86 = scalar_select %p83, %s84, %s85
    %p89 = pneg %p83
    %p90 = scmp.eq.s32.totalorder %s22, 1
    %p91 = por %p89, %p90
    %p92 = scmp.ne.s32.totalorder %s84, %s87
    %p93 = scmp.eq.s32.totalorder %s22, 0
    %p94 = por %p92, %p93
    %p95 = scmp.ne.s32.totalorder %s84, %s87
    %p96 = scmp.eq.s32.totalorder %s27, 1
    %p97 = por %p95, %p96
    %p98 = scmp.ne.s32.totalorder %s87, %s88
    %p99 = scmp.eq.s32.totalorder %s27, 0
    %p100 = por %p98, %p99
    %p101 = scmp.ne.s32.totalorder %s87, %s88
    %p102 = scmp.eq.s32.totalorder %s28, 1
    %p103 = por %p101, %p102
    %p105 = scmp.ne.s32.totalorder %s88, %s104
    %p106 = scmp.eq.s32.totalorder %s28, 0
    %p107 = por %p105, %p106
    %s109 = sadd.s32 %s108, 1
    %p112 = scmp.eq.s32.totalorder %s22, 1
    %p113 = scmp.ne.s32.totalorder %s108, %s110
    %p114 = scmp.eq.s32.totalorder %s22, 0
    %p115 = por %p113, %p114
    %p116 = scmp.ne.s32.totalorder %s108, %s110
    %p117 = scmp.eq.s32.totalorder %s27, 1
    %p118 = por %p116, %p117
    %p119 = scmp.ne.s32.totalorder %s110, %s111
    %p120 = scmp.eq.s32.totalorder %s27, 0
    %p121 = por %p119, %p120
    %p122 = scmp.ne.s32.totalorder %s110, %s111
    %p123 = scmp.eq.s32.totalorder %s28, 1
    %p124 = por %p122, %p123
    %p126 = scmp.ne.s32.totalorder %s111, %s125
    %p127 = scmp.eq.s32.totalorder %s28, 0
    %p128 = por %p126, %p127
    %s130 = sadd.s32 %s129, 1
    %p133 = scmp.eq.s32.totalorder %s22, 1
    %p134 = scmp.ne.s32.totalorder %s129, %s131
    %p135 = scmp.eq.s32.totalorder %s22, 0
    %p136 = por %p134, %p135
    %p137 = scmp.ne.s32.totalorder %s129, %s131
    %p138 = scmp.eq.s32.totalorder %s27, 1
    %p139 = por %p137, %p138
    %p140 = scmp.ne.s32.totalorder %s131, %s132
    %p141 = scmp.eq.s32.totalorder %s27, 0
    %p142 = por %p140, %p141
    %p143 = scmp.ne.s32.totalorder %s131, %s132
    %p144 = scmp.eq.s32.totalorder %s28, 1
    %p145 = por %p143, %p144
    %p147 = scmp.ne.s32.totalorder %s132, %s146
    %p148 = scmp.eq.s32.totalorder %s28, 0
    %p149 = por %p147, %p148
    %s151 = sadd.s32 %s150, 1
    %p154 = scmp.eq.s32.totalorder %s22, 1
    %p155 = scmp.ne.s32.totalorder %s150, %s152
    %p156 = scmp.eq.s32.totalorder %s22, 0
    %p157 = por %p155, %p156
    %p158 = scmp.ne.s32.totalorder %s150, %s152
    %p159 = scmp.eq.s32.totalorder %s27, 1
    %p160 = por %p158, %p159
    %p161 = scmp.ne.s32.totalorder %s152, %s153
    %p162 = scmp.eq.s32.totalorder %s27, 0
    %p163 = por %p161, %p162
    %p164 = scmp.ne.s32.totalorder %s152, %s153
    %p165 = scmp.eq.s32.totalorder %s28, 1
    %p166 = por %p164, %p165
    %p168 = scmp.ne.s32.totalorder %s153, %s167
    %p169 = scmp.eq.s32.totalorder %s28, 0
    %p170 = por %p168, %p169
    %s172 = sadd.s32 %s171, 1
    %p175 = scmp.eq.s32.totalorder %s22, 1
    %p176 = scmp.ne.s32.totalorder %s171, %s173
    %p177 = scmp.eq.s32.totalorder %s22, 0
    %p178 = por %p176, %p177
    %p179 = scmp.ne.s32.totalorder %s171, %s173
    %p180 = scmp.eq.s32.totalorder %s27, 1
    %p181 = por %p179, %p180
    %p182 = scmp.ne.s32.totalorder %s173, %s174
    %p183 = scmp.eq.s32.totalorder %s27, 0
    %p184 = por %p182, %p183
    %p185 = scmp.ne.s32.totalorder %s173, %s174
    %p186 = scmp.eq.s32.totalorder %s28, 1
    %p187 = por %p185, %p186
    %p189 = scmp.ne.s32.totalorder %s174, %s188
    %p190 = scmp.eq.s32.totalorder %s28, 0
    %p191 = por %p189, %p190
    %s193 = sadd.s32 %s192, 1
    %p196 = scmp.eq.s32.totalorder %s22, 1
    %p197 = scmp.ne.s32.totalorder %s192, %s194
    %p198 = scmp.eq.s32.totalorder %s22, 0
    %p199 = por %p197, %p198
    %p200 = scmp.ne.s32.totalorder %s192, %s194
    %p201 = scmp.eq.s32.totalorder %s27, 1
    %p202 = por %p200, %p201
    %p203 = scmp.ne.s32.totalorder %s194, %s195
    %p204 = scmp.eq.s32.totalorder %s27, 0
    %p205 = por %p203, %p204
    %p206 = scmp.ne.s32.totalorder %s194, %s195
    %p207 = scmp.eq.s32.totalorder %s28, 1
    %p208 = por %p206, %p207
    %p210 = scmp.ne.s32.totalorder %s195, %s209
    %p211 = scmp.eq.s32.totalorder %s28, 0
    %p212 = por %p210, %p211
    %s214 = sadd.s32 %s213, 1
    %p217 = scmp.eq.s32.totalorder %s22, 1
    %p218 = scmp.ne.s32.totalorder %s213, %s215
    %p219 = scmp.eq.s32.totalorder %s22, 0
    %p220 = por %p218, %p219
    %p221 = scmp.ne.s32.totalorder %s213, %s215
    %p222 = scmp.eq.s32.totalorder %s27, 1
    %p223 = por %p221, %p222
    %p224 = scmp.ne.s32.totalorder %s215, %s216
    %p225 = scmp.eq.s32.totalorder %s27, 0
    %p226 = por %p224, %p225
    %p227 = scmp.ne.s32.totalorder %s215, %s216
    %p228 = scmp.eq.s32.totalorder %s28, 1
    %p229 = por %p227, %p228
    %p231 = scmp.ne.s32.totalorder %s216, %s230
    %p232 = scmp.eq.s32.totalorder %s28, 0
    %p233 = por %p231, %p232
    %s235 = sadd.s32 %s234, 1
    %p238 = scmp.eq.s32.totalorder %s22, 1
    %p239 = scmp.ne.s32.totalorder %s234, %s236
    %p240 = scmp.eq.s32.totalorder %s22, 0
    %p241 = por %p239, %p240
    %p242 = scmp.ne.s32.totalorder %s234, %s236
    %p243 = scmp.eq.s32.totalorder %s27, 1
    %p244 = por %p242, %p243
    %p245 = scmp.ne.s32.totalorder %s236, %s237
    %p246 = scmp.eq.s32.totalorder %s27, 0
    %p247 = por %p245, %p246
    %p248 = scmp.ne.s32.totalorder %s236, %s237
    %p249 = scmp.eq.s32.totalorder %s28, 1
    %p250 = por %p248, %p249
    %p252 = scmp.ne.s32.totalorder %s237, %s251
    %p253 = scmp.eq.s32.totalorder %s28, 0
    %p254 = por %p252, %p253
    %s256 = sadd.s32 %s255, 1
    %p259 = scmp.eq.s32.totalorder %s22, 1
    %p260 = scmp.ne.s32.totalorder %s255, %s257
    %p261 = scmp.eq.s32.totalorder %s22, 0
    %p262 = por %p260, %p261
    %p263 = scmp.ne.s32.totalorder %s255, %s257
    %p264 = scmp.eq.s32.totalorder %s27, 1
    %p265 = por %p263, %p264
    %p266 = scmp.ne.s32.totalorder %s257, %s258
    %p267 = scmp.eq.s32.totalorder %s27, 0
    %p268 = por %p266, %p267
    %p269 = scmp.ne.s32.totalorder %s257, %s258
    %p270 = scmp.eq.s32.totalorder %s28, 1
    %p271 = por %p269, %p270
    %p273 = scmp.ne.s32.totalorder %s258, %s272
    %p274 = scmp.eq.s32.totalorder %s28, 0
    %p275 = por %p273, %p274
    %s277 = sadd.s32 %s276, 1
    %p280 = scmp.eq.s32.totalorder %s22, 1
    %p281 = scmp.ne.s32.totalorder %s276, %s278
    %p282 = scmp.eq.s32.totalorder %s22, 0
    %p283 = por %p281, %p282
    %p284 = scmp.ne.s32.totalorder %s276, %s278
    %p285 = scmp.eq.s32.totalorder %s27, 1
    %p286 = por %p284, %p285
    %p287 = scmp.ne.s32.totalorder %s278, %s279
    %p288 = scmp.eq.s32.totalorder %s27, 0
    %p289 = por %p287, %p288
    %p290 = scmp.ne.s32.totalorder %s278, %s279
    %p291 = scmp.eq.s32.totalorder %s28, 1
    %p292 = por %p290, %p291
    %p294 = scmp.ne.s32.totalorder %s279, %s293
    %p295 = scmp.eq.s32.totalorder %s28, 0
    %p296 = por %p294, %p295
    %s298 = sadd.s32 %s297, 1
    %p301 = scmp.eq.s32.totalorder %s22, 1
    %p302 = scmp.ne.s32.totalorder %s297, %s299
    %p303 = scmp.eq.s32.totalorder %s22, 0
    %p304 = por %p302, %p303
    %p305 = scmp.ne.s32.totalorder %s297, %s299
    %p306 = scmp.eq.s32.totalorder %s27, 1
    %p307 = por %p305, %p306
    %p308 = scmp.ne.s32.totalorder %s299, %s300
    %p309 = scmp.eq.s32.totalorder %s27, 0
    %p310 = por %p308, %p309
    %p311 = scmp.ne.s32.totalorder %s299, %s300
    %p312 = scmp.eq.s32.totalorder %s28, 1
    %p313 = por %p311, %p312
    %p315 = scmp.ne.s32.totalorder %s300, %s314
    %p316 = scmp.eq.s32.totalorder %s28, 0
    %p317 = por %p315, %p316
    %s319 = sadd.s32 %s318, 1
    %p322 = scmp.eq.s32.totalorder %s22, 1
    %p323 = scmp.ne.s32.totalorder %s318, %s320
    %p324 = scmp.eq.s32.totalorder %s22, 0
    %p325 = por %p323, %p324
    %p326 = scmp.ne.s32.totalorder %s318, %s320
    %p327 = scmp.eq.s32.totalorder %s27, 1
    %p328 = por %p326, %p327
    %p329 = scmp.ne.s32.totalorder %s320, %s321
    %p330 = scmp.eq.s32.totalorder %s27, 0
    %p331 = por %p329, %p330
    %p332 = scmp.ne.s32.totalorder %s320, %s321
    %p333 = scmp.eq.s32.totalorder %s28, 1
    %p334 = por %p332, %p333
    %p336 = scmp.ne.s32.totalorder %s321, %s335
    %p337 = scmp.eq.s32.totalorder %s28, 0
    %p338 = por %p336, %p337
    %s339 = ssub.s32 %s22, %s29
    %p340 = scmp.eq.s32.totalorder %s339, 0
    %s342 = sadd.s32 %s341, 1
    %s343 = scalar_select %p340, %s341, %s342
    %p346 = pneg %p340
    %p347 = scmp.eq.s32.totalorder %s22, 1
    %p348 = por %p346, %p347
    %p349 = scmp.ne.s32.totalorder %s341, %s344
    %p350 = scmp.eq.s32.totalorder %s22, 0
    %p351 = por %p349, %p350
    %p352 = scmp.ne.s32.totalorder %s341, %s344
    %p353 = scmp.eq.s32.totalorder %s27, 1
    %p354 = por %p352, %p353
    %p355 = scmp.ne.s32.totalorder %s344, %s345
    %p356 = scmp.eq.s32.totalorder %s27, 0
    %p357 = por %p355, %p356
    %p358 = scmp.ne.s32.totalorder %s344, %s345
    %p359 = scmp.eq.s32.totalorder %s28, 1
    %p360 = por %p358, %p359
    %p362 = scmp.ne.s32.totalorder %s345, %s361
    %p363 = scmp.eq.s32.totalorder %s28, 0
    %p364 = por %p362, %p363
    %s365 = ssub.s32 %s22, %s29
    %p366 = scmp.eq.s32.totalorder %s365, 0
    %s368 = sadd.s32 %s367, 1
    %s369 = scalar_select %p366, %s367, %s368
    %p372 = pneg %p366
    %p373 = scmp.eq.s32.totalorder %s22, 1
    %p374 = por %p372, %p373
    %p375 = scmp.ne.s32.totalorder %s367, %s370
    %p376 = scmp.eq.s32.totalorder %s22, 0
    %p377 = por %p375, %p376
    %p378 = scmp.ne.s32.totalorder %s367, %s370
    %p379 = scmp.eq.s32.totalorder %s27, 1
    %p380 = por %p378, %p379
    %p381 = scmp.ne.s32.totalorder %s370, %s371
    %p382 = scmp.eq.s32.totalorder %s27, 0
    %p383 = por %p381, %p382
    %p384 = scmp.ne.s32.totalorder %s370, %s371
    %p385 = scmp.eq.s32.totalorder %s28, 1
    %p386 = por %p384, %p385
    %p388 = scmp.ne.s32.totalorder %s371, %s387
    %p389 = scmp.eq.s32.totalorder %s28, 0
    %p390 = por %p388, %p389
    %p391 = scmp.le.s32.totalorder 1, %s22
    %p392 = scmp.lt.s32.totalorder %s22, 3
    %p393 = pnand %p391, %p392
    %p394 = pneg %p393
    // Predicated region
    $region9: #{iqn_rnn_agent_forward.1} parent=5 // pred_check
      _
    $region10: #{iqn_rnn_agent_forward.1} parent=5 // pred_check_branch
      %396 = sbr.rel (%p393) target = $region12
    $region11: #{iqn_rnn_agent_forward.1} parent=5 // pred_region
      %s397 = ssub.s32 %s22, 1
      // Predicated region
      $region13: #{iqn_rnn_agent_forward.1} parent=11 // pred_check
        %p398 = pneg %p121
      $region14: #{iqn_rnn_agent_forward.1} parent=11 // pred_check_branch
        %400 = sbr.rel (%p398) target = $region16
      $region15: #{iqn_rnn_agent_forward.1} parent=11 // pred_region
        _
      $region16: #{iqn_rnn_agent_forward.1} parent=11 // pred_fallthru
        _
      // Predicated region
      $region17: #{iqn_rnn_agent_forward.1} parent=11 // pred_check
        %p401 = pneg %p142
      $region18: #{iqn_rnn_agent_forward.1} parent=11 // pred_check_branch
        %403 = sbr.rel (%p401) target = $region20
      $region19: #{iqn_rnn_agent_forward.1} parent=11 // pred_region
        _
      $region20: #{iqn_rnn_agent_forward.1} parent=11 // pred_fallthru
        _
      // Predicated region
      $region21: #{iqn_rnn_agent_forward.1} parent=11 // pred_check
        %p404 = pneg %p163
      $region22: #{iqn_rnn_agent_forward.1} parent=11 // pred_check_branch
        %406 = sbr.rel (%p404) target = $region24
      $region23: #{iqn_rnn_agent_forward.1} parent=11 // pred_region
        _
      $region24: #{iqn_rnn_agent_forward.1} parent=11 // pred_fallthru
        _
      // Predicated region
      $region25: #{iqn_rnn_agent_forward.1} parent=11 // pred_check
        %p407 = pneg %p184
      $region26: #{iqn_rnn_agent_forward.1} parent=11 // pred_check_branch
        %409 = sbr.rel (%p407) target = $region28
      $region27: #{iqn_rnn_agent_forward.1} parent=11 // pred_region
        _
      $region28: #{iqn_rnn_agent_forward.1} parent=11 // pred_fallthru
        _
      // Predicated region
      $region29: #{iqn_rnn_agent_forward.1} parent=11 // pred_check
        %p410 = pneg %p205
      $region30: #{iqn_rnn_agent_forward.1} parent=11 // pred_check_branch
        %412 = sbr.rel (%p410) target = $region32
      $region31: #{iqn_rnn_agent_forward.1} parent=11 // pred_region
        _
      $region32: #{iqn_rnn_agent_forward.1} parent=11 // pred_fallthru
        _
      // Predicated region
      $region33: #{iqn_rnn_agent_forward.1} parent=11 // pred_check
        %p413 = pneg %p226
      $region34: #{iqn_rnn_agent_forward.1} parent=11 // pred_check_branch
        %415 = sbr.rel (%p413) target = $region36
      $region35: #{iqn_rnn_agent_forward.1} parent=11 // pred_region
        _
      $region36: #{iqn_rnn_agent_forward.1} parent=11 // pred_fallthru
        _
      // Predicated region
      $region37: #{iqn_rnn_agent_forward.1} parent=11 // pred_check
        %p416 = pneg %p247
      $region38: #{iqn_rnn_agent_forward.1} parent=11 // pred_check_branch
        %418 = sbr.rel (%p416) target = $region40
      $region39: #{iqn_rnn_agent_forward.1} parent=11 // pred_region
        _
      $region40: #{iqn_rnn_agent_forward.1} parent=11 // pred_fallthru
        _
      // Predicated region
      $region41: #{iqn_rnn_agent_forward.1} parent=11 // pred_check
        %p419 = pneg %p268
      $region42: #{iqn_rnn_agent_forward.1} parent=11 // pred_check_branch
        %421 = sbr.rel (%p419) target = $region44
      $region43: #{iqn_rnn_agent_forward.1} parent=11 // pred_region
        _
      $region44: #{iqn_rnn_agent_forward.1} parent=11 // pred_fallthru
        _
      // Predicated region
      $region45: #{iqn_rnn_agent_forward.1} parent=11 // pred_check
        %p422 = pneg %p289
      $region46: #{iqn_rnn_agent_forward.1} parent=11 // pred_check_branch
        %424 = sbr.rel (%p422) target = $region48
      $region47: #{iqn_rnn_agent_forward.1} parent=11 // pred_region
        _
      $region48: #{iqn_rnn_agent_forward.1} parent=11 // pred_fallthru
        _
      // Predicated region
      $region49: #{iqn_rnn_agent_forward.1} parent=11 // pred_check
        %p425 = pneg %p310
      $region50: #{iqn_rnn_agent_forward.1} parent=11 // pred_check_branch
        %427 = sbr.rel (%p425) target = $region52
      $region51: #{iqn_rnn_agent_forward.1} parent=11 // pred_region
        _
      $region52: #{iqn_rnn_agent_forward.1} parent=11 // pred_fallthru
        _
      // Predicated region
      $region53: #{iqn_rnn_agent_forward.1} parent=11 // pred_check
        %p428 = pneg %p331
      $region54: #{iqn_rnn_agent_forward.1} parent=11 // pred_check_branch
        %430 = sbr.rel (%p428) target = $region56
      $region55: #{iqn_rnn_agent_forward.1} parent=11 // pred_region
        _
      $region56: #{iqn_rnn_agent_forward.1} parent=11 // pred_fallthru
        _
    $region12: #{iqn_rnn_agent_forward.1} parent=5 // pred_fallthru
      _
    %p431 = scmp.lt.s32.totalorder %s22, 2
    // Predicated region
    $region57: #{iqn_rnn_agent_forward.1} parent=5 // pred_check
      %p432 = pneg %p431
    $region58: #{iqn_rnn_agent_forward.1} parent=5 // pred_check_branch
      %434 = sbr.rel (%p432) target = $region60
    $region59: #{iqn_rnn_agent_forward.1} parent=5 // pred_region
      // Predicated region
      $region61: #{iqn_rnn_agent_forward.1} parent=59 // pred_check
        %p435 = pneg %p42
      $region62: #{iqn_rnn_agent_forward.1} parent=59 // pred_check_branch
        %437 = sbr.rel (%p435) target = $region64
      $region63: #{iqn_rnn_agent_forward.1} parent=59 // pred_region
        %p438 = scmp.lt.s32.totalorder %s22, 1
        %s439 = scalar_select %p438, %s22, 1
        %s440 = smul.addr %s439, 8
        %s441 = scalar_lea.vmem %s0, %s440
      $region64: #{iqn_rnn_agent_forward.1} parent=59 // pred_fallthru
        _
      // Predicated region
      $region65: #{iqn_rnn_agent_forward.1} parent=59 // pred_check
        %p442 = pneg %p68
      $region66: #{iqn_rnn_agent_forward.1} parent=59 // pred_check_branch
        %444 = sbr.rel (%p442) target = $region68
      $region67: #{iqn_rnn_agent_forward.1} parent=59 // pred_region
        %p445 = scmp.lt.s32.totalorder %s22, 1
        %s446 = scalar_select %p445, %s22, 1
        %s447 = smul.addr %s446, 8
        %s448 = scalar_lea.vmem %s1, %s447
      $region68: #{iqn_rnn_agent_forward.1} parent=59 // pred_fallthru
        _
      // Predicated region
      $region69: #{iqn_rnn_agent_forward.1} parent=59 // pred_check
        %p449 = pneg %p94
      $region70: #{iqn_rnn_agent_forward.1} parent=59 // pred_check_branch
        %451 = sbr.rel (%p449) target = $region72
      $region71: #{iqn_rnn_agent_forward.1} parent=59 // pred_region
        %p452 = scmp.lt.s32.totalorder %s22, 1
        %s453 = scalar_select %p452, %s22, 1
        %s454 = smul.addr %s453, 8
        %s455 = scalar_lea.vmem %s2, %s454
      $region72: #{iqn_rnn_agent_forward.1} parent=59 // pred_fallthru
        _
    $region60: #{iqn_rnn_agent_forward.1} parent=5 // pred_fallthru
      _
    %p456 = scmp.le.s32.totalorder 1, %s22
    %p457 = scmp.lt.s32.totalorder %s22, 3
    %p458 = pnand %p456, %p457
    %p459 = pneg %p458
    // Predicated region
    $region73: #{iqn_rnn_agent_forward.1} parent=5 // pred_check
      _
    $region74: #{iqn_rnn_agent_forward.1} parent=5 // pred_check_branch
      %461 = sbr.rel (%p458) target = $region76
    $region75: #{iqn_rnn_agent_forward.1} parent=5 // pred_region
      %s462 = ssub.s32 %s22, 1
      %p463 = scmp.lt.s32.totalorder %s27, 1
      %s464 = scalar_select %p463, %s27, 1
      %s465 = smul.addr %s464, 8
      %s466 = scalar_lea.vmem %s0, %s465
      %p467 = pneg %p48
      %p468 = pneg %p45
      %p469 = scmp.lt.s32.totalorder %s27, 1
      %s470 = scalar_select %p469, %s27, 1
      %s471 = smul.addr %s470, 8
      %s472 = scalar_lea.vmem %s1, %s471
      %p473 = pneg %p74
      %p474 = pneg %p71
      %p475 = scmp.lt.s32.totalorder %s27, 1
      %s476 = scalar_select %p475, %s27, 1
      %s477 = smul.addr %s476, 8
      %s478 = scalar_lea.vmem %s2, %s477
      %p479 = pneg %p100
      %p480 = pneg %p97
      %p481 = pneg %p121
      %p482 = pneg %p118
      %p483 = pneg %p142
      %p484 = pneg %p139
      %p485 = pneg %p163
      %p486 = pneg %p160
      %p487 = pneg %p184
      %p488 = pneg %p181
      %p489 = pneg %p205
      %p490 = pneg %p202
      %p491 = pneg %p226
      %p492 = pneg %p223
      %p493 = pneg %p247
      %p494 = pneg %p244
      %p495 = pneg %p268
      %p496 = pneg %p265
      %p497 = pneg %p289
      %p498 = pneg %p286
      %p499 = pneg %p310
      %p500 = pneg %p307
      %p501 = pneg %p331
      %p502 = pneg %p328
      %p503 = pneg %p357
      %p504 = pneg %p354
      %p505 = scmp.lt.s32.totalorder %s27, 1
      %s506 = scalar_select %p505, %s27, 1
      %s507 = smul.addr %s506, 8
      %s508 = scalar_lea.vmem %s14, %s507
      %p509 = pneg %p383
      %p510 = pneg %p380
      %p511 = scmp.lt.s32.totalorder %s27, 1
      %s512 = scalar_select %p511, %s27, 1
      %s513 = smul.addr %s512, 8
      %s514 = scalar_lea.vmem %s15, %s513
      %p515 = scmp.lt.s32.totalorder %s27, 1
      %s516 = scalar_select %p515, %s27, 1
      %s517 = smul.addr %s516, 8
      %s518 = scalar_lea.vmem %s0, %s517
      %p519 = scmp.lt.s32.totalorder %s27, 1
      %s520 = scalar_select %p519, %s27, 1
      %s521 = smul.addr %s520, 8
      %s522 = scalar_lea.vmem %s1, %s521
      %p523 = scmp.lt.s32.totalorder %s27, 1
      %s524 = scalar_select %p523, %s27, 1
      %s525 = smul.addr %s524, 8
      %s526 = scalar_lea.vmem %s2, %s525
      %p527 = scmp.lt.s32.totalorder %s27, 1
      %s528 = scalar_select %p527, %s27, 1
      %s529 = smul.addr %s528, 8
      %s530 = scalar_lea.vmem %s14, %s529
      %p531 = scmp.lt.s32.totalorder %s27, 1
      %s532 = scalar_select %p531, %s27, 1
      %s533 = smul.addr %s532, 8
      %s534 = scalar_lea.vmem %s15, %s533
      %v536 = vld [vmem:[%s518] sm:$0xff]
      %v537 = vpack.c.bf16 %v536, %v536
      %v538 = vld [vmem:[%s4] sm:$0xf]
      %v539 = vld [vmem:[%s4 + $0x4] sm:$0xf]
      %v540 = vld [vmem:[%s4 + $0x8] sm:$0xf]
      %v541 = vld [vmem:[%s4 + $0xc] sm:$0xf]
      %v542 = vld [vmem:[%s5] sm:$0x1]
      %v544 = vlaneseq
      %v545 = vshrl.u32 %v544, 7
      %v546 = vsub.s32 0, %v545
      %v547 = vrot.slane %v542, %v546
      %v553 = vunpack.c.l.b16 %v538
      %v554 = vunpack.c.l.b16 %v539
      %v555 = vunpack.c.l.b16 %v540
      %v556 = vunpack.c.l.b16 %v541
      %v557 = vpack.c.b16 %v554, %v553
      %v558 = vpack.c.b16 %v556, %v555
      %vm561 = vcmask 261120
      %v563 = vsel %vm561, %v537, 0
      %565 = vmatprep.subr.bf16.mxu0 0
      %566 = vmatpush1.bf16.msra.mxu0 %v557
      %567 = vmatprep.subr.bf16.mxu0 0
      %568 = vmatpush1.bf16.msra.mxu0 %v558
      %569 = vmatprep.subr.bf16.mxu0 0
      %570 = vmatpush1.bf16.msra.mxu0 0
      %571 = vmatprep.subr.bf16.mxu0 0
      %572 = vmatpush1.bf16.msra.mxu0 0
      %573 = vmatprep.subr.bf16.mxu0 0
      %574 = vmatpush1.bf16.msra.mxu0 0
      %575 = vmatprep.subr.bf16.mxu0 0
      %576 = vmatpush1.bf16.msra.mxu0 0
      %577 = vmatprep.subr.bf16.mxu0 0
      %578 = vmatpush1.bf16.msra.mxu0 0
      %579 = vmatprep.subr.bf16.mxu0 0
      %580 = vmatpush1.bf16.msra.mxu0 0
      %581 = vmatprep.subr.bf16.mxu0 0
      %582 = vmatpush1.bf16.msra.mxu0 0
      %583 = vmatprep.subr.bf16.mxu0 0
      %584 = vmatpush1.bf16.msra.mxu0 0
      %585 = vmatprep.subr.bf16.mxu0 0
      %586 = vmatpush1.bf16.msra.mxu0 0
      %587 = vmatprep.subr.bf16.mxu0 0
      %588 = vmatpush1.bf16.msra.mxu0 0
      %589 = vmatprep.subr.bf16.mxu0 0
      %590 = vmatpush1.bf16.msra.mxu0 0
      %591 = vmatprep.subr.bf16.mxu0 0
      %592 = vmatpush1.bf16.msra.mxu0 0
      %593 = vmatprep.subr.bf16.mxu0 0
      %594 = vmatpush1.bf16.msra.mxu0 0
      %595 = vmatprep.subr.bf16.mxu0 0
      %596 = vmatpush1.bf16.msra.mxu0 0
      %597 = vmatprep.mubr.bf16.mxu0 0
      %598 = vmatmul.mubr.bf16.gmra.mrb[0].mxu0 %v563
      %v599 = vpop.f32.mrb[0].mxu0
      %v600 = vadd.f32 %v547, %v599
      %v601 = vpop.f32.mrb[0].mxu0
      %v602 = vpop.f32.mrb[0].mxu0
      %v603 = vpop.f32.mrb[0].mxu0
      %604 = vdwg.mxu0
      %v605 = vmax.f32 %v600, 0.0
      %v606 = vld [vmem:[%s522] sm:$0xff]
      %v607 = vpack.c.bf16 %v605, %v605
      %v608 = vld [vmem:[%s6] sm:$0xff]
      %v609 = vld [vmem:[%s6 + $0x8] sm:$0xff]
      %v610 = vld [vmem:[%s6 + $0x10] sm:$0xff]
      %v611 = vld [vmem:[%s6 + $0x18] sm:$0xff]
      %v612 = vld [vmem:[%s6 + $0x20] sm:$0xff]
      %v613 = vld [vmem:[%s6 + $0x28] sm:$0xff]
      %v614 = vld [vmem:[%s6 + $0x30] sm:$0xff]
      %v615 = vld [vmem:[%s6 + $0x38] sm:$0xff]
      %v616 = vld [vmem:[%s8] sm:$0x3]
      %v618 = vlaneseq
      %v619 = vshrl.u32 %v618, 7
      %v620 = vsub.s32 0, %v619
      %v621 = vrot.slane %v616, %v620
      %v622 = vlaneseq
      %v623 = vshrl.u32 %v622, 7
      %v624 = vsub.s32 1, %v623
      %v625 = vrot.slane %v616, %v624
      %v636 = vunpack.c.l.b16 %v608
      %v637 = vunpack.c.h.b16 %v608
      %v638 = vunpack.c.l.b16 %v609
      %v639 = vunpack.c.h.b16 %v609
      %v640 = vunpack.c.l.b16 %v610
      %v641 = vunpack.c.h.b16 %v610
      %v642 = vunpack.c.l.b16 %v611
      %v643 = vunpack.c.h.b16 %v611
      %v644 = vunpack.c.l.b16 %v612
      %v645 = vunpack.c.h.b16 %v612
      %v646 = vunpack.c.l.b16 %v613
      %v647 = vunpack.c.h.b16 %v613
      %v648 = vunpack.c.l.b16 %v614
      %v649 = vunpack.c.h.b16 %v614
      %v650 = vunpack.c.l.b16 %v615
      %v651 = vunpack.c.h.b16 %v615
      %v652 = vpack.c.b16 %v638, %v636
      %v653 = vpack.c.b16 %v639, %v637
      %v654 = vpack.c.b16 %v642, %v640
      %v655 = vpack.c.b16 %v643, %v641
      %v656 = vpack.c.b16 %v646, %v644
      %v657 = vpack.c.b16 %v647, %v645
      %v658 = vpack.c.b16 %v650, %v648
      %v659 = vpack.c.b16 %v651, %v649
      %vm668 = vcmask 523264
      %v670 = vsel %vm668, %v607, 0
      %672 = vmatprep.subr.bf16.mxu0 %v653
      %673 = vmatpush1.bf16.msra.mxu0 %v652
      %674 = vmatprep.subr.bf16.mxu0 %v655
      %675 = vmatpush1.bf16.msra.mxu0 %v654
      %676 = vmatprep.subr.bf16.mxu0 %v657
      %677 = vmatpush1.bf16.msra.mxu0 %v656
      %678 = vmatprep.subr.bf16.mxu0 %v659
      %679 = vmatpush1.bf16.msra.mxu0 %v658
      %680 = vmatprep.subr.bf16.mxu0 0
      %681 = vmatpush1.bf16.msra.mxu0 0
      %682 = vmatprep.subr.bf16.mxu0 0
      %683 = vmatpush1.bf16.msra.mxu0 0
      %684 = vmatprep.subr.bf16.mxu0 0
      %685 = vmatpush1.bf16.msra.mxu0 0
      %686 = vmatprep.subr.bf16.mxu0 0
      %687 = vmatpush1.bf16.msra.mxu0 0
      %688 = vmatprep.subr.bf16.mxu0 0
      %689 = vmatpush1.bf16.msra.mxu0 0
      %690 = vmatprep.subr.bf16.mxu0 0
      %691 = vmatpush1.bf16.msra.mxu0 0
      %692 = vmatprep.subr.bf16.mxu0 0
      %693 = vmatpush1.bf16.msra.mxu0 0
      %694 = vmatprep.subr.bf16.mxu0 0
      %695 = vmatpush1.bf16.msra.mxu0 0
      %696 = vmatprep.subr.bf16.mxu0 0
      %697 = vmatpush1.bf16.msra.mxu0 0
      %698 = vmatprep.subr.bf16.mxu0 0
      %699 = vmatpush1.bf16.msra.mxu0 0
      %700 = vmatprep.subr.bf16.mxu0 0
      %701 = vmatpush1.bf16.msra.mxu0 0
      %702 = vmatprep.subr.bf16.mxu0 0
      %703 = vmatpush1.bf16.msra.mxu0 0
      %704 = vmatprep.mubr.bf16.mxu0 0
      %705 = vmatmul.mubr.bf16.gmra.mrb[0].mxu0 %v670
      %v706 = vpop.f32.mrb[0].mxu0
      %v707 = vadd.f32 %v621, %v706
      %v708 = vpop.f32.mrb[0].mxu0
      %v709 = vadd.f32 %v625, %v708
      %v710 = vpop.f32.mrb[0].mxu0
      %v711 = vpop.f32.mrb[0].mxu0
      %712 = vdwg.mxu0
      %v713 = vpack.c.bf16 %v606, %v606
      %v714 = vld [vmem:[%s7] sm:$0xff]
      %v715 = vld [vmem:[%s7 + $0x8] sm:$0xff]
      %v716 = vld [vmem:[%s7 + $0x10] sm:$0xff]
      %v717 = vld [vmem:[%s7 + $0x18] sm:$0xff]
      %v718 = vld [vmem:[%s7 + $0x20] sm:$0xff]
      %v719 = vld [vmem:[%s7 + $0x28] sm:$0xff]
      %v720 = vld [vmem:[%s7 + $0x30] sm:$0xff]
      %v721 = vld [vmem:[%s7 + $0x38] sm:$0xff]
      %v722 = vld [vmem:[%s9] sm:$0x3]
      %v724 = vlaneseq
      %v725 = vshrl.u32 %v724, 7
      %v726 = vsub.s32 0, %v725
      %v727 = vrot.slane %v722, %v726
      %v728 = vlaneseq
      %v729 = vshrl.u32 %v728, 7
      %v730 = vsub.s32 1, %v729
      %v731 = vrot.slane %v722, %v730
      %v742 = vunpack.c.l.b16 %v714
      %v743 = vunpack.c.h.b16 %v714
      %v744 = vunpack.c.l.b16 %v715
      %v745 = vunpack.c.h.b16 %v715
      %v746 = vunpack.c.l.b16 %v716
      %v747 = vunpack.c.h.b16 %v716
      %v748 = vunpack.c.l.b16 %v717
      %v749 = vunpack.c.h.b16 %v717
      %v750 = vunpack.c.l.b16 %v718
      %v751 = vunpack.c.h.b16 %v718
      %v752 = vunpack.c.l.b16 %v719
      %v753 = vunpack.c.h.b16 %v719
      %v754 = vunpack.c.l.b16 %v720
      %v755 = vunpack.c.h.b16 %v720
      %v756 = vunpack.c.l.b16 %v721
      %v757 = vunpack.c.h.b16 %v721
      %v758 = vpack.c.b16 %v744, %v742
      %v759 = vpack.c.b16 %v745, %v743
      %v760 = vpack.c.b16 %v748, %v746
      %v761 = vpack.c.b16 %v749, %v747
      %v762 = vpack.c.b16 %v752, %v750
      %v763 = vpack.c.b16 %v753, %v751
      %v764 = vpack.c.b16 %v756, %v754
      %v765 = vpack.c.b16 %v757, %v755
      %v775 = vsel %vm668, %v713, 0
      %777 = vmatprep.subr.bf16.mxu0 %v759
      %778 = vmatpush1.bf16.msra.mxu0 %v758
      %779 = vmatprep.subr.bf16.mxu0 %v761
      %780 = vmatpush1.bf16.msra.mxu0 %v760
      %781 = vmatprep.subr.bf16.mxu0 %v763
      %782 = vmatpush1.bf16.msra.mxu0 %v762
      %783 = vmatprep.subr.bf16.mxu0 %v765
      %784 = vmatpush1.bf16.msra.mxu0 %v764
      %785 = vmatprep.subr.bf16.mxu0 0
      %786 = vmatpush1.bf16.msra.mxu0 0
      %787 = vmatprep.subr.bf16.mxu0 0
      %788 = vmatpush1.bf16.msra.mxu0 0
      %789 = vmatprep.subr.bf16.mxu0 0
      %790 = vmatpush1.bf16.msra.mxu0 0
      %791 = vmatprep.subr.bf16.mxu0 0
      %792 = vmatpush1.bf16.msra.mxu0 0
      %793 = vmatprep.subr.bf16.mxu0 0
      %794 = vmatpush1.bf16.msra.mxu0 0
      %795 = vmatprep.subr.bf16.mxu0 0
      %796 = vmatpush1.bf16.msra.mxu0 0
      %797 = vmatprep.subr.bf16.mxu0 0
      %798 = vmatpush1.bf16.msra.mxu0 0
      %799 = vmatprep.subr.bf16.mxu0 0
      %800 = vmatpush1.bf16.msra.mxu0 0
      %801 = vmatprep.subr.bf16.mxu0 0
      %802 = vmatpush1.bf16.msra.mxu0 0
      %803 = vmatprep.subr.bf16.mxu0 0
      %804 = vmatpush1.bf16.msra.mxu0 0
      %805 = vmatprep.subr.bf16.mxu0 0
      %806 = vmatpush1.bf16.msra.mxu0 0
      %807 = vmatprep.subr.bf16.mxu0 0
      %808 = vmatpush1.bf16.msra.mxu0 0
      %809 = vmatprep.mubr.bf16.mxu0 0
      %810 = vmatmul.mubr.bf16.gmra.mrb[0].mxu0 %v775
      %v811 = vpop.f32.mrb[0].mxu0
      %v812 = vadd.f32 %v727, %v811
      %v813 = vpop.f32.mrb[0].mxu0
      %v814 = vadd.f32 %v731, %v813
      %v815 = vpop.f32.mrb[0].mxu0
      %v816 = vpop.f32.mrb[0].mxu0
      %817 = vdwg.mxu0
      %v818 = vadd.f32 %v707, %v812
      %v819 = vxor.u32 %v818, 2147483648
      %v820 = vmul.f32 %v819, 1.442695
      %v821 = vpow.pop %v820
      %v822 = vadd.f32 %v821, 1.0
      %v823 = vrcp.pop %v822
      %v824 = vmul.f32 1.0, %v823
      %v825 = vmul.f32 %v824, %v814
      %v826 = vadd.f32 %v709, %v825
      %v827 = vtanh.pop %v826
      %v828 = vsub.f32 1.0, %v824
      %830 = vrot.lane.b32.xlu0 %v827, 64
      %v831 = vpop.permute.xlu0 %830
      %v833 = vmul.f32 %v828, %v831
      %835 = vrot.lane.b32.xlu0 %v606, 64
      %v836 = vpop.permute.xlu0 %835
      %v838 = vmul.f32 %v824, %v836
      %v839 = vadd.f32 %v833, %v838
      %841 = vrot.lane.b32.xlu0 %v839, 64
      %v842 = vpop.permute.xlu0 %841
      %844 = vst.msk [vmem:[%s530] sm:$0xff] %vm668, %v842
      %v845 = vld [vmem:[%s526] sm:$0xff]
      %v846 = vld [vmem:[%s3] sm:$0x1]
      %848 = vset.pattern.permute.xlu0 0
      %849 = vperm.xlu0 %848, %v845
      %v850 = vpop.permute.xlu0 %849
      %v853 = vlaneseq
      %v854 = vshrl.u32 %v853, 7
      %v855 = vsub.s32 0, %v854
      %v856 = vrot.slane %v846, %v855
      %v858 = vmul.f32 %v850, %v856
      %v859 = vand.u32 2147483647, %v858
      %vm860 = vcmp.le.f32.partialorder %v859, 0.7853982
      %vm861 = vcmp.lt.s32.totalorder %v858, 0
      %v862 = vand.u32 %v858, 2139095040
      %v863 = vshrl.u32 %v862, 23
      %v864 = vsub.s32 %v863, 127
      %v865 = vand.u32 2147483647, %v858
      %v866 = vand.u32 %v865, 8388607
      %v867 = vor.u32 %v866, 8388608
      %v868 = vsub.s32 0, %v867
      %v869 = vadd.s32 %v864, 1
      %vm870 = vcmp.gt.s32.totalorder %v869, 0
      %v871 = vsel %vm870, %v869, 0
      %v872 = vshrl.u32 %v871, 5
      %v873 = vand.u32 %v871, 31
      %v874 = vsub.s32 32, %v873
      %v875 = vshrl.u32 683565275, %v874
      %v876 = vshll.u32 683565275, %v873
      %v877 = vshrl.u32 2475754826, %v874
      %v878 = vor.u32 %v876, %v877
      %v879 = vshll.u32 2475754826, %v873
      %v880 = vshrl.u32 2131351028, %v874
      %v881 = vor.u32 %v879, %v880
      %v882 = vshll.u32 2131351028, %v873
      %v883 = vshrl.u32 2102212464, %v874
      %v884 = vor.u32 %v882, %v883
      %v885 = vshll.u32 2102212464, %v873
      %v886 = vshrl.u32 920167782, %v874
      %v887 = vor.u32 %v885, %v886
      %v888 = vshll.u32 920167782, %v873
      %v889 = vshrl.u32 1326507024, %v874
      %v890 = vor.u32 %v888, %v889
      %vm891 = vcmp.lt.s32.totalorder %v872, 1
      %vm892 = vcmp.lt.s32.totalorder %v872, 2
      %vm893 = vcmp.lt.s32.totalorder %v872, 3
      %vm894 = vcmp.lt.s32.totalorder %v872, 4
      %v895 = vsel %vm891, %v875, %v878
      %v896 = vsel %vm894, %v884, 2102212464
      %v897 = vsel %vm893, %v881, %v896
      %v898 = vsel %vm892, %v895, %v897
      %v899 = vsel %vm891, %v878, %v881
      %v900 = vsel %vm894, %v887, 920167782
      %v901 = vsel %vm893, %v884, %v900
      %v902 = vsel %vm892, %v899, %v901
      %v903 = vsel %vm891, %v881, %v884
      %v904 = vsel %vm894, %v890, 1326507024
      %v905 = vsel %vm893, %v887, %v904
      %v906 = vsel %vm892, %v903, %v905
      %v907 = vshll.u32 %v867, 8
      %v908 = vmul.u32.u64.compose %v907, %v906
      %v909 = vextract.low.u32 %v908
      %v910 = vextract.high.u32 %v908
      %v911 = vmul.u32.u64.compose %v907, %v902
      %v912 = vextract.low.u32 %v911
      %v913 = vextract.high.u32 %v911
      %v914 = vmul.u32 %v907, %v898
      %v915 = vadd.s32 %v910, %v912
      %vm916 = vc.u32 %v910, %v912
      %v917 = vadd.s32 %v913, 1
      %v918 = vsel %vm916, %v917, %v913
      %v919 = vadd.s32 %v914, %v918
      %v920 = vadd.s32 %v919, 536870912
      %v921 = vshrl.u32 %v920, 30
      %v922 = vshll.u32 %v921, 30
      %v923 = vsub.s32 %v919, %v922
      %vm924 = vcmp.lt.s32.totalorder %v923, 0
      %v925 = vsub.s32 0, %v923
      %v926 = vsel %vm924, %v925, %v923
      %v927 = vclz %v926
      %v928 = vsub.s32 %v927, 2
      %vm929 = vcmp.gt.s32.totalorder 0, %v928
      %v930 = vsel %vm929, 0, %v928
      %v931 = vsub.s32 32, %v930
      %v932 = vshll.u32 %v923, %v930
      %v933 = vshrl.u32 %v915, %v931
      %v934 = vor.u32 %v932, %v933
      %v935 = vsub.s32 4294967266, %v930
      %v936 = vadd.s32 %v935, 127
      %v937 = vshll.u32 %v936, 23
      %v938 = vor.u32 4788187, %v937
      %v939 = vand.u32 2147483647, %v938
      %v941 = vcvt.s32.f32 %v934
      %v942 = vmul.f32 %v941, %v939
      %v943 = vxor.u32 %v942, 2147483648
      %v944 = vsel %vm861, %v943, %v942
      %v945 = vsub.s32 4, %v921
      %v946 = vsel %vm861, %v945, %v921
      %v947 = vsel %vm860, %v858, %v944
      %v948 = vsel %vm860, 0, %v946
      %v949 = vcosq.f32.pop %v947
      %v950 = vsinq.f32.pop %v947
      %vm951 = vweird.f32 %v858
      %v952 = vand.u32 %v948, 3
      %vm953 = vcmp.lt.s32.totalorder %v952, 2
      %vm954 = vcmp.eq.s32.totalorder %v952, 0
      %v955 = vxor.u32 %v950, 2147483648
      %v956 = vsel %vm954, %v949, %v955
      %vm957 = vcmp.eq.s32.totalorder %v952, 2
      %v958 = vxor.u32 %v949, 2147483648
      %v959 = vsel %vm957, %v958, %v950
      %v960 = vsel %vm953, %v956, %v959
      %v961 = vsel %vm951, nan, %v960
      %v962 = vpack.c.bf16 %v961, %v961
      %v963 = vld [vmem:[%s10] sm:$0xf]
      %v964 = vld [vmem:[%s10 + $0x4] sm:$0xf]
      %v965 = vld [vmem:[%s10 + $0x8] sm:$0xf]
      %v966 = vld [vmem:[%s10 + $0xc] sm:$0xf]
      %v967 = vld [vmem:[%s10 + $0x10] sm:$0xf]
      %v968 = vld [vmem:[%s10 + $0x14] sm:$0xf]
      %v969 = vld [vmem:[%s10 + $0x18] sm:$0xf]
      %v970 = vld [vmem:[%s10 + $0x1c] sm:$0xf]
      %v971 = vld [vmem:[%s11] sm:$0x1]
      %v973 = vlaneseq
      %v974 = vshrl.u32 %v973, 7
      %v975 = vsub.s32 0, %v974
      %v976 = vrot.slane %v971, %v975
      %v986 = vunpack.c.l.b16 %v963
      %v987 = vunpack.c.l.b16 %v964
      %v988 = vunpack.c.l.b16 %v965
      %v989 = vunpack.c.l.b16 %v966
      %v990 = vunpack.c.l.b16 %v967
      %v991 = vunpack.c.l.b16 %v968
      %v992 = vunpack.c.l.b16 %v969
      %v993 = vunpack.c.l.b16 %v970
      %v994 = vpack.c.b16 %v987, %v986
      %v995 = vpack.c.b16 %v989, %v988
      %v996 = vpack.c.b16 %v991, %v990
      %v997 = vpack.c.b16 %v993, %v992
      %v1003 = vsel %vm668, %v962, 0
      %1005 = vmatprep.subr.bf16.mxu0 0
      %1006 = vmatpush1.bf16.msra.mxu0 %v994
      %1007 = vmatprep.subr.bf16.mxu0 0
      %1008 = vmatpush1.bf16.msra.mxu0 %v995
      %1009 = vmatprep.subr.bf16.mxu0 0
      %1010 = vmatpush1.bf16.msra.mxu0 %v996
      %1011 = vmatprep.subr.bf16.mxu0 0
      %1012 = vmatpush1.bf16.msra.mxu0 %v997
      %1013 = vmatprep.subr.bf16.mxu0 0
      %1014 = vmatpush1.bf16.msra.mxu0 0
      %1015 = vmatprep.subr.bf16.mxu0 0
      %1016 = vmatpush1.bf16.msra.mxu0 0
      %1017 = vmatprep.subr.bf16.mxu0 0
      %1018 = vmatpush1.bf16.msra.mxu0 0
      %1019 = vmatprep.subr.bf16.mxu0 0
      %1020 = vmatpush1.bf16.msra.mxu0 0
      %1021 = vmatprep.subr.bf16.mxu0 0
      %1022 = vmatpush1.bf16.msra.mxu0 0
      %1023 = vmatprep.subr.bf16.mxu0 0
      %1024 = vmatpush1.bf16.msra.mxu0 0
      %1025 = vmatprep.subr.bf16.mxu0 0
      %1026 = vmatpush1.bf16.msra.mxu0 0
      %1027 = vmatprep.subr.bf16.mxu0 0
      %1028 = vmatpush1.bf16.msra.mxu0 0
      %1029 = vmatprep.subr.bf16.mxu0 0
      %1030 = vmatpush1.bf16.msra.mxu0 0
      %1031 = vmatprep.subr.bf16.mxu0 0
      %1032 = vmatpush1.bf16.msra.mxu0 0
      %1033 = vmatprep.subr.bf16.mxu0 0
      %1034 = vmatpush1.bf16.msra.mxu0 0
      %1035 = vmatprep.subr.bf16.mxu0 0
      %1036 = vmatpush1.bf16.msra.mxu0 0
      %1037 = vmatprep.mubr.bf16.mxu0 0
      %1038 = vmatmul.mubr.bf16.gmra.mrb[0].mxu0 %v1003
      %v1039 = vpop.f32.mrb[0].mxu0
      %v1040 = vadd.f32 %v976, %v1039
      %v1041 = vpop.f32.mrb[0].mxu0
      %v1042 = vpop.f32.mrb[0].mxu0
      %v1043 = vpop.f32.mrb[0].mxu0
      %1044 = vdwg.mxu0
      %v1045 = vmax.f32 %v1040, 0.0
      %1047 = vrot.lane.b32.xlu0 %v1045, 64
      %v1048 = vpop.permute.xlu0 %1047
      %v1050 = vmul.f32 %v839, %v1048
      %v1051 = vpack.c.bf16 %v1050, %v1050
      %v1053 = vunpack.c.l.b16 %v1051
      %v1054 = vpack.c.b16 %v1053, %v1053
      %1055 = vrot.lane.b32.xlu0 %v1054, 64
      %v1056 = vpop.permute.xlu0 %1055
      %vm1058 = vcmask 519168
      %1059 = vst.msk [vmem:[#allocation2] sm:$0xf] %vm1058, %v1056
      %v1060 = vld [vmem:[%s526] sm:$0xff]
      %v1061 = vld [vmem:[%s3] sm:$0x1]
      %1063 = vset.pattern.permute.xlu0 1
      %1064 = vperm.xlu0 %1063, %v1060
      %v1065 = vpop.permute.xlu0 %1064
      %v1068 = vlaneseq
      %v1069 = vshrl.u32 %v1068, 7
      %v1070 = vsub.s32 0, %v1069
      %v1071 = vrot.slane %v1061, %v1070
      %v1073 = vmul.f32 %v1065, %v1071
      %v1074 = vand.u32 2147483647, %v1073
      %vm1075 = vcmp.le.f32.partialorder %v1074, 0.7853982
      %vm1076 = vcmp.lt.s32.totalorder %v1073, 0
      %v1077 = vand.u32 %v1073, 2139095040
      %v1078 = vshrl.u32 %v1077, 23
      %v1079 = vsub.s32 %v1078, 127
      %v1080 = vand.u32 2147483647, %v1073
      %v1081 = vand.u32 %v1080, 8388607
      %v1082 = vor.u32 %v1081, 8388608
      %v1083 = vsub.s32 0, %v1082
      %v1084 = vadd.s32 %v1079, 1
      %vm1085 = vcmp.gt.s32.totalorder %v1084, 0
      %v1086 = vsel %vm1085, %v1084, 0
      %v1087 = vshrl.u32 %v1086, 5
      %v1088 = vand.u32 %v1086, 31
      %v1089 = vsub.s32 32, %v1088
      %v1090 = vshrl.u32 683565275, %v1089
      %v1091 = vshll.u32 683565275, %v1088
      %v1092 = vshrl.u32 2475754826, %v1089
      %v1093 = vor.u32 %v1091, %v1092
      %v1094 = vshll.u32 2475754826, %v1088
      %v1095 = vshrl.u32 2131351028, %v1089
      %v1096 = vor.u32 %v1094, %v1095
      %v1097 = vshll.u32 2131351028, %v1088
      %v1098 = vshrl.u32 2102212464, %v1089
      %v1099 = vor.u32 %v1097, %v1098
      %v1100 = vshll.u32 2102212464, %v1088
      %v1101 = vshrl.u32 920167782, %v1089
      %v1102 = vor.u32 %v1100, %v1101
      %v1103 = vshll.u32 920167782, %v1088
      %v1104 = vshrl.u32 1326507024, %v1089
      %v1105 = vor.u32 %v1103, %v1104
      %vm1106 = vcmp.lt.s32.totalorder %v1087, 1
      %vm1107 = vcmp.lt.s32.totalorder %v1087, 2
      %vm1108 = vcmp.lt.s32.totalorder %v1087, 3
      %vm1109 = vcmp.lt.s32.totalorder %v1087, 4
      %v1110 = vsel %vm1106, %v1090, %v1093
      %v1111 = vsel %vm1109, %v1099, 2102212464
      %v1112 = vsel %vm1108, %v1096, %v1111
      %v1113 = vsel %vm1107, %v1110, %v1112
      %v1114 = vsel %vm1106, %v1093, %v1096
      %v1115 = vsel %vm1109, %v1102, 920167782
      %v1116 = vsel %vm1108, %v1099, %v1115
      %v1117 = vsel %vm1107, %v1114, %v1116
      %v1118 = vsel %vm1106, %v1096, %v1099
      %v1119 = vsel %vm1109, %v1105, 1326507024
      %v1120 = vsel %vm1108, %v1102, %v1119
      %v1121 = vsel %vm1107, %v1118, %v1120
      %v1122 = vshll.u32 %v1082, 8
      %v1123 = vmul.u32.u64.compose %v1122, %v1121
      %v1124 = vextract.low.u32 %v1123
      %v1125 = vextract.high.u32 %v1123
      %v1126 = vmul.u32.u64.compose %v1122, %v1117
      %v1127 = vextract.low.u32 %v1126
      %v1128 = vextract.high.u32 %v1126
      %v1129 = vmul.u32 %v1122, %v1113
      %v1130 = vadd.s32 %v1125, %v1127
      %vm1131 = vc.u32 %v1125, %v1127
      %v1132 = vadd.s32 %v1128, 1
      %v1133 = vsel %vm1131, %v1132, %v1128
      %v1134 = vadd.s32 %v1129, %v1133
      %v1135 = vadd.s32 %v1134, 536870912
      %v1136 = vshrl.u32 %v1135, 30
      %v1137 = vshll.u32 %v1136, 30
      %v1138 = vsub.s32 %v1134, %v1137
      %vm1139 = vcmp.lt.s32.totalorder %v1138, 0
      %v1140 = vsub.s32 0, %v1138
      %v1141 = vsel %vm1139, %v1140, %v1138
      %v1142 = vclz %v1141
      %v1143 = vsub.s32 %v1142, 2
      %vm1144 = vcmp.gt.s32.totalorder 0, %v1143
      %v1145 = vsel %vm1144, 0, %v1143
      %v1146 = vsub.s32 32, %v1145
      %v1147 = vshll.u32 %v1138, %v1145
      %v1148 = vshrl.u32 %v1130, %v1146
      %v1149 = vor.u32 %v1147, %v1148
      %v1150 = vsub.s32 4294967266, %v1145
      %v1151 = vadd.s32 %v1150, 127
      %v1152 = vshll.u32 %v1151, 23
      %v1153 = vor.u32 4788187, %v1152
      %v1154 = vand.u32 2147483647, %v1153
      %v1156 = vcvt.s32.f32 %v1149
      %v1157 = vmul.f32 %v1156, %v1154
      %v1158 = vxor.u32 %v1157, 2147483648
      %v1159 = vsel %vm1076, %v1158, %v1157
      %v1160 = vsub.s32 4, %v1136
      %v1161 = vsel %vm1076, %v1160, %v1136
      %v1162 = vsel %vm1075, %v1073, %v1159
      %v1163 = vsel %vm1075, 0, %v1161
      %v1164 = vcosq.f32.pop %v1162
      %v1165 = vsinq.f32.pop %v1162
      %vm1166 = vweird.f32 %v1073
      %v1167 = vand.u32 %v1163, 3
      %vm1168 = vcmp.lt.s32.totalorder %v1167, 2
      %vm1169 = vcmp.eq.s32.totalorder %v1167, 0
      %v1170 = vxor.u32 %v1165, 2147483648
      %v1171 = vsel %vm1169, %v1164, %v1170
      %vm1172 = vcmp.eq.s32.totalorder %v1167, 2
      %v1173 = vxor.u32 %v1164, 2147483648
      %v1174 = vsel %vm1172, %v1173, %v1165
      %v1175 = vsel %vm1168, %v1171, %v1174
      %v1176 = vsel %vm1166, nan, %v1175
      %v1177 = vpack.c.bf16 %v1176, %v1176
      %v1178 = vld [vmem:[%s10] sm:$0xf]
      %v1179 = vld [vmem:[%s10 + $0x4] sm:$0xf]
      %v1180 = vld [vmem:[%s10 + $0x8] sm:$0xf]
      %v1181 = vld [vmem:[%s10 + $0xc] sm:$0xf]
      %v1182 = vld [vmem:[%s10 + $0x10] sm:$0xf]
      %v1183 = vld [vmem:[%s10 + $0x14] sm:$0xf]
      %v1184 = vld [vmem:[%s10 + $0x18] sm:$0xf]
      %v1185 = vld [vmem:[%s10 + $0x1c] sm:$0xf]
      %v1186 = vld [vmem:[%s11] sm:$0x1]
      %v1188 = vlaneseq
      %v1189 = vshrl.u32 %v1188, 7
      %v1190 = vsub.s32 0, %v1189
      %v1191 = vrot.slane %v1186, %v1190
      %v1201 = vunpack.c.l.b16 %v1178
      %v1202 = vunpack.c.l.b16 %v1179
      %v1203 = vunpack.c.l.b16 %v1180
      %v1204 = vunpack.c.l.b16 %v1181
      %v1205 = vunpack.c.l.b16 %v1182
      %v1206 = vunpack.c.l.b16 %v1183
      %v1207 = vunpack.c.l.b16 %v1184
      %v1208 = vunpack.c.l.b16 %v1185
      %v1209 = vpack.c.b16 %v1202, %v1201
      %v1210 = vpack.c.b16 %v1204, %v1203
      %v1211 = vpack.c.b16 %v1206, %v1205
      %v1212 = vpack.c.b16 %v1208, %v1207
      %v1218 = vsel %vm668, %v1177, 0
      %1220 = vmatprep.subr.bf16.mxu0 0
      %1221 = vmatpush1.bf16.msra.mxu0 %v1209
      %1222 = vmatprep.subr.bf16.mxu0 0
      %1223 = vmatpush1.bf16.msra.mxu0 %v1210
      %1224 = vmatprep.subr.bf16.mxu0 0
      %1225 = vmatpush1.bf16.msra.mxu0 %v1211
      %1226 = vmatprep.subr.bf16.mxu0 0
      %1227 = vmatpush1.bf16.msra.mxu0 %v1212
      %1228 = vmatprep.subr.bf16.mxu0 0
      %1229 = vmatpush1.bf16.msra.mxu0 0
      %1230 = vmatprep.subr.bf16.mxu0 0
      %1231 = vmatpush1.bf16.msra.mxu0 0
      %1232 = vmatprep.subr.bf16.mxu0 0
      %1233 = vmatpush1.bf16.msra.mxu0 0
      %1234 = vmatprep.subr.bf16.mxu0 0
      %1235 = vmatpush1.bf16.msra.mxu0 0
      %1236 = vmatprep.subr.bf16.mxu0 0
      %1237 = vmatpush1.bf16.msra.mxu0 0
      %1238 = vmatprep.subr.bf16.mxu0 0
      %1239 = vmatpush1.bf16.msra.mxu0 0
      %1240 = vmatprep.subr.bf16.mxu0 0
      %1241 = vmatpush1.bf16.msra.mxu0 0
      %1242 = vmatprep.subr.bf16.mxu0 0
      %1243 = vmatpush1.bf16.msra.mxu0 0
      %1244 = vmatprep.subr.bf16.mxu0 0
      %1245 = vmatpush1.bf16.msra.mxu0 0
      %1246 = vmatprep.subr.bf16.mxu0 0
      %1247 = vmatpush1.bf16.msra.mxu0 0
      %1248 = vmatprep.subr.bf16.mxu0 0
      %1249 = vmatpush1.bf16.msra.mxu0 0
      %1250 = vmatprep.subr.bf16.mxu0 0
      %1251 = vmatpush1.bf16.msra.mxu0 0
      %1252 = vmatprep.mubr.bf16.mxu0 0
      %1253 = vmatmul.mubr.bf16.gmra.mrb[0].mxu0 %v1218
      %v1254 = vpop.f32.mrb[0].mxu0
      %v1255 = vadd.f32 %v1191, %v1254
      %v1256 = vpop.f32.mrb[0].mxu0
      %v1257 = vpop.f32.mrb[0].mxu0
      %v1258 = vpop.f32.mrb[0].mxu0
      %1259 = vdwg.mxu0
      %v1260 = vmax.f32 %v1255, 0.0
      %1262 = vrot.lane.b32.xlu0 %v1260, 64
      %v1263 = vpop.permute.xlu0 %1262
      %v1265 = vmul.f32 %v839, %v1263
      %v1266 = vpack.c.bf16 %v1265, %v1265
      %vm1267 = vcmask 1043968
      %1268 = vst.msk [vmem:[#allocation2] sm:$0xf] %vm1267, %v1266
      %v1269 = vld [vmem:[%s526] sm:$0xff]
      %v1270 = vld [vmem:[%s3] sm:$0x1]
      %1272 = vset.pattern.permute.xlu0 2
      %1273 = vperm.xlu0 %1272, %v1269
      %v1274 = vpop.permute.xlu0 %1273
      %v1277 = vlaneseq
      %v1278 = vshrl.u32 %v1277, 7
      %v1279 = vsub.s32 0, %v1278
      %v1280 = vrot.slane %v1270, %v1279
      %v1282 = vmul.f32 %v1274, %v1280
      %v1283 = vand.u32 2147483647, %v1282
      %vm1284 = vcmp.le.f32.partialorder %v1283, 0.7853982
      %vm1285 = vcmp.lt.s32.totalorder %v1282, 0
      %v1286 = vand.u32 %v1282, 2139095040
      %v1287 = vshrl.u32 %v1286, 23
      %v1288 = vsub.s32 %v1287, 127
      %v1289 = vand.u32 2147483647, %v1282
      %v1290 = vand.u32 %v1289, 8388607
      %v1291 = vor.u32 %v1290, 8388608
      %v1292 = vsub.s32 0, %v1291
      %v1293 = vadd.s32 %v1288, 1
      %vm1294 = vcmp.gt.s32.totalorder %v1293, 0
      %v1295 = vsel %vm1294, %v1293, 0
      %v1296 = vshrl.u32 %v1295, 5
      %v1297 = vand.u32 %v1295, 31
      %v1298 = vsub.s32 32, %v1297
      %v1299 = vshrl.u32 683565275, %v1298
      %v1300 = vshll.u32 683565275, %v1297
      %v1301 = vshrl.u32 2475754826, %v1298
      %v1302 = vor.u32 %v1300, %v1301
      %v1303 = vshll.u32 2475754826, %v1297
      %v1304 = vshrl.u32 2131351028, %v1298
      %v1305 = vor.u32 %v1303, %v1304
      %v1306 = vshll.u32 2131351028, %v1297
      %v1307 = vshrl.u32 2102212464, %v1298
      %v1308 = vor.u32 %v1306, %v1307
      %v1309 = vshll.u32 2102212464, %v1297
      %v1310 = vshrl.u32 920167782, %v1298
      %v1311 = vor.u32 %v1309, %v1310
      %v1312 = vshll.u32 920167782, %v1297
      %v1313 = vshrl.u32 1326507024, %v1298
      %v1314 = vor.u32 %v1312, %v1313
      %vm1315 = vcmp.lt.s32.totalorder %v1296, 1
      %vm1316 = vcmp.lt.s32.totalorder %v1296, 2
      %vm1317 = vcmp.lt.s32.totalorder %v1296, 3
      %vm1318 = vcmp.lt.s32.totalorder %v1296, 4
      %v1319 = vsel %vm1315, %v1299, %v1302
      %v1320 = vsel %vm1318, %v1308, 2102212464
      %v1321 = vsel %vm1317, %v1305, %v1320
      %v1322 = vsel %vm1316, %v1319, %v1321
      %v1323 = vsel %vm1315, %v1302, %v1305
      %v1324 = vsel %vm1318, %v1311, 920167782
      %v1325 = vsel %vm1317, %v1308, %v1324
      %v1326 = vsel %vm1316, %v1323, %v1325
      %v1327 = vsel %vm1315, %v1305, %v1308
      %v1328 = vsel %vm1318, %v1314, 1326507024
      %v1329 = vsel %vm1317, %v1311, %v1328
      %v1330 = vsel %vm1316, %v1327, %v1329
      %v1331 = vshll.u32 %v1291, 8
      %v1332 = vmul.u32.u64.compose %v1331, %v1330
      %v1333 = vextract.low.u32 %v1332
      %v1334 = vextract.high.u32 %v1332
      %v1335 = vmul.u32.u64.compose %v1331, %v1326
      %v1336 = vextract.low.u32 %v1335
      %v1337 = vextract.high.u32 %v1335
      %v1338 = vmul.u32 %v1331, %v1322
      %v1339 = vadd.s32 %v1334, %v1336
      %vm1340 = vc.u32 %v1334, %v1336
      %v1341 = vadd.s32 %v1337, 1
      %v1342 = vsel %vm1340, %v1341, %v1337
      %v1343 = vadd.s32 %v1338, %v1342
      %v1344 = vadd.s32 %v1343, 536870912
      %v1345 = vshrl.u32 %v1344, 30
      %v1346 = vshll.u32 %v1345, 30
      %v1347 = vsub.s32 %v1343, %v1346
      %vm1348 = vcmp.lt.s32.totalorder %v1347, 0
      %v1349 = vsub.s32 0, %v1347
      %v1350 = vsel %vm1348, %v1349, %v1347
      %v1351 = vclz %v1350
      %v1352 = vsub.s32 %v1351, 2
      %vm1353 = vcmp.gt.s32.totalorder 0, %v1352
      %v1354 = vsel %vm1353, 0, %v1352
      %v1355 = vsub.s32 32, %v1354
      %v1356 = vshll.u32 %v1347, %v1354
      %v1357 = vshrl.u32 %v1339, %v1355
      %v1358 = vor.u32 %v1356, %v1357
      %v1359 = vsub.s32 4294967266, %v1354
      %v1360 = vadd.s32 %v1359, 127
      %v1361 = vshll.u32 %v1360, 23
      %v1362 = vor.u32 4788187, %v1361
      %v1363 = vand.u32 2147483647, %v1362
      %v1365 = vcvt.s32.f32 %v1358
      %v1366 = vmul.f32 %v1365, %v1363
      %v1367 = vxor.u32 %v1366, 2147483648
      %v1368 = vsel %vm1285, %v1367, %v1366
      %v1369 = vsub.s32 4, %v1345
      %v1370 = vsel %vm1285, %v1369, %v1345
      %v1371 = vsel %vm1284, %v1282, %v1368
      %v1372 = vsel %vm1284, 0, %v1370
      %v1373 = vcosq.f32.pop %v1371
      %v1374 = vsinq.f32.pop %v1371
      %vm1375 = vweird.f32 %v1282
      %v1376 = vand.u32 %v1372, 3
      %vm1377 = vcmp.lt.s32.totalorder %v1376, 2
      %vm1378 = vcmp.eq.s32.totalorder %v1376, 0
      %v1379 = vxor.u32 %v1374, 2147483648
      %v1380 = vsel %vm1378, %v1373, %v1379
      %vm1381 = vcmp.eq.s32.totalorder %v1376, 2
      %v1382 = vxor.u32 %v1373, 2147483648
      %v1383 = vsel %vm1381, %v1382, %v1374
      %v1384 = vsel %vm1377, %v1380, %v1383
      %v1385 = vsel %vm1375, nan, %v1384
      %v1386 = vpack.c.bf16 %v1385, %v1385
      %v1387 = vld [vmem:[%s10] sm:$0xf]
      %v1388 = vld [vmem:[%s10 + $0x4] sm:$0xf]
      %v1389 = vld [vmem:[%s10 + $0x8] sm:$0xf]
      %v1390 = vld [vmem:[%s10 + $0xc] sm:$0xf]
      %v1391 = vld [vmem:[%s10 + $0x10] sm:$0xf]
      %v1392 = vld [vmem:[%s10 + $0x14] sm:$0xf]
      %v1393 = vld [vmem:[%s10 + $0x18] sm:$0xf]
      %v1394 = vld [vmem:[%s10 + $0x1c] sm:$0xf]
      %v1395 = vld [vmem:[%s11] sm:$0x1]
      %v1397 = vlaneseq
      %v1398 = vshrl.u32 %v1397, 7
      %v1399 = vsub.s32 0, %v1398
      %v1400 = vrot.slane %v1395, %v1399
      %v1410 = vunpack.c.l.b16 %v1387
      %v1411 = vunpack.c.l.b16 %v1388
      %v1412 = vunpack.c.l.b16 %v1389
      %v1413 = vunpack.c.l.b16 %v1390
      %v1414 = vunpack.c.l.b16 %v1391
      %v1415 = vunpack.c.l.b16 %v1392
      %v1416 = vunpack.c.l.b16 %v1393
      %v1417 = vunpack.c.l.b16 %v1394
      %v1418 = vpack.c.b16 %v1411, %v1410
      %v1419 = vpack.c.b16 %v1413, %v1412
      %v1420 = vpack.c.b16 %v1415, %v1414
      %v1421 = vpack.c.b16 %v1417, %v1416
      %v1427 = vsel %vm668, %v1386, 0
      %1429 = vmatprep.subr.bf16.mxu0 0
      %1430 = vmatpush1.bf16.msra.mxu0 %v1418
      %1431 = vmatprep.subr.bf16.mxu0 0
      %1432 = vmatpush1.bf16.msra.mxu0 %v1419
      %1433 = vmatprep.subr.bf16.mxu0 0
      %1434 = vmatpush1.bf16.msra.mxu0 %v1420
      %1435 = vmatprep.subr.bf16.mxu0 0
      %1436 = vmatpush1.bf16.msra.mxu0 %v1421
      %1437 = vmatprep.subr.bf16.mxu0 0
      %1438 = vmatpush1.bf16.msra.mxu0 0
      %1439 = vmatprep.subr.bf16.mxu0 0
      %1440 = vmatpush1.bf16.msra.mxu0 0
      %1441 = vmatprep.subr.bf16.mxu0 0
      %1442 = vmatpush1.bf16.msra.mxu0 0
      %1443 = vmatprep.subr.bf16.mxu0 0
      %1444 = vmatpush1.bf16.msra.mxu0 0
      %1445 = vmatprep.subr.bf16.mxu0 0
      %1446 = vmatpush1.bf16.msra.mxu0 0
      %1447 = vmatprep.subr.bf16.mxu0 0
      %1448 = vmatpush1.bf16.msra.mxu0 0
      %1449 = vmatprep.subr.bf16.mxu0 0
      %1450 = vmatpush1.bf16.msra.mxu0 0
      %1451 = vmatprep.subr.bf16.mxu0 0
      %1452 = vmatpush1.bf16.msra.mxu0 0
      %1453 = vmatprep.subr.bf16.mxu0 0
      %1454 = vmatpush1.bf16.msra.mxu0 0
      %1455 = vmatprep.subr.bf16.mxu0 0
      %1456 = vmatpush1.bf16.msra.mxu0 0
      %1457 = vmatprep.subr.bf16.mxu0 0
      %1458 = vmatpush1.bf16.msra.mxu0 0
      %1459 = vmatprep.subr.bf16.mxu0 0
      %1460 = vmatpush1.bf16.msra.mxu0 0
      %1461 = vmatprep.mubr.bf16.mxu0 0
      %1462 = vmatmul.mubr.bf16.gmra.mrb[0].mxu0 %v1427
      %v1463 = vpop.f32.mrb[0].mxu0
      %v1464 = vadd.f32 %v1400, %v1463
      %v1465 = vpop.f32.mrb[0].mxu0
      %v1466 = vpop.f32.mrb[0].mxu0
      %v1467 = vpop.f32.mrb[0].mxu0
      %1468 = vdwg.mxu0
      %v1469 = vmax.f32 %v1464, 0.0
      %1471 = vrot.lane.b32.xlu0 %v1469, 64
      %v1472 = vpop.permute.xlu0 %1471
      %v1474 = vmul.f32 %v839, %v1472
      %v1475 = vpack.c.bf16 %v1474, %v1474
      %v1477 = vunpack.c.l.b16 %v1475
      %v1478 = vpack.c.b16 %v1477, %v1477
      %1479 = vrot.lane.b32.xlu0 %v1478, 64
      %v1480 = vpop.permute.xlu0 %1479
      %1482 = vst.msk [vmem:[#allocation2 + $0x4] sm:$0xf] %vm1058, %v1480
      %v1483 = vld [vmem:[%s526] sm:$0xff]
      %v1484 = vld [vmem:[%s3] sm:$0x1]
      %1486 = vset.pattern.permute.xlu0 3
      %1487 = vperm.xlu0 %1486, %v1483
      %v1488 = vpop.permute.xlu0 %1487
      %v1491 = vlaneseq
      %v1492 = vshrl.u32 %v1491, 7
      %v1493 = vsub.s32 0, %v1492
      %v1494 = vrot.slane %v1484, %v1493
      %v1496 = vmul.f32 %v1488, %v1494
      %v1497 = vand.u32 2147483647, %v1496
      %vm1498 = vcmp.le.f32.partialorder %v1497, 0.7853982
      %vm1499 = vcmp.lt.s32.totalorder %v1496, 0
      %v1500 = vand.u32 %v1496, 2139095040
      %v1501 = vshrl.u32 %v1500, 23
      %v1502 = vsub.s32 %v1501, 127
      %v1503 = vand.u32 2147483647, %v1496
      %v1504 = vand.u32 %v1503, 8388607
      %v1505 = vor.u32 %v1504, 8388608
      %v1506 = vsub.s32 0, %v1505
      %v1507 = vadd.s32 %v1502, 1
      %vm1508 = vcmp.gt.s32.totalorder %v1507, 0
      %v1509 = vsel %vm1508, %v1507, 0
      %v1510 = vshrl.u32 %v1509, 5
      %v1511 = vand.u32 %v1509, 31
      %v1512 = vsub.s32 32, %v1511
      %v1513 = vshrl.u32 683565275, %v1512
      %v1514 = vshll.u32 683565275, %v1511
      %v1515 = vshrl.u32 2475754826, %v1512
      %v1516 = vor.u32 %v1514, %v1515
      %v1517 = vshll.u32 2475754826, %v1511
      %v1518 = vshrl.u32 2131351028, %v1512
      %v1519 = vor.u32 %v1517, %v1518
      %v1520 = vshll.u32 2131351028, %v1511
      %v1521 = vshrl.u32 2102212464, %v1512
      %v1522 = vor.u32 %v1520, %v1521
      %v1523 = vshll.u32 2102212464, %v1511
      %v1524 = vshrl.u32 920167782, %v1512
      %v1525 = vor.u32 %v1523, %v1524
      %v1526 = vshll.u32 920167782, %v1511
      %v1527 = vshrl.u32 1326507024, %v1512
      %v1528 = vor.u32 %v1526, %v1527
      %vm1529 = vcmp.lt.s32.totalorder %v1510, 1
      %vm1530 = vcmp.lt.s32.totalorder %v1510, 2
      %vm1531 = vcmp.lt.s32.totalorder %v1510, 3
      %vm1532 = vcmp.lt.s32.totalorder %v1510, 4
      %v1533 = vsel %vm1529, %v1513, %v1516
      %v1534 = vsel %vm1532, %v1522, 2102212464
      %v1535 = vsel %vm1531, %v1519, %v1534
      %v1536 = vsel %vm1530, %v1533, %v1535
      %v1537 = vsel %vm1529, %v1516, %v1519
      %v1538 = vsel %vm1532, %v1525, 920167782
      %v1539 = vsel %vm1531, %v1522, %v1538
      %v1540 = vsel %vm1530, %v1537, %v1539
      %v1541 = vsel %vm1529, %v1519, %v1522
      %v1542 = vsel %vm1532, %v1528, 1326507024
      %v1543 = vsel %vm1531, %v1525, %v1542
      %v1544 = vsel %vm1530, %v1541, %v1543
      %v1545 = vshll.u32 %v1505, 8
      %v1546 = vmul.u32.u64.compose %v1545, %v1544
      %v1547 = vextract.low.u32 %v1546
      %v1548 = vextract.high.u32 %v1546
      %v1549 = vmul.u32.u64.compose %v1545, %v1540
      %v1550 = vextract.low.u32 %v1549
      %v1551 = vextract.high.u32 %v1549
      %v1552 = vmul.u32 %v1545, %v1536
      %v1553 = vadd.s32 %v1548, %v1550
      %vm1554 = vc.u32 %v1548, %v1550
      %v1555 = vadd.s32 %v1551, 1
      %v1556 = vsel %vm1554, %v1555, %v1551
      %v1557 = vadd.s32 %v1552, %v1556
      %v1558 = vadd.s32 %v1557, 536870912
      %v1559 = vshrl.u32 %v1558, 30
      %v1560 = vshll.u32 %v1559, 30
      %v1561 = vsub.s32 %v1557, %v1560
      %vm1562 = vcmp.lt.s32.totalorder %v1561, 0
      %v1563 = vsub.s32 0, %v1561
      %v1564 = vsel %vm1562, %v1563, %v1561
      %v1565 = vclz %v1564
      %v1566 = vsub.s32 %v1565, 2
      %vm1567 = vcmp.gt.s32.totalorder 0, %v1566
      %v1568 = vsel %vm1567, 0, %v1566
      %v1569 = vsub.s32 32, %v1568
      %v1570 = vshll.u32 %v1561, %v1568
      %v1571 = vshrl.u32 %v1553, %v1569
      %v1572 = vor.u32 %v1570, %v1571
      %v1573 = vsub.s32 4294967266, %v1568
      %v1574 = vadd.s32 %v1573, 127
      %v1575 = vshll.u32 %v1574, 23
      %v1576 = vor.u32 4788187, %v1575
      %v1577 = vand.u32 2147483647, %v1576
      %v1579 = vcvt.s32.f32 %v1572
      %v1580 = vmul.f32 %v1579, %v1577
      %v1581 = vxor.u32 %v1580, 2147483648
      %v1582 = vsel %vm1499, %v1581, %v1580
      %v1583 = vsub.s32 4, %v1559
      %v1584 = vsel %vm1499, %v1583, %v1559
      %v1585 = vsel %vm1498, %v1496, %v1582
      %v1586 = vsel %vm1498, 0, %v1584
      %v1587 = vcosq.f32.pop %v1585
      %v1588 = vsinq.f32.pop %v1585
      %vm1589 = vweird.f32 %v1496
      %v1590 = vand.u32 %v1586, 3
      %vm1591 = vcmp.lt.s32.totalorder %v1590, 2
      %vm1592 = vcmp.eq.s32.totalorder %v1590, 0
      %v1593 = vxor.u32 %v1588, 2147483648
      %v1594 = vsel %vm1592, %v1587, %v1593
      %vm1595 = vcmp.eq.s32.totalorder %v1590, 2
      %v1596 = vxor.u32 %v1587, 2147483648
      %v1597 = vsel %vm1595, %v1596, %v1588
      %v1598 = vsel %vm1591, %v1594, %v1597
      %v1599 = vsel %vm1589, nan, %v1598
      %v1600 = vpack.c.bf16 %v1599, %v1599
      %v1601 = vld [vmem:[%s10] sm:$0xf]
      %v1602 = vld [vmem:[%s10 + $0x4] sm:$0xf]
      %v1603 = vld [vmem:[%s10 + $0x8] sm:$0xf]
      %v1604 = vld [vmem:[%s10 + $0xc] sm:$0xf]
      %v1605 = vld [vmem:[%s10 + $0x10] sm:$0xf]
      %v1606 = vld [vmem:[%s10 + $0x14] sm:$0xf]
      %v1607 = vld [vmem:[%s10 + $0x18] sm:$0xf]
      %v1608 = vld [vmem:[%s10 + $0x1c] sm:$0xf]
      %v1609 = vld [vmem:[%s11] sm:$0x1]
      %v1611 = vlaneseq
      %v1612 = vshrl.u32 %v1611, 7
      %v1613 = vsub.s32 0, %v1612
      %v1614 = vrot.slane %v1609, %v1613
      %v1624 = vunpack.c.l.b16 %v1601
      %v1625 = vunpack.c.l.b16 %v1602
      %v1626 = vunpack.c.l.b16 %v1603
      %v1627 = vunpack.c.l.b16 %v1604
      %v1628 = vunpack.c.l.b16 %v1605
      %v1629 = vunpack.c.l.b16 %v1606
      %v1630 = vunpack.c.l.b16 %v1607
      %v1631 = vunpack.c.l.b16 %v1608
      %v1632 = vpack.c.b16 %v1625, %v1624
      %v1633 = vpack.c.b16 %v1627, %v1626
      %v1634 = vpack.c.b16 %v1629, %v1628
      %v1635 = vpack.c.b16 %v1631, %v1630
      %v1641 = vsel %vm668, %v1600, 0
      %1643 = vmatprep.subr.bf16.mxu0 0
      %1644 = vmatpush1.bf16.msra.mxu0 %v1632
      %1645 = vmatprep.subr.bf16.mxu0 0
      %1646 = vmatpush1.bf16.msra.mxu0 %v1633
      %1647 = vmatprep.subr.bf16.mxu0 0
      %1648 = vmatpush1.bf16.msra.mxu0 %v1634
      %1649 = vmatprep.subr.bf16.mxu0 0
      %1650 = vmatpush1.bf16.msra.mxu0 %v1635
      %1651 = vmatprep.subr.bf16.mxu0 0
      %1652 = vmatpush1.bf16.msra.mxu0 0
      %1653 = vmatprep.subr.bf16.mxu0 0
      %1654 = vmatpush1.bf16.msra.mxu0 0
      %1655 = vmatprep.subr.bf16.mxu0 0
      %1656 = vmatpush1.bf16.msra.mxu0 0
      %1657 = vmatprep.subr.bf16.mxu0 0
      %1658 = vmatpush1.bf16.msra.mxu0 0
      %1659 = vmatprep.subr.bf16.mxu0 0
      %1660 = vmatpush1.bf16.msra.mxu0 0
      %1661 = vmatprep.subr.bf16.mxu0 0
      %1662 = vmatpush1.bf16.msra.mxu0 0
      %1663 = vmatprep.subr.bf16.mxu0 0
      %1664 = vmatpush1.bf16.msra.mxu0 0
      %1665 = vmatprep.subr.bf16.mxu0 0
      %1666 = vmatpush1.bf16.msra.mxu0 0
      %1667 = vmatprep.subr.bf16.mxu0 0
      %1668 = vmatpush1.bf16.msra.mxu0 0
      %1669 = vmatprep.subr.bf16.mxu0 0
      %1670 = vmatpush1.bf16.msra.mxu0 0
      %1671 = vmatprep.subr.bf16.mxu0 0
      %1672 = vmatpush1.bf16.msra.mxu0 0
      %1673 = vmatprep.subr.bf16.mxu0 0
      %1674 = vmatpush1.bf16.msra.mxu0 0
      %1675 = vmatprep.mubr.bf16.mxu0 0
      %1676 = vmatmul.mubr.bf16.gmra.mrb[0].mxu0 %v1641
      %v1677 = vpop.f32.mrb[0].mxu0
      %v1678 = vadd.f32 %v1614, %v1677
      %v1679 = vpop.f32.mrb[0].mxu0
      %v1680 = vpop.f32.mrb[0].mxu0
      %v1681 = vpop.f32.mrb[0].mxu0
      %1682 = vdwg.mxu0
      %v1683 = vmax.f32 %v1678, 0.0
      %1685 = vrot.lane.b32.xlu0 %v1683, 64
      %v1686 = vpop.permute.xlu0 %1685
      %v1688 = vmul.f32 %v839, %v1686
      %v1689 = vpack.c.bf16 %v1688, %v1688
      %1690 = vst.msk [vmem:[#allocation2 + $0x4] sm:$0xf] %vm1267, %v1689
      %v1691 = vld [vmem:[%s526] sm:$0xff]
      %v1692 = vld [vmem:[%s3] sm:$0x1]
      %1694 = vset.pattern.permute.xlu0 4
      %1695 = vperm.xlu0 %1694, %v1691
      %v1696 = vpop.permute.xlu0 %1695
      %v1699 = vlaneseq
      %v1700 = vshrl.u32 %v1699, 7
      %v1701 = vsub.s32 0, %v1700
      %v1702 = vrot.slane %v1692, %v1701
      %v1704 = vmul.f32 %v1696, %v1702
      %v1705 = vand.u32 2147483647, %v1704
      %vm1706 = vcmp.le.f32.partialorder %v1705, 0.7853982
      %vm1707 = vcmp.lt.s32.totalorder %v1704, 0
      %v1708 = vand.u32 %v1704, 2139095040
      %v1709 = vshrl.u32 %v1708, 23
      %v1710 = vsub.s32 %v1709, 127
      %v1711 = vand.u32 2147483647, %v1704
      %v1712 = vand.u32 %v1711, 8388607
      %v1713 = vor.u32 %v1712, 8388608
      %v1714 = vsub.s32 0, %v1713
      %v1715 = vadd.s32 %v1710, 1
      %vm1716 = vcmp.gt.s32.totalorder %v1715, 0
      %v1717 = vsel %vm1716, %v1715, 0
      %v1718 = vshrl.u32 %v1717, 5
      %v1719 = vand.u32 %v1717, 31
      %v1720 = vsub.s32 32, %v1719
      %v1721 = vshrl.u32 683565275, %v1720
      %v1722 = vshll.u32 683565275, %v1719
      %v1723 = vshrl.u32 2475754826, %v1720
      %v1724 = vor.u32 %v1722, %v1723
      %v1725 = vshll.u32 2475754826, %v1719
      %v1726 = vshrl.u32 2131351028, %v1720
      %v1727 = vor.u32 %v1725, %v1726
      %v1728 = vshll.u32 2131351028, %v1719
      %v1729 = vshrl.u32 2102212464, %v1720
      %v1730 = vor.u32 %v1728, %v1729
      %v1731 = vshll.u32 2102212464, %v1719
      %v1732 = vshrl.u32 920167782, %v1720
      %v1733 = vor.u32 %v1731, %v1732
      %v1734 = vshll.u32 920167782, %v1719
      %v1735 = vshrl.u32 1326507024, %v1720
      %v1736 = vor.u32 %v1734, %v1735
      %vm1737 = vcmp.lt.s32.totalorder %v1718, 1
      %vm1738 = vcmp.lt.s32.totalorder %v1718, 2
      %vm1739 = vcmp.lt.s32.totalorder %v1718, 3
      %vm1740 = vcmp.lt.s32.totalorder %v1718, 4
      %v1741 = vsel %vm1737, %v1721, %v1724
      %v1742 = vsel %vm1740, %v1730, 2102212464
      %v1743 = vsel %vm1739, %v1727, %v1742
      %v1744 = vsel %vm1738, %v1741, %v1743
      %v1745 = vsel %vm1737, %v1724, %v1727
      %v1746 = vsel %vm1740, %v1733, 920167782
      %v1747 = vsel %vm1739, %v1730, %v1746
      %v1748 = vsel %vm1738, %v1745, %v1747
      %v1749 = vsel %vm1737, %v1727, %v1730
      %v1750 = vsel %vm1740, %v1736, 1326507024
      %v1751 = vsel %vm1739, %v1733, %v1750
      %v1752 = vsel %vm1738, %v1749, %v1751
      %v1753 = vshll.u32 %v1713, 8
      %v1754 = vmul.u32.u64.compose %v1753, %v1752
      %v1755 = vextract.low.u32 %v1754
      %v1756 = vextract.high.u32 %v1754
      %v1757 = vmul.u32.u64.compose %v1753, %v1748
      %v1758 = vextract.low.u32 %v1757
      %v1759 = vextract.high.u32 %v1757
      %v1760 = vmul.u32 %v1753, %v1744
      %v1761 = vadd.s32 %v1756, %v1758
      %vm1762 = vc.u32 %v1756, %v1758
      %v1763 = vadd.s32 %v1759, 1
      %v1764 = vsel %vm1762, %v1763, %v1759
      %v1765 = vadd.s32 %v1760, %v1764
      %v1766 = vadd.s32 %v1765, 536870912
      %v1767 = vshrl.u32 %v1766, 30
      %v1768 = vshll.u32 %v1767, 30
      %v1769 = vsub.s32 %v1765, %v1768
      %vm1770 = vcmp.lt.s32.totalorder %v1769, 0
      %v1771 = vsub.s32 0, %v1769
      %v1772 = vsel %vm1770, %v1771, %v1769
      %v1773 = vclz %v1772
      %v1774 = vsub.s32 %v1773, 2
      %vm1775 = vcmp.gt.s32.totalorder 0, %v1774
      %v1776 = vsel %vm1775, 0, %v1774
      %v1777 = vsub.s32 32, %v1776
      %v1778 = vshll.u32 %v1769, %v1776
      %v1779 = vshrl.u32 %v1761, %v1777
      %v1780 = vor.u32 %v1778, %v1779
      %v1781 = vsub.s32 4294967266, %v1776
      %v1782 = vadd.s32 %v1781, 127
      %v1783 = vshll.u32 %v1782, 23
      %v1784 = vor.u32 4788187, %v1783
      %v1785 = vand.u32 2147483647, %v1784
      %v1787 = vcvt.s32.f32 %v1780
      %v1788 = vmul.f32 %v1787, %v1785
      %v1789 = vxor.u32 %v1788, 2147483648
      %v1790 = vsel %vm1707, %v1789, %v1788
      %v1791 = vsub.s32 4, %v1767
      %v1792 = vsel %vm1707, %v1791, %v1767
      %v1793 = vsel %vm1706, %v1704, %v1790
      %v1794 = vsel %vm1706, 0, %v1792
      %v1795 = vcosq.f32.pop %v1793
      %v1796 = vsinq.f32.pop %v1793
      %vm1797 = vweird.f32 %v1704
      %v1798 = vand.u32 %v1794, 3
      %vm1799 = vcmp.lt.s32.totalorder %v1798, 2
      %vm1800 = vcmp.eq.s32.totalorder %v1798, 0
      %v1801 = vxor.u32 %v1796, 2147483648
      %v1802 = vsel %vm1800, %v1795, %v1801
      %vm1803 = vcmp.eq.s32.totalorder %v1798, 2
      %v1804 = vxor.u32 %v1795, 2147483648
      %v1805 = vsel %vm1803, %v1804, %v1796
      %v1806 = vsel %vm1799, %v1802, %v1805
      %v1807 = vsel %vm1797, nan, %v1806
      %v1808 = vpack.c.bf16 %v1807, %v1807
      %v1809 = vld [vmem:[%s10] sm:$0xf]
      %v1810 = vld [vmem:[%s10 + $0x4] sm:$0xf]
      %v1811 = vld [vmem:[%s10 + $0x8] sm:$0xf]
      %v1812 = vld [vmem:[%s10 + $0xc] sm:$0xf]
      %v1813 = vld [vmem:[%s10 + $0x10] sm:$0xf]
      %v1814 = vld [vmem:[%s10 + $0x14] sm:$0xf]
      %v1815 = vld [vmem:[%s10 + $0x18] sm:$0xf]
      %v1816 = vld [vmem:[%s10 + $0x1c] sm:$0xf]
      %v1817 = vld [vmem:[%s11] sm:$0x1]
      %v1819 = vlaneseq
      %v1820 = vshrl.u32 %v1819, 7
      %v1821 = vsub.s32 0, %v1820
      %v1822 = vrot.slane %v1817, %v1821
      %v1832 = vunpack.c.l.b16 %v1809
      %v1833 = vunpack.c.l.b16 %v1810
      %v1834 = vunpack.c.l.b16 %v1811
      %v1835 = vunpack.c.l.b16 %v1812
      %v1836 = vunpack.c.l.b16 %v1813
      %v1837 = vunpack.c.l.b16 %v1814
      %v1838 = vunpack.c.l.b16 %v1815
      %v1839 = vunpack.c.l.b16 %v1816
      %v1840 = vpack.c.b16 %v1833, %v1832
      %v1841 = vpack.c.b16 %v1835, %v1834
      %v1842 = vpack.c.b16 %v1837, %v1836
      %v1843 = vpack.c.b16 %v1839, %v1838
      %v1849 = vsel %vm668, %v1808, 0
      %1851 = vmatprep.subr.bf16.mxu0 0
      %1852 = vmatpush1.bf16.msra.mxu0 %v1840
      %1853 = vmatprep.subr.bf16.mxu0 0
      %1854 = vmatpush1.bf16.msra.mxu0 %v1841
      %1855 = vmatprep.subr.bf16.mxu0 0
      %1856 = vmatpush1.bf16.msra.mxu0 %v1842
      %1857 = vmatprep.subr.bf16.mxu0 0
      %1858 = vmatpush1.bf16.msra.mxu0 %v1843
      %1859 = vmatprep.subr.bf16.mxu0 0
      %1860 = vmatpush1.bf16.msra.mxu0 0
      %1861 = vmatprep.subr.bf16.mxu0 0
      %1862 = vmatpush1.bf16.msra.mxu0 0
      %1863 = vmatprep.subr.bf16.mxu0 0
      %1864 = vmatpush1.bf16.msra.mxu0 0
      %1865 = vmatprep.subr.bf16.mxu0 0
      %1866 = vmatpush1.bf16.msra.mxu0 0
      %1867 = vmatprep.subr.bf16.mxu0 0
      %1868 = vmatpush1.bf16.msra.mxu0 0
      %1869 = vmatprep.subr.bf16.mxu0 0
      %1870 = vmatpush1.bf16.msra.mxu0 0
      %1871 = vmatprep.subr.bf16.mxu0 0
      %1872 = vmatpush1.bf16.msra.mxu0 0
      %1873 = vmatprep.subr.bf16.mxu0 0
      %1874 = vmatpush1.bf16.msra.mxu0 0
      %1875 = vmatprep.subr.bf16.mxu0 0
      %1876 = vmatpush1.bf16.msra.mxu0 0
      %1877 = vmatprep.subr.bf16.mxu0 0
      %1878 = vmatpush1.bf16.msra.mxu0 0
      %1879 = vmatprep.subr.bf16.mxu0 0
      %1880 = vmatpush1.bf16.msra.mxu0 0
      %1881 = vmatprep.subr.bf16.mxu0 0
      %1882 = vmatpush1.bf16.msra.mxu0 0
      %1883 = vmatprep.mubr.bf16.mxu0 0
      %1884 = vmatmul.mubr.bf16.gmra.mrb[0].mxu0 %v1849
      %v1885 = vpop.f32.mrb[0].mxu0
      %v1886 = vadd.f32 %v1822, %v1885
      %v1887 = vpop.f32.mrb[0].mxu0
      %v1888 = vpop.f32.mrb[0].mxu0
      %v1889 = vpop.f32.mrb[0].mxu0
      %1890 = vdwg.mxu0
      %v1891 = vmax.f32 %v1886, 0.0
      %1893 = vrot.lane.b32.xlu0 %v1891, 64
      %v1894 = vpop.permute.xlu0 %1893
      %v1896 = vmul.f32 %v839, %v1894
      %v1897 = vpack.c.bf16 %v1896, %v1896
      %v1899 = vunpack.c.l.b16 %v1897
      %v1900 = vpack.c.b16 %v1899, %v1899
      %1901 = vrot.lane.b32.xlu0 %v1900, 64
      %v1902 = vpop.permute.xlu0 %1901
      %1904 = vst.msk [vmem:[#allocation2 + $0x8] sm:$0xf] %vm1058, %v1902
      %v1905 = vld [vmem:[%s526] sm:$0xff]
      %v1906 = vld [vmem:[%s3] sm:$0x1]
      %1908 = vset.pattern.permute.xlu0 5
      %1909 = vperm.xlu0 %1908, %v1905
      %v1910 = vpop.permute.xlu0 %1909
      %v1913 = vlaneseq
      %v1914 = vshrl.u32 %v1913, 7
      %v1915 = vsub.s32 0, %v1914
      %v1916 = vrot.slane %v1906, %v1915
      %v1918 = vmul.f32 %v1910, %v1916
      %v1919 = vand.u32 2147483647, %v1918
      %vm1920 = vcmp.le.f32.partialorder %v1919, 0.7853982
      %vm1921 = vcmp.lt.s32.totalorder %v1918, 0
      %v1922 = vand.u32 %v1918, 2139095040
      %v1923 = vshrl.u32 %v1922, 23
      %v1924 = vsub.s32 %v1923, 127
      %v1925 = vand.u32 2147483647, %v1918
      %v1926 = vand.u32 %v1925, 8388607
      %v1927 = vor.u32 %v1926, 8388608
      %v1928 = vsub.s32 0, %v1927
      %v1929 = vadd.s32 %v1924, 1
      %vm1930 = vcmp.gt.s32.totalorder %v1929, 0
      %v1931 = vsel %vm1930, %v1929, 0
      %v1932 = vshrl.u32 %v1931, 5
      %v1933 = vand.u32 %v1931, 31
      %v1934 = vsub.s32 32, %v1933
      %v1935 = vshrl.u32 683565275, %v1934
      %v1936 = vshll.u32 683565275, %v1933
      %v1937 = vshrl.u32 2475754826, %v1934
      %v1938 = vor.u32 %v1936, %v1937
      %v1939 = vshll.u32 2475754826, %v1933
      %v1940 = vshrl.u32 2131351028, %v1934
      %v1941 = vor.u32 %v1939, %v1940
      %v1942 = vshll.u32 2131351028, %v1933
      %v1943 = vshrl.u32 2102212464, %v1934
      %v1944 = vor.u32 %v1942, %v1943
      %v1945 = vshll.u32 2102212464, %v1933
      %v1946 = vshrl.u32 920167782, %v1934
      %v1947 = vor.u32 %v1945, %v1946
      %v1948 = vshll.u32 920167782, %v1933
      %v1949 = vshrl.u32 1326507024, %v1934
      %v1950 = vor.u32 %v1948, %v1949
      %vm1951 = vcmp.lt.s32.totalorder %v1932, 1
      %vm1952 = vcmp.lt.s32.totalorder %v1932, 2
      %vm1953 = vcmp.lt.s32.totalorder %v1932, 3
      %vm1954 = vcmp.lt.s32.totalorder %v1932, 4
      %v1955 = vsel %vm1951, %v1935, %v1938
      %v1956 = vsel %vm1954, %v1944, 2102212464
      %v1957 = vsel %vm1953, %v1941, %v1956
      %v1958 = vsel %vm1952, %v1955, %v1957
      %v1959 = vsel %vm1951, %v1938, %v1941
      %v1960 = vsel %vm1954, %v1947, 920167782
      %v1961 = vsel %vm1953, %v1944, %v1960
      %v1962 = vsel %vm1952, %v1959, %v1961
      %v1963 = vsel %vm1951, %v1941, %v1944
      %v1964 = vsel %vm1954, %v1950, 1326507024
      %v1965 = vsel %vm1953, %v1947, %v1964
      %v1966 = vsel %vm1952, %v1963, %v1965
      %v1967 = vshll.u32 %v1927, 8
      %v1968 = vmul.u32.u64.compose %v1967, %v1966
      %v1969 = vextract.low.u32 %v1968
      %v1970 = vextract.high.u32 %v1968
      %v1971 = vmul.u32.u64.compose %v1967, %v1962
      %v1972 = vextract.low.u32 %v1971
      %v1973 = vextract.high.u32 %v1971
      %v1974 = vmul.u32 %v1967, %v1958
      %v1975 = vadd.s32 %v1970, %v1972
      %vm1976 = vc.u32 %v1970, %v1972
      %v1977 = vadd.s32 %v1973, 1
      %v1978 = vsel %vm1976, %v1977, %v1973
      %v1979 = vadd.s32 %v1974, %v1978
      %v1980 = vadd.s32 %v1979, 536870912
      %v1981 = vshrl.u32 %v1980, 30
      %v1982 = vshll.u32 %v1981, 30
      %v1983 = vsub.s32 %v1979, %v1982
      %vm1984 = vcmp.lt.s32.totalorder %v1983, 0
      %v1985 = vsub.s32 0, %v1983
      %v1986 = vsel %vm1984, %v1985, %v1983
      %v1987 = vclz %v1986
      %v1988 = vsub.s32 %v1987, 2
      %vm1989 = vcmp.gt.s32.totalorder 0, %v1988
      %v1990 = vsel %vm1989, 0, %v1988
      %v1991 = vsub.s32 32, %v1990
      %v1992 = vshll.u32 %v1983, %v1990
      %v1993 = vshrl.u32 %v1975, %v1991
      %v1994 = vor.u32 %v1992, %v1993
      %v1995 = vsub.s32 4294967266, %v1990
      %v1996 = vadd.s32 %v1995, 127
      %v1997 = vshll.u32 %v1996, 23
      %v1998 = vor.u32 4788187, %v1997
      %v1999 = vand.u32 2147483647, %v1998
      %v2001 = vcvt.s32.f32 %v1994
      %v2002 = vmul.f32 %v2001, %v1999
      %v2003 = vxor.u32 %v2002, 2147483648
      %v2004 = vsel %vm1921, %v2003, %v2002
      %v2005 = vsub.s32 4, %v1981
      %v2006 = vsel %vm1921, %v2005, %v1981
      %v2007 = vsel %vm1920, %v1918, %v2004
      %v2008 = vsel %vm1920, 0, %v2006
      %v2009 = vcosq.f32.pop %v2007
      %v2010 = vsinq.f32.pop %v2007
      %vm2011 = vweird.f32 %v1918
      %v2012 = vand.u32 %v2008, 3
      %vm2013 = vcmp.lt.s32.totalorder %v2012, 2
      %vm2014 = vcmp.eq.s32.totalorder %v2012, 0
      %v2015 = vxor.u32 %v2010, 2147483648
      %v2016 = vsel %vm2014, %v2009, %v2015
      %vm2017 = vcmp.eq.s32.totalorder %v2012, 2
      %v2018 = vxor.u32 %v2009, 2147483648
      %v2019 = vsel %vm2017, %v2018, %v2010
      %v2020 = vsel %vm2013, %v2016, %v2019
      %v2021 = vsel %vm2011, nan, %v2020
      %v2022 = vpack.c.bf16 %v2021, %v2021
      %v2023 = vld [vmem:[%s10] sm:$0xf]
      %v2024 = vld [vmem:[%s10 + $0x4] sm:$0xf]
      %v2025 = vld [vmem:[%s10 + $0x8] sm:$0xf]
      %v2026 = vld [vmem:[%s10 + $0xc] sm:$0xf]
      %v2027 = vld [vmem:[%s10 + $0x10] sm:$0xf]
      %v2028 = vld [vmem:[%s10 + $0x14] sm:$0xf]
      %v2029 = vld [vmem:[%s10 + $0x18] sm:$0xf]
      %v2030 = vld [vmem:[%s10 + $0x1c] sm:$0xf]
      %v2031 = vld [vmem:[%s11] sm:$0x1]
      %v2033 = vlaneseq
      %v2034 = vshrl.u32 %v2033, 7
      %v2035 = vsub.s32 0, %v2034
      %v2036 = vrot.slane %v2031, %v2035
      %v2046 = vunpack.c.l.b16 %v2023
      %v2047 = vunpack.c.l.b16 %v2024
      %v2048 = vunpack.c.l.b16 %v2025
      %v2049 = vunpack.c.l.b16 %v2026
      %v2050 = vunpack.c.l.b16 %v2027
      %v2051 = vunpack.c.l.b16 %v2028
      %v2052 = vunpack.c.l.b16 %v2029
      %v2053 = vunpack.c.l.b16 %v2030
      %v2054 = vpack.c.b16 %v2047, %v2046
      %v2055 = vpack.c.b16 %v2049, %v2048
      %v2056 = vpack.c.b16 %v2051, %v2050
      %v2057 = vpack.c.b16 %v2053, %v2052
      %v2063 = vsel %vm668, %v2022, 0
      %2065 = vmatprep.subr.bf16.mxu0 0
      %2066 = vmatpush1.bf16.msra.mxu0 %v2054
      %2067 = vmatprep.subr.bf16.mxu0 0
      %2068 = vmatpush1.bf16.msra.mxu0 %v2055
      %2069 = vmatprep.subr.bf16.mxu0 0
      %2070 = vmatpush1.bf16.msra.mxu0 %v2056
      %2071 = vmatprep.subr.bf16.mxu0 0
      %2072 = vmatpush1.bf16.msra.mxu0 %v2057
      %2073 = vmatprep.subr.bf16.mxu0 0
      %2074 = vmatpush1.bf16.msra.mxu0 0
      %2075 = vmatprep.subr.bf16.mxu0 0
      %2076 = vmatpush1.bf16.msra.mxu0 0
      %2077 = vmatprep.subr.bf16.mxu0 0
      %2078 = vmatpush1.bf16.msra.mxu0 0
      %2079 = vmatprep.subr.bf16.mxu0 0
      %2080 = vmatpush1.bf16.msra.mxu0 0
      %2081 = vmatprep.subr.bf16.mxu0 0
      %2082 = vmatpush1.bf16.msra.mxu0 0
      %2083 = vmatprep.subr.bf16.mxu0 0
      %2084 = vmatpush1.bf16.msra.mxu0 0
      %2085 = vmatprep.subr.bf16.mxu0 0
      %2086 = vmatpush1.bf16.msra.mxu0 0
      %2087 = vmatprep.subr.bf16.mxu0 0
      %2088 = vmatpush1.bf16.msra.mxu0 0
      %2089 = vmatprep.subr.bf16.mxu0 0
      %2090 = vmatpush1.bf16.msra.mxu0 0
      %2091 = vmatprep.subr.bf16.mxu0 0
      %2092 = vmatpush1.bf16.msra.mxu0 0
      %2093 = vmatprep.subr.bf16.mxu0 0
      %2094 = vmatpush1.bf16.msra.mxu0 0
      %2095 = vmatprep.subr.bf16.mxu0 0
      %2096 = vmatpush1.bf16.msra.mxu0 0
      %2097 = vmatprep.mubr.bf16.mxu0 0
      %2098 = vmatmul.mubr.bf16.gmra.mrb[0].mxu0 %v2063
      %v2099 = vpop.f32.mrb[0].mxu0
      %v2100 = vadd.f32 %v2036, %v2099
      %v2101 = vpop.f32.mrb[0].mxu0
      %v2102 = vpop.f32.mrb[0].mxu0
      %v2103 = vpop.f32.mrb[0].mxu0
      %2104 = vdwg.mxu0
      %v2105 = vmax.f32 %v2100, 0.0
      %2107 = vrot.lane.b32.xlu0 %v2105, 64
      %v2108 = vpop.permute.xlu0 %2107
      %v2110 = vmul.f32 %v839, %v2108
      %v2111 = vpack.c.bf16 %v2110, %v2110
      %2112 = vst.msk [vmem:[#allocation2 + $0x8] sm:$0xf] %vm1267, %v2111
      %v2113 = vld [vmem:[%s526] sm:$0xff]
      %v2114 = vld [vmem:[%s3] sm:$0x1]
      %2116 = vset.pattern.permute.xlu0 6
      %2117 = vperm.xlu0 %2116, %v2113
      %v2118 = vpop.permute.xlu0 %2117
      %v2121 = vlaneseq
      %v2122 = vshrl.u32 %v2121, 7
      %v2123 = vsub.s32 0, %v2122
      %v2124 = vrot.slane %v2114, %v2123
      %v2126 = vmul.f32 %v2118, %v2124
      %v2127 = vand.u32 2147483647, %v2126
      %vm2128 = vcmp.le.f32.partialorder %v2127, 0.7853982
      %vm2129 = vcmp.lt.s32.totalorder %v2126, 0
      %v2130 = vand.u32 %v2126, 2139095040
      %v2131 = vshrl.u32 %v2130, 23
      %v2132 = vsub.s32 %v2131, 127
      %v2133 = vand.u32 2147483647, %v2126
      %v2134 = vand.u32 %v2133, 8388607
      %v2135 = vor.u32 %v2134, 8388608
      %v2136 = vsub.s32 0, %v2135
      %v2137 = vadd.s32 %v2132, 1
      %vm2138 = vcmp.gt.s32.totalorder %v2137, 0
      %v2139 = vsel %vm2138, %v2137, 0
      %v2140 = vshrl.u32 %v2139, 5
      %v2141 = vand.u32 %v2139, 31
      %v2142 = vsub.s32 32, %v2141
      %v2143 = vshrl.u32 683565275, %v2142
      %v2144 = vshll.u32 683565275, %v2141
      %v2145 = vshrl.u32 2475754826, %v2142
      %v2146 = vor.u32 %v2144, %v2145
      %v2147 = vshll.u32 2475754826, %v2141
      %v2148 = vshrl.u32 2131351028, %v2142
      %v2149 = vor.u32 %v2147, %v2148
      %v2150 = vshll.u32 2131351028, %v2141
      %v2151 = vshrl.u32 2102212464, %v2142
      %v2152 = vor.u32 %v2150, %v2151
      %v2153 = vshll.u32 2102212464, %v2141
      %v2154 = vshrl.u32 920167782, %v2142
      %v2155 = vor.u32 %v2153, %v2154
      %v2156 = vshll.u32 920167782, %v2141
      %v2157 = vshrl.u32 1326507024, %v2142
      %v2158 = vor.u32 %v2156, %v2157
      %vm2159 = vcmp.lt.s32.totalorder %v2140, 1
      %vm2160 = vcmp.lt.s32.totalorder %v2140, 2
      %vm2161 = vcmp.lt.s32.totalorder %v2140, 3
      %vm2162 = vcmp.lt.s32.totalorder %v2140, 4
      %v2163 = vsel %vm2159, %v2143, %v2146
      %v2164 = vsel %vm2162, %v2152, 2102212464
      %v2165 = vsel %vm2161, %v2149, %v2164
      %v2166 = vsel %vm2160, %v2163, %v2165
      %v2167 = vsel %vm2159, %v2146, %v2149
      %v2168 = vsel %vm2162, %v2155, 920167782
      %v2169 = vsel %vm2161, %v2152, %v2168
      %v2170 = vsel %vm2160, %v2167, %v2169
      %v2171 = vsel %vm2159, %v2149, %v2152
      %v2172 = vsel %vm2162, %v2158, 1326507024
      %v2173 = vsel %vm2161, %v2155, %v2172
      %v2174 = vsel %vm2160, %v2171, %v2173
      %v2175 = vshll.u32 %v2135, 8
      %v2176 = vmul.u32.u64.compose %v2175, %v2174
      %v2177 = vextract.low.u32 %v2176
      %v2178 = vextract.high.u32 %v2176
      %v2179 = vmul.u32.u64.compose %v2175, %v2170
      %v2180 = vextract.low.u32 %v2179
      %v2181 = vextract.high.u32 %v2179
      %v2182 = vmul.u32 %v2175, %v2166
      %v2183 = vadd.s32 %v2178, %v2180
      %vm2184 = vc.u32 %v2178, %v2180
      %v2185 = vadd.s32 %v2181, 1
      %v2186 = vsel %vm2184, %v2185, %v2181
      %v2187 = vadd.s32 %v2182, %v2186
      %v2188 = vadd.s32 %v2187, 536870912
      %v2189 = vshrl.u32 %v2188, 30
      %v2190 = vshll.u32 %v2189, 30
      %v2191 = vsub.s32 %v2187, %v2190
      %vm2192 = vcmp.lt.s32.totalorder %v2191, 0
      %v2193 = vsub.s32 0, %v2191
      %v2194 = vsel %vm2192, %v2193, %v2191
      %v2195 = vclz %v2194
      %v2196 = vsub.s32 %v2195, 2
      %vm2197 = vcmp.gt.s32.totalorder 0, %v2196
      %v2198 = vsel %vm2197, 0, %v2196
      %v2199 = vsub.s32 32, %v2198
      %v2200 = vshll.u32 %v2191, %v2198
      %v2201 = vshrl.u32 %v2183, %v2199
      %v2202 = vor.u32 %v2200, %v2201
      %v2203 = vsub.s32 4294967266, %v2198
      %v2204 = vadd.s32 %v2203, 127
      %v2205 = vshll.u32 %v2204, 23
      %v2206 = vor.u32 4788187, %v2205
      %v2207 = vand.u32 2147483647, %v2206
      %v2209 = vcvt.s32.f32 %v2202
      %v2210 = vmul.f32 %v2209, %v2207
      %v2211 = vxor.u32 %v2210, 2147483648
      %v2212 = vsel %vm2129, %v2211, %v2210
      %v2213 = vsub.s32 4, %v2189
      %v2214 = vsel %vm2129, %v2213, %v2189
      %v2215 = vsel %vm2128, %v2126, %v2212
      %v2216 = vsel %vm2128, 0, %v2214
      %v2217 = vcosq.f32.pop %v2215
      %v2218 = vsinq.f32.pop %v2215
      %vm2219 = vweird.f32 %v2126
      %v2220 = vand.u32 %v2216, 3
      %vm2221 = vcmp.lt.s32.totalorder %v2220, 2
      %vm2222 = vcmp.eq.s32.totalorder %v2220, 0
      %v2223 = vxor.u32 %v2218, 2147483648
      %v2224 = vsel %vm2222, %v2217, %v2223
      %vm2225 = vcmp.eq.s32.totalorder %v2220, 2
      %v2226 = vxor.u32 %v2217, 2147483648
      %v2227 = vsel %vm2225, %v2226, %v2218
      %v2228 = vsel %vm2221, %v2224, %v2227
      %v2229 = vsel %vm2219, nan, %v2228
      %v2230 = vpack.c.bf16 %v2229, %v2229
      %v2231 = vld [vmem:[%s10] sm:$0xf]
      %v2232 = vld [vmem:[%s10 + $0x4] sm:$0xf]
      %v2233 = vld [vmem:[%s10 + $0x8] sm:$0xf]
      %v2234 = vld [vmem:[%s10 + $0xc] sm:$0xf]
      %v2235 = vld [vmem:[%s10 + $0x10] sm:$0xf]
      %v2236 = vld [vmem:[%s10 + $0x14] sm:$0xf]
      %v2237 = vld [vmem:[%s10 + $0x18] sm:$0xf]
      %v2238 = vld [vmem:[%s10 + $0x1c] sm:$0xf]
      %v2239 = vld [vmem:[%s11] sm:$0x1]
      %v2241 = vlaneseq
      %v2242 = vshrl.u32 %v2241, 7
      %v2243 = vsub.s32 0, %v2242
      %v2244 = vrot.slane %v2239, %v2243
      %v2254 = vunpack.c.l.b16 %v2231
      %v2255 = vunpack.c.l.b16 %v2232
      %v2256 = vunpack.c.l.b16 %v2233
      %v2257 = vunpack.c.l.b16 %v2234
      %v2258 = vunpack.c.l.b16 %v2235
      %v2259 = vunpack.c.l.b16 %v2236
      %v2260 = vunpack.c.l.b16 %v2237
      %v2261 = vunpack.c.l.b16 %v2238
      %v2262 = vpack.c.b16 %v2255, %v2254
      %v2263 = vpack.c.b16 %v2257, %v2256
      %v2264 = vpack.c.b16 %v2259, %v2258
      %v2265 = vpack.c.b16 %v2261, %v2260
      %v2271 = vsel %vm668, %v2230, 0
      %2273 = vmatprep.subr.bf16.mxu0 0
      %2274 = vmatpush1.bf16.msra.mxu0 %v2262
      %2275 = vmatprep.subr.bf16.mxu0 0
      %2276 = vmatpush1.bf16.msra.mxu0 %v2263
      %2277 = vmatprep.subr.bf16.mxu0 0
      %2278 = vmatpush1.bf16.msra.mxu0 %v2264
      %2279 = vmatprep.subr.bf16.mxu0 0
      %2280 = vmatpush1.bf16.msra.mxu0 %v2265
      %2281 = vmatprep.subr.bf16.mxu0 0
      %2282 = vmatpush1.bf16.msra.mxu0 0
      %2283 = vmatprep.subr.bf16.mxu0 0
      %2284 = vmatpush1.bf16.msra.mxu0 0
      %2285 = vmatprep.subr.bf16.mxu0 0
      %2286 = vmatpush1.bf16.msra.mxu0 0
      %2287 = vmatprep.subr.bf16.mxu0 0
      %2288 = vmatpush1.bf16.msra.mxu0 0
      %2289 = vmatprep.subr.bf16.mxu0 0
      %2290 = vmatpush1.bf16.msra.mxu0 0
      %2291 = vmatprep.subr.bf16.mxu0 0
      %2292 = vmatpush1.bf16.msra.mxu0 0
      %2293 = vmatprep.subr.bf16.mxu0 0
      %2294 = vmatpush1.bf16.msra.mxu0 0
      %2295 = vmatprep.subr.bf16.mxu0 0
      %2296 = vmatpush1.bf16.msra.mxu0 0
      %2297 = vmatprep.subr.bf16.mxu0 0
      %2298 = vmatpush1.bf16.msra.mxu0 0
      %2299 = vmatprep.subr.bf16.mxu0 0
      %2300 = vmatpush1.bf16.msra.mxu0 0
      %2301 = vmatprep.subr.bf16.mxu0 0
      %2302 = vmatpush1.bf16.msra.mxu0 0
      %2303 = vmatprep.subr.bf16.mxu0 0
      %2304 = vmatpush1.bf16.msra.mxu0 0
      %2305 = vmatprep.mubr.bf16.mxu0 0
      %2306 = vmatmul.mubr.bf16.gmra.mrb[0].mxu0 %v2271
      %v2307 = vpop.f32.mrb[0].mxu0
      %v2308 = vadd.f32 %v2244, %v2307
      %v2309 = vpop.f32.mrb[0].mxu0
      %v2310 = vpop.f32.mrb[0].mxu0
      %v2311 = vpop.f32.mrb[0].mxu0
      %2312 = vdwg.mxu0
      %v2313 = vmax.f32 %v2308, 0.0
      %2315 = vrot.lane.b32.xlu0 %v2313, 64
      %v2316 = vpop.permute.xlu0 %2315
      %v2318 = vmul.f32 %v839, %v2316
      %v2319 = vpack.c.bf16 %v2318, %v2318
      %v2321 = vunpack.c.l.b16 %v2319
      %v2322 = vpack.c.b16 %v2321, %v2321
      %2323 = vrot.lane.b32.xlu0 %v2322, 64
      %v2324 = vpop.permute.xlu0 %2323
      %2326 = vst.msk [vmem:[#allocation2 + $0xc] sm:$0xf] %vm1058, %v2324
      %v2327 = vld [vmem:[%s526] sm:$0xff]
      %v2328 = vld [vmem:[%s3] sm:$0x1]
      %2330 = vset.pattern.permute.xlu0 7
      %2331 = vperm.xlu0 %2330, %v2327
      %v2332 = vpop.permute.xlu0 %2331
      %v2335 = vlaneseq
      %v2336 = vshrl.u32 %v2335, 7
      %v2337 = vsub.s32 0, %v2336
      %v2338 = vrot.slane %v2328, %v2337
      %v2340 = vmul.f32 %v2332, %v2338
      %v2341 = vand.u32 2147483647, %v2340
      %vm2342 = vcmp.le.f32.partialorder %v2341, 0.7853982
      %vm2343 = vcmp.lt.s32.totalorder %v2340, 0
      %v2344 = vand.u32 %v2340, 2139095040
      %v2345 = vshrl.u32 %v2344, 23
      %v2346 = vsub.s32 %v2345, 127
      %v2347 = vand.u32 2147483647, %v2340
      %v2348 = vand.u32 %v2347, 8388607
      %v2349 = vor.u32 %v2348, 8388608
      %v2350 = vsub.s32 0, %v2349
      %v2351 = vadd.s32 %v2346, 1
      %vm2352 = vcmp.gt.s32.totalorder %v2351, 0
      %v2353 = vsel %vm2352, %v2351, 0
      %v2354 = vshrl.u32 %v2353, 5
      %v2355 = vand.u32 %v2353, 31
      %v2356 = vsub.s32 32, %v2355
      %v2357 = vshrl.u32 683565275, %v2356
      %v2358 = vshll.u32 683565275, %v2355
      %v2359 = vshrl.u32 2475754826, %v2356
      %v2360 = vor.u32 %v2358, %v2359
      %v2361 = vshll.u32 2475754826, %v2355
      %v2362 = vshrl.u32 2131351028, %v2356
      %v2363 = vor.u32 %v2361, %v2362
      %v2364 = vshll.u32 2131351028, %v2355
      %v2365 = vshrl.u32 2102212464, %v2356
      %v2366 = vor.u32 %v2364, %v2365
      %v2367 = vshll.u32 2102212464, %v2355
      %v2368 = vshrl.u32 920167782, %v2356
      %v2369 = vor.u32 %v2367, %v2368
      %v2370 = vshll.u32 920167782, %v2355
      %v2371 = vshrl.u32 1326507024, %v2356
      %v2372 = vor.u32 %v2370, %v2371
      %vm2373 = vcmp.lt.s32.totalorder %v2354, 1
      %vm2374 = vcmp.lt.s32.totalorder %v2354, 2
      %vm2375 = vcmp.lt.s32.totalorder %v2354, 3
      %vm2376 = vcmp.lt.s32.totalorder %v2354, 4
      %v2377 = vsel %vm2373, %v2357, %v2360
      %v2378 = vsel %vm2376, %v2366, 2102212464
      %v2379 = vsel %vm2375, %v2363, %v2378
      %v2380 = vsel %vm2374, %v2377, %v2379
      %v2381 = vsel %vm2373, %v2360, %v2363
      %v2382 = vsel %vm2376, %v2369, 920167782
      %v2383 = vsel %vm2375, %v2366, %v2382
      %v2384 = vsel %vm2374, %v2381, %v2383
      %v2385 = vsel %vm2373, %v2363, %v2366
      %v2386 = vsel %vm2376, %v2372, 1326507024
      %v2387 = vsel %vm2375, %v2369, %v2386
      %v2388 = vsel %vm2374, %v2385, %v2387
      %v2389 = vshll.u32 %v2349, 8
      %v2390 = vmul.u32.u64.compose %v2389, %v2388
      %v2391 = vextract.low.u32 %v2390
      %v2392 = vextract.high.u32 %v2390
      %v2393 = vmul.u32.u64.compose %v2389, %v2384
      %v2394 = vextract.low.u32 %v2393
      %v2395 = vextract.high.u32 %v2393
      %v2396 = vmul.u32 %v2389, %v2380
      %v2397 = vadd.s32 %v2392, %v2394
      %vm2398 = vc.u32 %v2392, %v2394
      %v2399 = vadd.s32 %v2395, 1
      %v2400 = vsel %vm2398, %v2399, %v2395
      %v2401 = vadd.s32 %v2396, %v2400
      %v2402 = vadd.s32 %v2401, 536870912
      %v2403 = vshrl.u32 %v2402, 30
      %v2404 = vshll.u32 %v2403, 30
      %v2405 = vsub.s32 %v2401, %v2404
      %vm2406 = vcmp.lt.s32.totalorder %v2405, 0
      %v2407 = vsub.s32 0, %v2405
      %v2408 = vsel %vm2406, %v2407, %v2405
      %v2409 = vclz %v2408
      %v2410 = vsub.s32 %v2409, 2
      %vm2411 = vcmp.gt.s32.totalorder 0, %v2410
      %v2412 = vsel %vm2411, 0, %v2410
      %v2413 = vsub.s32 32, %v2412
      %v2414 = vshll.u32 %v2405, %v2412
      %v2415 = vshrl.u32 %v2397, %v2413
      %v2416 = vor.u32 %v2414, %v2415
      %v2417 = vsub.s32 4294967266, %v2412
      %v2418 = vadd.s32 %v2417, 127
      %v2419 = vshll.u32 %v2418, 23
      %v2420 = vor.u32 4788187, %v2419
      %v2421 = vand.u32 2147483647, %v2420
      %v2423 = vcvt.s32.f32 %v2416
      %v2424 = vmul.f32 %v2423, %v2421
      %v2425 = vxor.u32 %v2424, 2147483648
      %v2426 = vsel %vm2343, %v2425, %v2424
      %v2427 = vsub.s32 4, %v2403
      %v2428 = vsel %vm2343, %v2427, %v2403
      %v2429 = vsel %vm2342, %v2340, %v2426
      %v2430 = vsel %vm2342, 0, %v2428
      %v2431 = vcosq.f32.pop %v2429
      %v2432 = vsinq.f32.pop %v2429
      %vm2433 = vweird.f32 %v2340
      %v2434 = vand.u32 %v2430, 3
      %vm2435 = vcmp.lt.s32.totalorder %v2434, 2
      %vm2436 = vcmp.eq.s32.totalorder %v2434, 0
      %v2437 = vxor.u32 %v2432, 2147483648
      %v2438 = vsel %vm2436, %v2431, %v2437
      %vm2439 = vcmp.eq.s32.totalorder %v2434, 2
      %v2440 = vxor.u32 %v2431, 2147483648
      %v2441 = vsel %vm2439, %v2440, %v2432
      %v2442 = vsel %vm2435, %v2438, %v2441
      %v2443 = vsel %vm2433, nan, %v2442
      %v2444 = vpack.c.bf16 %v2443, %v2443
      %v2445 = vld [vmem:[%s10] sm:$0xf]
      %v2446 = vld [vmem:[%s10 + $0x4] sm:$0xf]
      %v2447 = vld [vmem:[%s10 + $0x8] sm:$0xf]
      %v2448 = vld [vmem:[%s10 + $0xc] sm:$0xf]
      %v2449 = vld [vmem:[%s10 + $0x10] sm:$0xf]
      %v2450 = vld [vmem:[%s10 + $0x14] sm:$0xf]
      %v2451 = vld [vmem:[%s10 + $0x18] sm:$0xf]
      %v2452 = vld [vmem:[%s10 + $0x1c] sm:$0xf]
      %v2453 = vld [vmem:[%s11] sm:$0x1]
      %v2455 = vlaneseq
      %v2456 = vshrl.u32 %v2455, 7
      %v2457 = vsub.s32 0, %v2456
      %v2458 = vrot.slane %v2453, %v2457
      %v2468 = vunpack.c.l.b16 %v2445
      %v2469 = vunpack.c.l.b16 %v2446
      %v2470 = vunpack.c.l.b16 %v2447
      %v2471 = vunpack.c.l.b16 %v2448
      %v2472 = vunpack.c.l.b16 %v2449
      %v2473 = vunpack.c.l.b16 %v2450
      %v2474 = vunpack.c.l.b16 %v2451
      %v2475 = vunpack.c.l.b16 %v2452
      %v2476 = vpack.c.b16 %v2469, %v2468
      %v2477 = vpack.c.b16 %v2471, %v2470
      %v2478 = vpack.c.b16 %v2473, %v2472
      %v2479 = vpack.c.b16 %v2475, %v2474
      %v2485 = vsel %vm668, %v2444, 0
      %2487 = vmatprep.subr.bf16.mxu0 0
      %2488 = vmatpush1.bf16.msra.mxu0 %v2476
      %2489 = vmatprep.subr.bf16.mxu0 0
      %2490 = vmatpush1.bf16.msra.mxu0 %v2477
      %2491 = vmatprep.subr.bf16.mxu0 0
      %2492 = vmatpush1.bf16.msra.mxu0 %v2478
      %2493 = vmatprep.subr.bf16.mxu0 0
      %2494 = vmatpush1.bf16.msra.mxu0 %v2479
      %2495 = vmatprep.subr.bf16.mxu0 0
      %2496 = vmatpush1.bf16.msra.mxu0 0
      %2497 = vmatprep.subr.bf16.mxu0 0
      %2498 = vmatpush1.bf16.msra.mxu0 0
      %2499 = vmatprep.subr.bf16.mxu0 0
      %2500 = vmatpush1.bf16.msra.mxu0 0
      %2501 = vmatprep.subr.bf16.mxu0 0
      %2502 = vmatpush1.bf16.msra.mxu0 0
      %2503 = vmatprep.subr.bf16.mxu0 0
      %2504 = vmatpush1.bf16.msra.mxu0 0
      %2505 = vmatprep.subr.bf16.mxu0 0
      %2506 = vmatpush1.bf16.msra.mxu0 0
      %2507 = vmatprep.subr.bf16.mxu0 0
      %2508 = vmatpush1.bf16.msra.mxu0 0
      %2509 = vmatprep.subr.bf16.mxu0 0
      %2510 = vmatpush1.bf16.msra.mxu0 0
      %2511 = vmatprep.subr.bf16.mxu0 0
      %2512 = vmatpush1.bf16.msra.mxu0 0
      %2513 = vmatprep.subr.bf16.mxu0 0
      %2514 = vmatpush1.bf16.msra.mxu0 0
      %2515 = vmatprep.subr.bf16.mxu0 0
      %2516 = vmatpush1.bf16.msra.mxu0 0
      %2517 = vmatprep.subr.bf16.mxu0 0
      %2518 = vmatpush1.bf16.msra.mxu0 0
      %2519 = vmatprep.mubr.bf16.mxu0 0
      %2520 = vmatmul.mubr.bf16.gmra.mrb[0].mxu0 %v2485
      %v2521 = vpop.f32.mrb[0].mxu0
      %v2522 = vadd.f32 %v2458, %v2521
      %v2523 = vpop.f32.mrb[0].mxu0
      %v2524 = vpop.f32.mrb[0].mxu0
      %v2525 = vpop.f32.mrb[0].mxu0
      %2526 = vdwg.mxu0
      %v2527 = vmax.f32 %v2522, 0.0
      %2529 = vrot.lane.b32.xlu0 %v2527, 64
      %v2530 = vpop.permute.xlu0 %2529
      %v2532 = vmul.f32 %v839, %v2530
      %v2533 = vpack.c.bf16 %v2532, %v2532
      %2534 = vst.msk [vmem:[#allocation2 + $0xc] sm:$0xf] %vm1267, %v2533
      %v2535 = vld [vmem:[#allocation2] sm:$0xff]
      %v2536 = vld [vmem:[#allocation2 + $0x8] sm:$0xff]
      %v2537 = vld [vmem:[%s12] sm:$0xf]
      %v2538 = vld [vmem:[%s12 + $0x4] sm:$0xf]
      %v2539 = vld [vmem:[%s12 + $0x8] sm:$0xf]
      %v2540 = vld [vmem:[%s12 + $0xc] sm:$0xf]
      %v2541 = vld [vmem:[%s12 + $0x10] sm:$0xf]
      %v2542 = vld [vmem:[%s12 + $0x14] sm:$0xf]
      %v2543 = vld [vmem:[%s12 + $0x18] sm:$0xf]
      %v2544 = vld [vmem:[%s12 + $0x1c] sm:$0xf]
      %v2545 = vld [vmem:[%s12 + $0x20] sm:$0xf]
      %v2546 = vld [vmem:[%s12 + $0x24] sm:$0xf]
      %v2547 = vld [vmem:[%s12 + $0x28] sm:$0xf]
      %v2548 = vld [vmem:[%s12 + $0x2c] sm:$0xf]
      %v2549 = vld [vmem:[%s12 + $0x30] sm:$0xf]
      %v2550 = vld [vmem:[%s12 + $0x34] sm:$0xf]
      %v2551 = vld [vmem:[%s12 + $0x38] sm:$0xf]
      %v2552 = vld [vmem:[%s12 + $0x3c] sm:$0xf]
      %v2553 = vld [vmem:[%s12 + $0x40] sm:$0xf]
      %v2554 = vld [vmem:[%s12 + $0x44] sm:$0xf]
      %v2555 = vld [vmem:[%s12 + $0x48] sm:$0xf]
      %v2556 = vld [vmem:[%s12 + $0x4c] sm:$0xf]
      %v2557 = vld [vmem:[%s12 + $0x50] sm:$0xf]
      %v2558 = vld [vmem:[%s12 + $0x54] sm:$0xf]
      %v2559 = vld [vmem:[%s12 + $0x58] sm:$0xf]
      %v2560 = vld [vmem:[%s12 + $0x5c] sm:$0xf]
      %v2561 = vld [vmem:[%s12 + $0x60] sm:$0xf]
      %v2562 = vld [vmem:[%s12 + $0x64] sm:$0xf]
      %v2563 = vld [vmem:[%s12 + $0x68] sm:$0xf]
      %v2564 = vld [vmem:[%s12 + $0x6c] sm:$0xf]
      %v2565 = vld [vmem:[%s12 + $0x70] sm:$0xf]
      %v2566 = vld [vmem:[%s12 + $0x74] sm:$0xf]
      %v2567 = vld [vmem:[%s12 + $0x78] sm:$0xf]
      %v2568 = vld [vmem:[%s12 + $0x7c] sm:$0xf]
      %v2569 = vld [vmem:[%s12 + $0x80] sm:$0xf]
      %v2570 = vld [vmem:[%s12 + $0x84] sm:$0xf]
      %v2571 = vld [vmem:[%s12 + $0x88] sm:$0xf]
      %v2572 = vld [vmem:[%s12 + $0x8c] sm:$0xf]
      %v2573 = vld [vmem:[%s12 + $0x90] sm:$0xf]
      %v2574 = vld [vmem:[%s12 + $0x94] sm:$0xf]
      %v2575 = vld [vmem:[%s12 + $0x98] sm:$0xf]
      %v2576 = vld [vmem:[%s12 + $0x9c] sm:$0xf]
      %v2577 = vld [vmem:[%s12 + $0xa0] sm:$0xf]
      %v2578 = vld [vmem:[%s12 + $0xa4] sm:$0xf]
      %v2579 = vld [vmem:[%s12 + $0xa8] sm:$0xf]
      %v2580 = vld [vmem:[%s12 + $0xac] sm:$0xf]
      %v2581 = vld [vmem:[%s12 + $0xb0] sm:$0xf]
      %v2582 = vld [vmem:[%s12 + $0xb4] sm:$0xf]
      %v2583 = vld [vmem:[%s12 + $0xb8] sm:$0xf]
      %v2584 = vld [vmem:[%s12 + $0xbc] sm:$0xf]
      %v2585 = vld [vmem:[%s12 + $0xc0] sm:$0xf]
      %v2586 = vld [vmem:[%s12 + $0xc4] sm:$0xf]
      %v2587 = vld [vmem:[%s12 + $0xc8] sm:$0xf]
      %v2588 = vld [vmem:[%s12 + $0xcc] sm:$0xf]
      %v2589 = vld [vmem:[%s12 + $0xd0] sm:$0xf]
      %v2590 = vld [vmem:[%s12 + $0xd4] sm:$0xf]
      %v2591 = vld [vmem:[%s12 + $0xd8] sm:$0xf]
      %v2592 = vld [vmem:[%s12 + $0xdc] sm:$0xf]
      %v2593 = vld [vmem:[%s12 + $0xe0] sm:$0xf]
      %v2594 = vld [vmem:[%s12 + $0xe4] sm:$0xf]
      %v2595 = vld [vmem:[%s12 + $0xe8] sm:$0xf]
      %v2596 = vld [vmem:[%s12 + $0xec] sm:$0xf]
      %v2597 = vld [vmem:[%s12 + $0xf0] sm:$0xf]
      %v2598 = vld [vmem:[%s12 + $0xf4] sm:$0xf]
      %v2599 = vld [vmem:[%s12 + $0xf8] sm:$0xf]
      %v2600 = vld [vmem:[%s12 + $0xfc] sm:$0xf]
      %v2601 = vld [vmem:[%s13] sm:$0x1]
      %v2603 = vlaneseq
      %v2604 = vshrl.u32 %v2603, 7
      %v2605 = vsub.s32 0, %v2604
      %v2606 = vrot.slane %v2601, %v2605
      %v2610 = vunpack.c.l.b16 %v2535
      %v2611 = vunpack.c.h.b16 %v2535
      %v2612 = vunpack.c.l.b16 %v2536
      %v2613 = vunpack.c.h.b16 %v2536
      %v2614 = vpack.c.b16 %v2610, %v2610
      %v2615 = vpack.c.b16 %v2611, %v2611
      %v2616 = vpack.c.b16 %v2612, %v2612
      %v2617 = vpack.c.b16 %v2613, %v2613
      %v2686 = vunpack.c.l.b16 %v2537
      %v2687 = vunpack.c.l.b16 %v2538
      %v2688 = vunpack.c.l.b16 %v2539
      %v2689 = vunpack.c.l.b16 %v2540
      %v2690 = vunpack.c.l.b16 %v2541
      %v2691 = vunpack.c.l.b16 %v2542
      %v2692 = vunpack.c.l.b16 %v2543
      %v2693 = vunpack.c.l.b16 %v2544
      %v2694 = vunpack.c.l.b16 %v2545
      %v2695 = vunpack.c.l.b16 %v2546
      %v2696 = vunpack.c.l.b16 %v2547
      %v2697 = vunpack.c.l.b16 %v2548
      %v2698 = vunpack.c.l.b16 %v2549
      %v2699 = vunpack.c.l.b16 %v2550
      %v2700 = vunpack.c.l.b16 %v2551
      %v2701 = vunpack.c.l.b16 %v2552
      %v2702 = vunpack.c.l.b16 %v2553
      %v2703 = vunpack.c.l.b16 %v2554
      %v2704 = vunpack.c.l.b16 %v2555
      %v2705 = vunpack.c.l.b16 %v2556
      %v2706 = vunpack.c.l.b16 %v2557
      %v2707 = vunpack.c.l.b16 %v2558
      %v2708 = vunpack.c.l.b16 %v2559
      %v2709 = vunpack.c.l.b16 %v2560
      %v2710 = vunpack.c.l.b16 %v2561
      %v2711 = vunpack.c.l.b16 %v2562
      %v2712 = vunpack.c.l.b16 %v2563
      %v2713 = vunpack.c.l.b16 %v2564
      %v2714 = vunpack.c.l.b16 %v2565
      %v2715 = vunpack.c.l.b16 %v2566
      %v2716 = vunpack.c.l.b16 %v2567
      %v2717 = vunpack.c.l.b16 %v2568
      %v2718 = vunpack.c.l.b16 %v2569
      %v2719 = vunpack.c.l.b16 %v2570
      %v2720 = vunpack.c.l.b16 %v2571
      %v2721 = vunpack.c.l.b16 %v2572
      %v2722 = vunpack.c.l.b16 %v2573
      %v2723 = vunpack.c.l.b16 %v2574
      %v2724 = vunpack.c.l.b16 %v2575
      %v2725 = vunpack.c.l.b16 %v2576
      %v2726 = vunpack.c.l.b16 %v2577
      %v2727 = vunpack.c.l.b16 %v2578
      %v2728 = vunpack.c.l.b16 %v2579
      %v2729 = vunpack.c.l.b16 %v2580
      %v2730 = vunpack.c.l.b16 %v2581
      %v2731 = vunpack.c.l.b16 %v2582
      %v2732 = vunpack.c.l.b16 %v2583
      %v2733 = vunpack.c.l.b16 %v2584
      %v2734 = vunpack.c.l.b16 %v2585
      %v2735 = vunpack.c.l.b16 %v2586
      %v2736 = vunpack.c.l.b16 %v2587
      %v2737 = vunpack.c.l.b16 %v2588
      %v2738 = vunpack.c.l.b16 %v2589
      %v2739 = vunpack.c.l.b16 %v2590
      %v2740 = vunpack.c.l.b16 %v2591
      %v2741 = vunpack.c.l.b16 %v2592
      %v2742 = vunpack.c.l.b16 %v2593
      %v2743 = vunpack.c.l.b16 %v2594
      %v2744 = vunpack.c.l.b16 %v2595
      %v2745 = vunpack.c.l.b16 %v2596
      %v2746 = vunpack.c.l.b16 %v2597
      %v2747 = vunpack.c.l.b16 %v2598
      %v2748 = vunpack.c.l.b16 %v2599
      %v2749 = vunpack.c.l.b16 %v2600
      %v2750 = vpack.c.b16 %v2687, %v2686
      %v2751 = vpack.c.b16 %v2689, %v2688
      %v2752 = vpack.c.b16 %v2691, %v2690
      %v2753 = vpack.c.b16 %v2693, %v2692
      %v2754 = vpack.c.b16 %v2695, %v2694
      %v2755 = vpack.c.b16 %v2697, %v2696
      %v2756 = vpack.c.b16 %v2699, %v2698
      %v2757 = vpack.c.b16 %v2701, %v2700
      %v2758 = vpack.c.b16 %v2703, %v2702
      %v2759 = vpack.c.b16 %v2705, %v2704
      %v2760 = vpack.c.b16 %v2707, %v2706
      %v2761 = vpack.c.b16 %v2709, %v2708
      %v2762 = vpack.c.b16 %v2711, %v2710
      %v2763 = vpack.c.b16 %v2713, %v2712
      %v2764 = vpack.c.b16 %v2715, %v2714
      %v2765 = vpack.c.b16 %v2717, %v2716
      %v2766 = vpack.c.b16 %v2719, %v2718
      %v2767 = vpack.c.b16 %v2721, %v2720
      %v2768 = vpack.c.b16 %v2723, %v2722
      %v2769 = vpack.c.b16 %v2725, %v2724
      %v2770 = vpack.c.b16 %v2727, %v2726
      %v2771 = vpack.c.b16 %v2729, %v2728
      %v2772 = vpack.c.b16 %v2731, %v2730
      %v2773 = vpack.c.b16 %v2733, %v2732
      %v2774 = vpack.c.b16 %v2735, %v2734
      %v2775 = vpack.c.b16 %v2737, %v2736
      %v2776 = vpack.c.b16 %v2739, %v2738
      %v2777 = vpack.c.b16 %v2741, %v2740
      %v2778 = vpack.c.b16 %v2743, %v2742
      %v2779 = vpack.c.b16 %v2745, %v2744
      %v2780 = vpack.c.b16 %v2747, %v2746
      %v2781 = vpack.c.b16 %v2749, %v2748
      %2814 = vmatprep.subr.bf16.mxu0 0
      %2815 = vmatpush1.bf16.msra.mxu0 %v2750
      %2816 = vmatprep.subr.bf16.mxu0 0
      %2817 = vmatpush1.bf16.msra.mxu0 %v2751
      %2818 = vmatprep.subr.bf16.mxu0 0
      %2819 = vmatpush1.bf16.msra.mxu0 %v2752
      %2820 = vmatprep.subr.bf16.mxu0 0
      %2821 = vmatpush1.bf16.msra.mxu0 %v2753
      %2822 = vmatprep.subr.bf16.mxu0 0
      %2823 = vmatpush1.bf16.msra.mxu0 %v2754
      %2824 = vmatprep.subr.bf16.mxu0 0
      %2825 = vmatpush1.bf16.msra.mxu0 %v2755
      %2826 = vmatprep.subr.bf16.mxu0 0
      %2827 = vmatpush1.bf16.msra.mxu0 %v2756
      %2828 = vmatprep.subr.bf16.mxu0 0
      %2829 = vmatpush1.bf16.msra.mxu0 %v2757
      %2830 = vmatprep.subr.bf16.mxu0 0
      %2831 = vmatpush1.bf16.msra.mxu0 %v2758
      %2832 = vmatprep.subr.bf16.mxu0 0
      %2833 = vmatpush1.bf16.msra.mxu0 %v2759
      %2834 = vmatprep.subr.bf16.mxu0 0
      %2835 = vmatpush1.bf16.msra.mxu0 %v2760
      %2836 = vmatprep.subr.bf16.mxu0 0
      %2837 = vmatpush1.bf16.msra.mxu0 %v2761
      %2838 = vmatprep.subr.bf16.mxu0 0
      %2839 = vmatpush1.bf16.msra.mxu0 %v2762
      %2840 = vmatprep.subr.bf16.mxu0 0
      %2841 = vmatpush1.bf16.msra.mxu0 %v2763
      %2842 = vmatprep.subr.bf16.mxu0 0
      %2843 = vmatpush1.bf16.msra.mxu0 %v2764
      %2844 = vmatprep.subr.bf16.mxu0 0
      %2845 = vmatpush1.bf16.msra.mxu0 %v2765
      %2846 = vmatprep.mubr.bf16.mxu0 %v2615
      %2847 = vmatmul.mubr.bf16.gmra.mrb[0].mxu0 %v2614
      %v2848 = vpop.f32.mrb[0].mxu0
      %v2849 = vadd.f32 %v2606, %v2848
      %v2850 = vpop.f32.mrb[0].mxu0
      %v2851 = vpop.f32.mrb[0].mxu0
      %v2852 = vpop.f32.mrb[0].mxu0
      %2853 = vdwg.mxu0
      %2854 = vmatprep.subr.bf16.mxu0 0
      %2855 = vmatpush1.bf16.msra.mxu0 %v2766
      %2856 = vmatprep.subr.bf16.mxu0 0
      %2857 = vmatpush1.bf16.msra.mxu0 %v2767
      %2858 = vmatprep.subr.bf16.mxu0 0
      %2859 = vmatpush1.bf16.msra.mxu0 %v2768
      %2860 = vmatprep.subr.bf16.mxu0 0
      %2861 = vmatpush1.bf16.msra.mxu0 %v2769
      %2862 = vmatprep.subr.bf16.mxu0 0
      %2863 = vmatpush1.bf16.msra.mxu0 %v2770
      %2864 = vmatprep.subr.bf16.mxu0 0
      %2865 = vmatpush1.bf16.msra.mxu0 %v2771
      %2866 = vmatprep.subr.bf16.mxu0 0
      %2867 = vmatpush1.bf16.msra.mxu0 %v2772
      %2868 = vmatprep.subr.bf16.mxu0 0
      %2869 = vmatpush1.bf16.msra.mxu0 %v2773
      %2870 = vmatprep.subr.bf16.mxu0 0
      %2871 = vmatpush1.bf16.msra.mxu0 %v2774
      %2872 = vmatprep.subr.bf16.mxu0 0
      %2873 = vmatpush1.bf16.msra.mxu0 %v2775
      %2874 = vmatprep.subr.bf16.mxu0 0
      %2875 = vmatpush1.bf16.msra.mxu0 %v2776
      %2876 = vmatprep.subr.bf16.mxu0 0
      %2877 = vmatpush1.bf16.msra.mxu0 %v2777
      %2878 = vmatprep.subr.bf16.mxu0 0
      %2879 = vmatpush1.bf16.msra.mxu0 %v2778
      %2880 = vmatprep.subr.bf16.mxu0 0
      %2881 = vmatpush1.bf16.msra.mxu0 %v2779
      %2882 = vmatprep.subr.bf16.mxu0 0
      %2883 = vmatpush1.bf16.msra.mxu0 %v2780
      %2884 = vmatprep.subr.bf16.mxu0 0
      %2885 = vmatpush1.bf16.msra.mxu0 %v2781
      %2886 = vmatprep.mubr.bf16.mxu0 %v2617
      %2887 = vmatmul.mubr.bf16.gmra.mrb[0].mxu0 %v2616
      %v2888 = vpop.f32.mrb[0].mxu0
      %v2889 = vadd.f32 %v2849, %v2888
      %v2890 = vpop.f32.mrb[0].mxu0
      %v2891 = vpop.f32.mrb[0].mxu0
      %v2892 = vpop.f32.mrb[0].mxu0
      %2893 = vdwg.mxu0
      %2894 = vst.msk [vmem:[%s534] sm:$0xff] %vm668, %v2889
      %p2895 = scmp.lt.s32.totalorder %s27, 1
      %s2896 = scalar_select %p2895, %s27, 1
      %s2897 = smul.addr %s2896, 8
      %s2898 = scalar_lea.vmem %s14, %s2897
      %p2899 = scmp.lt.s32.totalorder %s27, 1
      %s2900 = scalar_select %p2899, %s27, 1
      %s2901 = smul.addr %s2900, 8
      %s2902 = scalar_lea.vmem %s15, %s2901
      // Predicated region
      $region77: #{iqn_rnn_agent_forward.1} parent=75 // pred_check
        %p2903 = pneg %p354
      $region78: #{iqn_rnn_agent_forward.1} parent=75 // pred_check_branch
        %2905 = sbr.rel (%p2903) target = $region80
      $region79: #{iqn_rnn_agent_forward.1} parent=75 // pred_region
        _
      $region80: #{iqn_rnn_agent_forward.1} parent=75 // pred_fallthru
        _
      // Predicated region
      $region81: #{iqn_rnn_agent_forward.1} parent=75 // pred_check
        %p2906 = pneg %p380
      $region82: #{iqn_rnn_agent_forward.1} parent=75 // pred_check_branch
        %2908 = sbr.rel (%p2906) target = $region84
      $region83: #{iqn_rnn_agent_forward.1} parent=75 // pred_region
        _
      $region84: #{iqn_rnn_agent_forward.1} parent=75 // pred_fallthru
        _
    $region76: #{iqn_rnn_agent_forward.1} parent=5 // pred_fallthru
      _
    %p2909 = scmp.le.s32.totalorder 2, %s22
    // Predicated region
    $region85: #{iqn_rnn_agent_forward.1} parent=5 // pred_check
      %p2910 = pneg %p2909
    $region86: #{iqn_rnn_agent_forward.1} parent=5 // pred_check_branch
      %2912 = sbr.rel (%p2910) target = $region88
    $region87: #{iqn_rnn_agent_forward.1} parent=5 // pred_region
      %s2913 = ssub.s32 %s22, 2
      // Predicated region
      $region89: #{iqn_rnn_agent_forward.1} parent=87 // pred_check
        %p2914 = pneg %p360
      $region90: #{iqn_rnn_agent_forward.1} parent=87 // pred_check_branch
        %2916 = sbr.rel (%p2914) target = $region92
      $region91: #{iqn_rnn_agent_forward.1} parent=87 // pred_region
        %p2917 = scmp.lt.s32.totalorder %s28, 1
        %s2918 = scalar_select %p2917, %s28, 1
        %s2919 = smul.addr %s2918, 8
        %s2920 = scalar_lea.vmem %s14, %s2919
      $region92: #{iqn_rnn_agent_forward.1} parent=87 // pred_fallthru
        _
      // Predicated region
      $region93: #{iqn_rnn_agent_forward.1} parent=87 // pred_check
        %p2921 = pneg %p386
      $region94: #{iqn_rnn_agent_forward.1} parent=87 // pred_check_branch
        %2923 = sbr.rel (%p2921) target = $region96
      $region95: #{iqn_rnn_agent_forward.1} parent=87 // pred_region
        %p2924 = scmp.lt.s32.totalorder %s28, 1
        %s2925 = scalar_select %p2924, %s28, 1
        %s2926 = smul.addr %s2925, 8
        %s2927 = scalar_lea.vmem %s15, %s2926
      $region96: #{iqn_rnn_agent_forward.1} parent=87 // pred_fallthru
        _
    $region88: #{iqn_rnn_agent_forward.1} parent=5 // pred_fallthru
      _
  $region6: #{iqn_rnn_agent_forward.1} parent=0 // loop_footer
    %s26 = sadd.s32 1, %s22
  $region7: #{iqn_rnn_agent_forward.1} parent=0 // loop_footer_branch
    %21 = sbr.rel target = $region3
  $region8: #{iqn_rnn_agent_forward.1} parent=0 // loop_exit
    _

</llo_original>
